<compile_context>
chip_gen: v7x
topology: tpu7x:2x2x1
jax: 0.10.0
libtpu: 0.0.40
codegen_flags: <defaults>
</compile_context>

<pallas_src>
import functools

import jax
import jax.numpy as jnp
import numpy as np
from jax.experimental import pallas as pl
from jax.experimental.pallas import tpu as pltpu


# ------------------------------- helpers ------------------------------------

def _round_up(x, m):
    return (x + m - 1) // m * m


def _pick_tile(dim, pref, align):
    """Largest useful tile: `pref` when dim is big, else dim rounded to align."""
    if dim >= pref:
        return pref
    return _round_up(max(dim, 1), align)


def _vmem_limit_bytes():
    try:
        cap = int(getattr(pltpu.get_tpu_info(), "vmem_capacity_bytes", 64 << 20))
    except Exception:
        cap = 64 << 20
    # Leave headroom; never exceed ~96 MiB even on 128 MiB parts.
    return int(min(96 << 20, (cap * 3) // 4))


_VMEM_LIMIT = _vmem_limit_bytes()
# Bigger M tiles where VMEM allows (v5e/v6e 128 MiB -> 1024, v7x 64 MiB -> 512).
_TM_PREF = 1024 if _VMEM_LIMIT >= (72 << 20) else 512
_TK_PREF = 512
_TN_PREF = 256


# ----------------------------- Pallas kernels -------------------------------

def _conv_mm_kernel(lhs_ref, w_ref, b_ref, o_ref, stat_ref, acc_ref,
                    *, negative_slope):
    """One (tm x tn) output tile of the im2col conv matmul.

    Grid = (M tiles, Cout tiles, K tiles); K is the reduction axis. bf16
    operands, f32 accumulation in VMEM scratch. On the last K step the bias is
    added, an optional LeakyReLU applied, the tile stored, and per-column
    partial sums / sums-of-squares written to `stat_ref` (rows 0 and 1) so a
    following BatchNorm needs no extra statistics pass over the activation.
    """
    @pl.when(pl.program_id(2) == 0)
    def _():
        acc_ref[...] = jnp.zeros_like(acc_ref)

    acc_ref[...] += jnp.dot(lhs_ref[...], w_ref[...],
                            preferred_element_type=jnp.float32)

    @pl.when(pl.program_id(2) == pl.num_programs(2) - 1)
    def _():
        y = acc_ref[...] + b_ref[...]                 # (tm, tn) + (1, tn)
        if negative_slope is not None:
            y = jnp.where(y >= 0, y, negative_slope * y)
        o_ref[...] = y.astype(o_ref.dtype)
        stat_ref[...] = jnp.zeros_like(stat_ref)
        stat_ref[0:1, :] = jnp.sum(y, axis=0, keepdims=True)
        stat_ref[1:2, :] = jnp.sum(y * y, axis=0, keepdims=True)


def _affine_lrelu_kernel(y_ref, scale_ref, shift_ref, o_ref, *, negative_slope):
    """Per-channel scale/shift (folded BatchNorm) + LeakyReLU on one M tile."""
    out = y_ref[...].astype(jnp.float32) * scale_ref[...] + shift_ref[...]
    out = jnp.where(out >= 0, out, negative_slope * out)
    o_ref[...] = out.astype(o_ref.dtype)


# ------------------------------- wrappers ------------------------------------

def conv2d_im2col_pallas(x_nhwc, w_oihw, bias, *, stride, pad,
                         negative_slope=None, out_dtype=jnp.bfloat16):
    """Conv2d (PyTorch OIHW weights) + bias (+ optional fused LeakyReLU).

    Returns (out_pad, stats, meta):
      out_pad : (Mp, Cp) padded flat output (rows = N*Ho*Wo), dtype out_dtype
      stats   : (8*grid_m, Cp) f32; rows 0/1 of each 8-row group hold partial
                per-column sum / sum-of-squares of (conv + bias)
      meta    : shapes needed to un-pad / run the BN pass
    """
    N, H, W, Cin = x_nhwc.shape
    Cout, Cin_w, KH, KW = w_oihw.shape
    assert Cin == Cin_w
    Ho = (H + 2 * pad - KH) // stride + 1
    Wo = (W + 2 * pad - KW) // stride + 1
    M = N * Ho * Wo
    K = KH * KW * Cin

    # JAX-side im2col glue, emitted directly in bf16 (halves the expanded-slab
    # HBM traffic vs f32).
    # TODO(synk): fold the KH*KW tap gather into the kernel (strided DMA from a
    # padded NHWC block) to avoid materializing the 16x im2col slab in HBM.
    xp = jnp.pad(x_nhwc, ((0, 0), (pad, pad), (pad, pad), (0, 0)))
    cols = []
    for kh in range(KH):
        for kw in range(KW):
            cols.append(
                xp[:, kh:kh + stride * Ho:stride, kw:kw + stride * Wo:stride, :])
    patches = jnp.stack(cols, axis=3)                 # (N, Ho, Wo, KH*KW, Cin)
    lhs = patches.reshape(M, K).astype(jnp.bfloat16)

    # Tile-friendly, lane-dense padded shapes.
    tm = _pick_tile(M, _TM_PREF, 16)
    tk = _pick_tile(K, _TK_PREF, 128)
    tn = _pick_tile(Cout, _TN_PREF, 128)
    Mp, Kp, Cp = _round_up(M, tm), _round_up(K, tk), _round_up(Cout, tn)
    gm, gn, gk = Mp // tm, Cp // tn, Kp // tk

    lhs = jnp.pad(lhs, ((0, Mp - M), (0, Kp - K)))
    w_mat = jnp.transpose(w_oihw, (2, 3, 1, 0)).reshape(K, Cout)
    w_mat = jnp.pad(w_mat.astype(jnp.bfloat16), ((0, Kp - K), (0, Cp - Cout)))
    b_pad = jnp.pad(bias.astype(jnp.float32), (0, Cp - Cout)).reshape(1, Cp)

    out_pad, stats = pl.pallas_call(
        functools.partial(_conv_mm_kernel, negative_slope=negative_slope),
        out_shape=(jax.ShapeDtypeStruct((Mp, Cp), out_dtype),
                   jax.ShapeDtypeStruct((8 * gm, Cp), jnp.float32)),
        grid=(gm, gn, gk),
        in_specs=[
            pl.BlockSpec((tm, tk), lambda i, j, k: (i, k)),
            pl.BlockSpec((tk, tn), lambda i, j, k: (k, j)),
            pl.BlockSpec((1, tn), lambda i, j, k: (0, j)),
        ],
        out_specs=(
            pl.BlockSpec((tm, tn), lambda i, j, k: (i, j)),
            pl.BlockSpec((8, tn), lambda i, j, k: (i, j)),
        ),
        scratch_shapes=[pltpu.VMEM((tm, tn), jnp.float32)],
        compiler_params=pltpu.CompilerParams(
            dimension_semantics=("parallel", "parallel", "arbitrary"),
            vmem_limit_bytes=_VMEM_LIMIT),
    )(lhs, w_mat, b_pad)

    meta = dict(N=N, Ho=Ho, Wo=Wo, Cout=Cout, M=M, Mp=Mp, Cp=Cp, tm=tm)
    return out_pad, stats, meta


def _bn_scale_shift(stats, bias, gamma, beta, *, M, Mp, Cout, eps=1e-5):
    """Fold train-mode BatchNorm (biased variance) into per-channel scale/shift."""
    st = stats.reshape(-1, 8, stats.shape[-1])        # (grid_m, 8, Cp)
    s = jnp.sum(st[:, 0, :], axis=0)[:Cout]
    ss = jnp.sum(st[:, 1, :], axis=0)[:Cout]
    # Zero-padded lhs rows produce exactly `bias`; subtract their contribution.
    n_pad = float(Mp - M)
    s = s - n_pad * bias
    ss = ss - n_pad * bias * bias
    mean = s / M
    var = ss / M - mean * mean                        # biased (PyTorch train mode)
    scale = gamma * jax.lax.rsqrt(var + eps)
    shift = beta - mean * scale
    return scale, shift


def affine_lrelu_pallas(y_pad, scale, shift, *, tm, negative_slope=0.2,
                        out_dtype=jnp.bfloat16):
    """Gridded per-channel scale/shift + LeakyReLU on the padded (Mp, Cp) slab."""
    Mp, Cp = y_pad.shape
    Cout = scale.shape[0]
    sp = jnp.pad(scale.astype(jnp.float32), (0, Cp - Cout)).reshape(1, Cp)
    tp = jnp.pad(shift.astype(jnp.float32), (0, Cp - Cout)).reshape(1, Cp)
    gm = Mp // tm
    return pl.pallas_call(
        functools.partial(_affine_lrelu_kernel, negative_slope=negative_slope),
        out_shape=jax.ShapeDtypeStruct((Mp, Cp), out_dtype),
        grid=(gm,),
        in_specs=[
            pl.BlockSpec((tm, Cp), lambda i: (i, 0)),
            pl.BlockSpec((1, Cp), lambda i: (0, 0)),
            pl.BlockSpec((1, Cp), lambda i: (0, 0)),
        ],
        out_specs=pl.BlockSpec((tm, Cp), lambda i: (i, 0)),
        compiler_params=pltpu.CompilerParams(
            dimension_semantics=("parallel",),
            vmem_limit_bytes=_VMEM_LIMIT),
    )(y_pad, sp, tp)


# --------------------------- model construction ------------------------------

def init_params(key, input_nc, ndf, n_layers):
    """Deterministic synthetic parameters matching NLayerDiscriminator.__init__."""
    kw = 4
    cfgs = [(input_nc, ndf, 2, False)]                # (Cin, Cout, stride, has_bn)
    nf_mult = 1
    for n in range(1, n_layers):
        nf_prev, nf_mult = nf_mult, min(2 ** n, 8)
        cfgs.append((ndf * nf_prev, ndf * nf_mult, 2, True))
    nf_prev, nf_mult = nf_mult, min(2 ** n_layers, 8)
    cfgs.append((ndf * nf_prev, ndf * nf_mult, 1, True))
    cfgs.append((ndf * nf_mult, 1, 1, False))

    params = []
    for (cin, cout, stride, has_bn) in cfgs:
        key, kkey, bkey = jax.random.split(key, 3)
        w = 0.05 * jax.random.normal(kkey, (cout, cin, kw, kw), jnp.float32)
        b = 0.01 * jax.random.normal(bkey, (cout,), jnp.float32)
        layer = {"w": w, "b": b, "stride": stride, "has_bn": has_bn}
        if has_bn:
            # PyTorch BatchNorm2d default init: gamma=1, beta=0.
            layer["gamma"] = jnp.ones((cout,), jnp.float32)
            layer["beta"] = jnp.zeros((cout,), jnp.float32)
        params.append(layer)
    return params


def nlayer_discriminator_forward(x_nchw, params):
    """Forward of NLayerDiscriminator (getInterFeat=False, use_sigmoid=False)."""
    x = jnp.transpose(x_nchw, (0, 2, 3, 1))           # NCHW -> NHWC
    n_total = len(params)
    for idx, layer in enumerate(params):
        is_first = idx == 0
        is_last = idx == n_total - 1
        slope = 0.2 if is_first else None             # layer-1 LReLU fused in conv
        out_dtype = jnp.float32 if is_last else jnp.bfloat16
        y_pad, stats, meta = conv2d_im2col_pallas(
            x, layer["w"], layer["b"], stride=layer["stride"], pad=2,
            negative_slope=slope, out_dtype=out_dtype)
        if layer["has_bn"]:
            scale, shift = _bn_scale_shift(
                stats, layer["b"], layer["gamma"], layer["beta"],
                M=meta["M"], Mp=meta["Mp"], Cout=meta["Cout"], eps=1e-5)
            y_pad = affine_lrelu_pallas(y_pad, scale, shift, tm=meta["tm"],
                                        negative_slope=0.2,
                                        out_dtype=jnp.bfloat16)
        x = y_pad[:meta["M"], :meta["Cout"]].reshape(
            meta["N"], meta["Ho"], meta["Wo"], meta["Cout"])
    return jnp.transpose(x, (0, 3, 1, 2)).astype(jnp.float32)   # NHWC -> NCHW


# ------------------------------- reference -----------------------------------

def _reference_forward(x_nchw, params):
    """Pure-JAX (lax.conv, f32 HIGHEST) reference for correctness checking."""
    x = x_nchw
    n_total = len(params)
    for idx, layer in enumerate(params):
        s = layer["stride"]
        y = jax.lax.conv_general_dilated(
            x, layer["w"], window_strides=(s, s), padding=[(2, 2), (2, 2)],
            dimension_numbers=("NCHW", "OIHW", "NCHW"),
            precision=jax.lax.Precision.HIGHEST)
        y = y + layer["b"][None, :, None, None]
        if idx == 0:
            y = jnp.where(y >= 0, y, 0.2 * y)
        elif idx != n_total - 1:
            mean = jnp.mean(y, axis=(0, 2, 3), keepdims=True)
            var = jnp.mean(jnp.square(y - mean), axis=(0, 2, 3), keepdims=True)
            y = (y - mean) * jax.lax.rsqrt(var + 1e-5)
            y = (y * layer["gamma"][None, :, None, None]
                 + layer["beta"][None, :, None, None])
            y = jnp.where(y >= 0, y, 0.2 * y)
        x = y
    return x


# --------------------------------- main ---------------------------------------

if __name__ == "__main__":
    key = jax.random.PRNGKey(0)
    key, xkey = jax.random.split(key)

    # Small shapes consistent with the module: batch=2, input_nc=3, 16x16, ndf=8.
    N, input_nc, H, W = 2, 3, 16, 16
    ndf, n_layers = 8, 3

    x = jax.random.normal(xkey, (N, input_nc, H, W), jnp.float32)
    params = init_params(key, input_nc, ndf, n_layers)

    fwd = jax.jit(functools.partial(nlayer_discriminator_forward, params=params))
    out = jax.block_until_ready(fwd(x))

    # Expected spatial trace for 16x16 input: 16 -> 9 -> 5 -> 3 -> 4 -> 5, C_out=1.
    assert out.shape == (N, 1, 5, 5), out.shape

    ref = jax.block_until_ready(_reference_forward(x, params))
    # bf16 MXU operands / bf16 intermediate activations (f32 accumulation and
    # f32 BN statistics) vs an f32 HIGHEST reference.
    np.testing.assert_allclose(np.asarray(out), np.asarray(ref),
                               rtol=1e-2, atol=2e-2)

    print("KERNEL_OK")
</pallas_src>

<mosaic_0001>
module attributes {stable_mosaic.version = 11 : i64} {
  func.func @_conv_mm_kernel(%arg0: i32, %arg1: i32, %arg2: i32, %arg3: memref<176x128xbf16, #tpu.memory_space<vmem>>, %arg4: memref<128x128xbf16, #tpu.memory_space<vmem>>, %arg5: memref<1x128xf32, #tpu.memory_space<vmem>>, %arg6: memref<176x128xbf16, #tpu.memory_space<vmem>>, %arg7: memref<8x128xf32, #tpu.memory_space<vmem>>, %arg8: memref<176x128xf32, #tpu.memory_space<vmem>>) attributes {dimension_semantics = [#tpu.dimension_semantics<parallel>, #tpu.dimension_semantics<parallel>, #tpu.dimension_semantics<arbitrary>], iteration_bounds = array<i64: 1, 1, 1>, scalar_prefetch = 0 : i64, scratch_operands = 1 : i64, tpu.core_type = #tpu.core_type<tc>, window_params = [{transform_indices = @transform_0, window_bounds = array<i64: 176, 128>}, {transform_indices = @transform_1, window_bounds = array<i64: 128, 128>}, {transform_indices = @transform_2, window_bounds = array<i64: 1, 128>}, {transform_indices = @transform_3, window_bounds = array<i64: 176, 128>}, {transform_indices = @transform_4, window_bounds = array<i64: 8, 128>}]} {
    %c0_i32 = arith.constant 0 : i32
    %0 = arith.cmpi eq, %arg2, %c0_i32 : i32
    %1 = arith.extui %0 : i1 to i32
    %c0_i32_0 = arith.constant 0 : i32
    %2 = arith.cmpi ne, %1, %c0_i32_0 : i32
    scf.if %2 {
      %cst_10 = arith.constant 0.000000e+00 : f32
      %12 = vector.broadcast %cst_10 : f32 to vector<176x128xf32>
      %c0_11 = arith.constant 0 : index
      %c0_12 = arith.constant 0 : index
      %13 = vector.load %arg8[%c0_11, %c0_12] : memref<176x128xf32, #tpu.memory_space<vmem>>, vector<176x128xf32>
      tpu.vector_store %arg8[%c0_11, %c0_12], %12 {strides = array<i32>} : memref<176x128xf32, #tpu.memory_space<vmem>>, vector<176x128xf32>,
    } else {
    }
    %c0 = arith.constant 0 : index
    %c0_1 = arith.constant 0 : index
    %3 = vector.load %arg8[%c0, %c0_1] : memref<176x128xf32, #tpu.memory_space<vmem>>, vector<176x128xf32>
    %c0_2 = arith.constant 0 : index
    %c0_3 = arith.constant 0 : index
    %4 = vector.load %arg3[%c0_2, %c0_3] : memref<176x128xbf16, #tpu.memory_space<vmem>>, vector<176x128xbf16>
    %c0_4 = arith.constant 0 : index
    %c0_5 = arith.constant 0 : index
    %5 = vector.load %arg4[%c0_4, %c0_5] : memref<128x128xbf16, #tpu.memory_space<vmem>>, vector<128x128xbf16>
    %cst = arith.constant dense<0.000000e+00> : vector<176x128xf32>
    %6 = tpu.matmul %4, %5, %cst {dimension_numbers = #tpu.dot_dimension_numbers<[1], [0], [0], [1], [0, 0, 1, 1], [], []>} : vector<176x128xbf16>, vector<128x128xbf16>, vector<176x128xf32> -> vector<176x128xf32>
    %7 = arith.addf %3, %6 : vector<176x128xf32>
    %c0_6 = arith.constant 0 : index
    %c0_7 = arith.constant 0 : index
    %8 = vector.load %arg8[%c0_6, %c0_7] : memref<176x128xf32, #tpu.memory_space<vmem>>, vector<176x128xf32>
    tpu.vector_store %arg8[%c0_6, %c0_7], %7 {strides = array<i32>} : memref<176x128xf32, #tpu.memory_space<vmem>>, vector<176x128xf32>,
    %c0_i32_8 = arith.constant 0 : i32
    %9 = arith.cmpi eq, %arg2, %c0_i32_8 : i32
    %10 = arith.extui %9 : i1 to i32
    %c0_i32_9 = arith.constant 0 : i32
    %11 = arith.cmpi ne, %10, %c0_i32_9 : i32
    scf.if %11 {
      %c0_10 = arith.constant 0 : index
      %c0_11 = arith.constant 0 : index
      %12 = vector.load %arg8[%c0_10, %c0_11] : memref<176x128xf32, #tpu.memory_space<vmem>>, vector<176x128xf32>
      %c0_12 = arith.constant 0 : index
      %c0_13 = arith.constant 0 : index
      %13 = vector.load %arg5[%c0_12, %c0_13] : memref<1x128xf32, #tpu.memory_space<vmem>>, vector<1x128xf32>
      %14 = vector.broadcast %13 : vector<1x128xf32> to vector<176x128xf32>
      %15 = arith.addf %12, %14 : vector<176x128xf32>
      %cst_14 = arith.constant 0.000000e+00 : f32
      %16 = vector.broadcast %cst_14 : f32 to vector<176x128xf32>
      %17 = arith.cmpf oge, %15, %16 : vector<176x128xf32>
      %cst_15 = arith.constant 2.000000e-01 : f32
      %18 = vector.broadcast %cst_15 : f32 to vector<176x128xf32>
      %19 = arith.mulf %18, %15 : vector<176x128xf32>
      %20 = arith.select %17, %15, %19 : vector<176x128xi1>, vector<176x128xf32>
      %21 = arith.truncf %20 : vector<176x128xf32> to vector<176x128xbf16>
      %c0_16 = arith.constant 0 : index
      %c0_17 = arith.constant 0 : index
      %22 = vector.load %arg6[%c0_16, %c0_17] : memref<176x128xbf16, #tpu.memory_space<vmem>>, vector<176x128xbf16>
      tpu.vector_store %arg6[%c0_16, %c0_17], %21 {strides = array<i32>} : memref<176x128xbf16, #tpu.memory_space<vmem>>, vector<176x128xbf16>,
      %cst_18 = arith.constant 0.000000e+00 : f32
      %23 = vector.broadcast %cst_18 : f32 to vector<8x128xf32>
      %c0_19 = arith.constant 0 : index
      %c0_20 = arith.constant 0 : index
      %24 = vector.load %arg7[%c0_19, %c0_20] : memref<8x128xf32, #tpu.memory_space<vmem>>, vector<8x128xf32>
      tpu.vector_store %arg7[%c0_19, %c0_20], %23 {strides = array<i32>} : memref<8x128xf32, #tpu.memory_space<vmem>>, vector<8x128xf32>,
      %cst_21 = arith.constant dense<0.000000e+00> : vector<128xf32>
      %25 = vector.multi_reduction <add>, %20, %cst_21 [0] : vector<176x128xf32> to vector<128xf32>
      %26 = vector.shape_cast %25 : vector<128xf32> to vector<1x128xf32>
      %c0_22 = arith.constant 0 : index
      %c0_23 = arith.constant 0 : index
      %27 = vector.load %arg7[%c0_22, %c0_23] : memref<8x128xf32, #tpu.memory_space<vmem>>, vector<1x128xf32>
      tpu.vector_store %arg7[%c0_22, %c0_23], %26 {strides = array<i32>} : memref<8x128xf32, #tpu.memory_space<vmem>>, vector<1x128xf32>,
      %28 = arith.mulf %20, %20 : vector<176x128xf32>
      %cst_24 = arith.constant dense<0.000000e+00> : vector<128xf32>
      %29 = vector.multi_reduction <add>, %28, %cst_24 [0] : vector<176x128xf32> to vector<128xf32>
      %30 = vector.shape_cast %29 : vector<128xf32> to vector<1x128xf32>
      %c1 = arith.constant 1 : index
      %c0_25 = arith.constant 0 : index
      %31 = vector.load %arg7[%c1, %c0_25] : memref<8x128xf32, #tpu.memory_space<vmem>>, vector<1x128xf32>
      tpu.vector_store %arg7[%c1, %c0_25], %30 {strides = array<i32>} : memref<8x128xf32, #tpu.memory_space<vmem>>, vector<1x128xf32>,
    } else {
    }
    return
  }
  func.func @transform_0(%arg0: i32, %arg1: i32, %arg2: i32) -> (i32, i32) {
    %c0_i32 = arith.constant 0 : i32
    return %arg0, %arg2 : i32, i32
  }
  func.func @transform_1(%arg0: i32, %arg1: i32, %arg2: i32) -> (i32, i32) {
    %c0_i32 = arith.constant 0 : i32
    return %arg2, %arg1 : i32, i32
  }
  func.func @transform_2(%arg0: i32, %arg1: i32, %arg2: i32) -> (i32, i32) {
    %c0_i32 = arith.constant 0 : i32
    %c0_i32_0 = arith.constant 0 : i32
    return %c0_i32, %arg1 : i32, i32
  }
  func.func @transform_3(%arg0: i32, %arg1: i32, %arg2: i32) -> (i32, i32) {
    %c0_i32 = arith.constant 0 : i32
    return %arg0, %arg1 : i32, i32
  }
  func.func @transform_4(%arg0: i32, %arg1: i32, %arg2: i32) -> (i32, i32) {
    %c0_i32 = arith.constant 0 : i32
    return %arg0, %arg1 : i32, i32
  }
}

module attributes {stable_mosaic.version = 11 : i64} {
  func.func @_conv_mm_kernel(%arg0: i32, %arg1: i32, %arg2: i32, %arg3: memref<64x128xbf16, #tpu.memory_space<vmem>>, %arg4: memref<128x128xbf16, #tpu.memory_space<vmem>>, %arg5: memref<1x128xf32, #tpu.memory_space<vmem>>, %arg6: memref<64x128xbf16, #tpu.memory_space<vmem>>, %arg7: memref<8x128xf32, #tpu.memory_space<vmem>>, %arg8: memref<64x128xf32, #tpu.memory_space<vmem>>) attributes {dimension_semantics = [#tpu.dimension_semantics<parallel>, #tpu.dimension_semantics<parallel>, #tpu.dimension_semantics<arbitrary>], iteration_bounds = array<i64: 1, 1, 1>, scalar_prefetch = 0 : i64, scratch_operands = 1 : i64, tpu.core_type = #tpu.core_type<tc>, window_params = [{transform_indices = @transform_0, window_bounds = array<i64: 64, 128>}, {transform_indices = @transform_1, window_bounds = array<i64: 128, 128>}, {transform_indices = @transform_2, window_bounds = array<i64: 1, 128>}, {transform_indices = @transform_3, window_bounds = array<i64: 64, 128>}, {transform_indices = @transform_4, window_bounds = array<i64: 8, 128>}]} {
    %c0_i32 = arith.constant 0 : i32
    %0 = arith.cmpi eq, %arg2, %c0_i32 : i32
    %1 = arith.extui %0 : i1 to i32
    %c0_i32_0 = arith.constant 0 : i32
    %2 = arith.cmpi ne, %1, %c0_i32_0 : i32
    scf.if %2 {
      %cst_10 = arith.constant 0.000000e+00 : f32
      %12 = vector.broadcast %cst_10 : f32 to vector<64x128xf32>
      %c0_11 = arith.constant 0 : index
      %c0_12 = arith.constant 0 : index
      %13 = vector.load %arg8[%c0_11, %c0_12] : memref<64x128xf32, #tpu.memory_space<vmem>>, vector<64x128xf32>
      tpu.vector_store %arg8[%c0_11, %c0_12], %12 {strides = array<i32>} : memref<64x128xf32, #tpu.memory_space<vmem>>, vector<64x128xf32>,
    } else {
    }
    %c0 = arith.constant 0 : index
    %c0_1 = arith.constant 0 : index
    %3 = vector.load %arg8[%c0, %c0_1] : memref<64x128xf32, #tpu.memory_space<vmem>>, vector<64x128xf32>
    %c0_2 = arith.constant 0 : index
    %c0_3 = arith.constant 0 : index
    %4 = vector.load %arg3[%c0_2, %c0_3] : memref<64x128xbf16, #tpu.memory_space<vmem>>, vector<64x128xbf16>
    %c0_4 = arith.constant 0 : index
    %c0_5 = arith.constant 0 : index
    %5 = vector.load %arg4[%c0_4, %c0_5] : memref<128x128xbf16, #tpu.memory_space<vmem>>, vector<128x128xbf16>
    %cst = arith.constant dense<0.000000e+00> : vector<64x128xf32>
    %6 = tpu.matmul %4, %5, %cst {dimension_numbers = #tpu.dot_dimension_numbers<[1], [0], [0], [1], [0, 0, 1, 1], [], []>} : vector<64x128xbf16>, vector<128x128xbf16>, vector<64x128xf32> -> vector<64x128xf32>
    %7 = arith.addf %3, %6 : vector<64x128xf32>
    %c0_6 = arith.constant 0 : index
    %c0_7 = arith.constant 0 : index
    %8 = vector.load %arg8[%c0_6, %c0_7] : memref<64x128xf32, #tpu.memory_space<vmem>>, vector<64x128xf32>
    tpu.vector_store %arg8[%c0_6, %c0_7], %7 {strides = array<i32>} : memref<64x128xf32, #tpu.memory_space<vmem>>, vector<64x128xf32>,
    %c0_i32_8 = arith.constant 0 : i32
    %9 = arith.cmpi eq, %arg2, %c0_i32_8 : i32
    %10 = arith.extui %9 : i1 to i32
    %c0_i32_9 = arith.constant 0 : i32
    %11 = arith.cmpi ne, %10, %c0_i32_9 : i32
    scf.if %11 {
      %c0_10 = arith.constant 0 : index
      %c0_11 = arith.constant 0 : index
      %12 = vector.load %arg8[%c0_10, %c0_11] : memref<64x128xf32, #tpu.memory_space<vmem>>, vector<64x128xf32>
      %c0_12 = arith.constant 0 : index
      %c0_13 = arith.constant 0 : index
      %13 = vector.load %arg5[%c0_12, %c0_13] : memref<1x128xf32, #tpu.memory_space<vmem>>, vector<1x128xf32>
      %14 = vector.broadcast %13 : vector<1x128xf32> to vector<64x128xf32>
      %15 = arith.addf %12, %14 : vector<64x128xf32>
      %16 = arith.truncf %15 : vector<64x128xf32> to vector<64x128xbf16>
      %c0_14 = arith.constant 0 : index
      %c0_15 = arith.constant 0 : index
      %17 = vector.load %arg6[%c0_14, %c0_15] : memref<64x128xbf16, #tpu.memory_space<vmem>>, vector<64x128xbf16>
      tpu.vector_store %arg6[%c0_14, %c0_15], %16 {strides = array<i32>} : memref<64x128xbf16, #tpu.memory_space<vmem>>, vector<64x128xbf16>,
      %cst_16 = arith.constant 0.000000e+00 : f32
      %18 = vector.broadcast %cst_16 : f32 to vector<8x128xf32>
      %c0_17 = arith.constant 0 : index
      %c0_18 = arith.constant 0 : index
      %19 = vector.load %arg7[%c0_17, %c0_18] : memref<8x128xf32, #tpu.memory_space<vmem>>, vector<8x128xf32>
      tpu.vector_store %arg7[%c0_17, %c0_18], %18 {strides = array<i32>} : memref<8x128xf32, #tpu.memory_space<vmem>>, vector<8x128xf32>,
      %cst_19 = arith.constant dense<0.000000e+00> : vector<128xf32>
      %20 = vector.multi_reduction <add>, %15, %cst_19 [0] : vector<64x128xf32> to vector<128xf32>
      %21 = vector.shape_cast %20 : vector<128xf32> to vector<1x128xf32>
      %c0_20 = arith.constant 0 : index
      %c0_21 = arith.constant 0 : index
      %22 = vector.load %arg7[%c0_20, %c0_21] : memref<8x128xf32, #tpu.memory_space<vmem>>, vector<1x128xf32>
      tpu.vector_store %arg7[%c0_20, %c0_21], %21 {strides = array<i32>} : memref<8x128xf32, #tpu.memory_space<vmem>>, vector<1x128xf32>,
      %23 = arith.mulf %15, %15 : vector<64x128xf32>
      %cst_22 = arith.constant dense<0.000000e+00> : vector<128xf32>
      %24 = vector.multi_reduction <add>, %23, %cst_22 [0] : vector<64x128xf32> to vector<128xf32>
      %25 = vector.shape_cast %24 : vector<128xf32> to vector<1x128xf32>
      %c1 = arith.constant 1 : index
      %c0_23 = arith.constant 0 : index
      %26 = vector.load %arg7[%c1, %c0_23] : memref<8x128xf32, #tpu.memory_space<vmem>>, vector<1x128xf32>
      tpu.vector_store %arg7[%c1, %c0_23], %25 {strides = array<i32>} : memref<8x128xf32, #tpu.memory_space<vmem>>, vector<1x128xf32>,
    } else {
    }
    return
  }
  func.func @transform_0(%arg0: i32, %arg1: i32, %arg2: i32) -> (i32, i32) {
    %c0_i32 = arith.constant 0 : i32
    return %arg0, %arg2 : i32, i32
  }
  func.func @transform_1(%arg0: i32, %arg1: i32, %arg2: i32) -> (i32, i32) {
    %c0_i32 = arith.constant 0 : i32
    return %arg2, %arg1 : i32, i32
  }
  func.func @transform_2(%arg0: i32, %arg1: i32, %arg2: i32) -> (i32, i32) {
    %c0_i32 = arith.constant 0 : i32
    %c0_i32_0 = arith.constant 0 : i32
    return %c0_i32, %arg1 : i32, i32
  }
  func.func @transform_3(%arg0: i32, %arg1: i32, %arg2: i32) -> (i32, i32) {
    %c0_i32 = arith.constant 0 : i32
    return %arg0, %arg1 : i32, i32
  }
  func.func @transform_4(%arg0: i32, %arg1: i32, %arg2: i32) -> (i32, i32) {
    %c0_i32 = arith.constant 0 : i32
    return %arg0, %arg1 : i32, i32
  }
}

module attributes {stable_mosaic.version = 11 : i64} {
  func.func @_affine_lrelu_kernel(%arg0: i32, %arg1: memref<64x128xbf16, #tpu.memory_space<vmem>>, %arg2: memref<1x128xf32, #tpu.memory_space<vmem>>, %arg3: memref<1x128xf32, #tpu.memory_space<vmem>>, %arg4: memref<64x128xbf16, #tpu.memory_space<vmem>>) attributes {dimension_semantics = [#tpu.dimension_semantics<parallel>], iteration_bounds = array<i64: 1>, scalar_prefetch = 0 : i64, scratch_operands = 0 : i64, tpu.core_type = #tpu.core_type<tc>, window_params = [{transform_indices = @transform_0, window_bounds = array<i64: 64, 128>}, {pipeline_mode = #tpu.pipeline_mode<synchronous>, transform_indices = @transform_1, window_bounds = array<i64: 1, 128>}, {pipeline_mode = #tpu.pipeline_mode<synchronous>, transform_indices = @transform_2, window_bounds = array<i64: 1, 128>}, {transform_indices = @transform_3, window_bounds = array<i64: 64, 128>}]} {
    %c0 = arith.constant 0 : index
    %c0_0 = arith.constant 0 : index
    %0 = vector.load %arg1[%c0, %c0_0] : memref<64x128xbf16, #tpu.memory_space<vmem>>, vector<64x128xbf16>
    %1 = arith.extf %0 : vector<64x128xbf16> to vector<64x128xf32>
    %c0_1 = arith.constant 0 : index
    %c0_2 = arith.constant 0 : index
    %2 = vector.load %arg2[%c0_1, %c0_2] : memref<1x128xf32, #tpu.memory_space<vmem>>, vector<1x128xf32>
    %3 = vector.broadcast %2 : vector<1x128xf32> to vector<64x128xf32>
    %4 = arith.mulf %1, %3 : vector<64x128xf32>
    %c0_3 = arith.constant 0 : index
    %c0_4 = arith.constant 0 : index
    %5 = vector.load %arg3[%c0_3, %c0_4] : memref<1x128xf32, #tpu.memory_space<vmem>>, vector<1x128xf32>
    %6 = vector.broadcast %5 : vector<1x128xf32> to vector<64x128xf32>
    %7 = arith.addf %4, %6 : vector<64x128xf32>
    %cst = arith.constant 0.000000e+00 : f32
    %8 = vector.broadcast %cst : f32 to vector<64x128xf32>
    %9 = arith.cmpf oge, %7, %8 : vector<64x128xf32>
    %cst_5 = arith.constant 2.000000e-01 : f32
    %10 = vector.broadcast %cst_5 : f32 to vector<64x128xf32>
    %11 = arith.mulf %10, %7 : vector<64x128xf32>
    %12 = arith.select %9, %7, %11 : vector<64x128xi1>, vector<64x128xf32>
    %13 = arith.truncf %12 : vector<64x128xf32> to vector<64x128xbf16>
    %c0_6 = arith.constant 0 : index
    %c0_7 = arith.constant 0 : index
    %14 = vector.load %arg4[%c0_6, %c0_7] : memref<64x128xbf16, #tpu.memory_space<vmem>>, vector<64x128xbf16>
    tpu.vector_store %arg4[%c0_6, %c0_7], %13 {strides = array<i32>} : memref<64x128xbf16, #tpu.memory_space<vmem>>, vector<64x128xbf16>,
    return
  }
  func.func @transform_0(%arg0: i32) -> (i32, i32) {
    %c0_i32 = arith.constant 0 : i32
    %c0_i32_0 = arith.constant 0 : i32
    return %arg0, %c0_i32 : i32, i32
  }
  func.func @transform_1(%arg0: i32) -> (i32, i32) {
    %c0_i32 = arith.constant 0 : i32
    %c0_i32_0 = arith.constant 0 : i32
    %c0_i32_1 = arith.constant 0 : i32
    return %c0_i32, %c0_i32_0 : i32, i32
  }
  func.func @transform_2(%arg0: i32) -> (i32, i32) {
    %c0_i32 = arith.constant 0 : i32
    %c0_i32_0 = arith.constant 0 : i32
    %c0_i32_1 = arith.constant 0 : i32
    return %c0_i32, %c0_i32_0 : i32, i32
  }
  func.func @transform_3(%arg0: i32) -> (i32, i32) {
    %c0_i32 = arith.constant 0 : i32
    %c0_i32_0 = arith.constant 0 : i32
    return %arg0, %c0_i32 : i32, i32
  }
}

module attributes {stable_mosaic.version = 11 : i64} {
  func.func @_affine_lrelu_kernel(%arg0: i32, %arg1: memref<32x128xbf16, #tpu.memory_space<vmem>>, %arg2: memref<1x128xf32, #tpu.memory_space<vmem>>, %arg3: memref<1x128xf32, #tpu.memory_space<vmem>>, %arg4: memref<32x128xbf16, #tpu.memory_space<vmem>>) attributes {dimension_semantics = [#tpu.dimension_semantics<parallel>], iteration_bounds = array<i64: 1>, scalar_prefetch = 0 : i64, scratch_operands = 0 : i64, tpu.core_type = #tpu.core_type<tc>, window_params = [{transform_indices = @transform_0, window_bounds = array<i64: 32, 128>}, {pipeline_mode = #tpu.pipeline_mode<synchronous>, transform_indices = @transform_1, window_bounds = array<i64: 1, 128>}, {pipeline_mode = #tpu.pipeline_mode<synchronous>, transform_indices = @transform_2, window_bounds = array<i64: 1, 128>}, {transform_indices = @transform_3, window_bounds = array<i64: 32, 128>}]} {
    %c0 = arith.constant 0 : index
    %c0_0 = arith.constant 0 : index
    %0 = vector.load %arg1[%c0, %c0_0] : memref<32x128xbf16, #tpu.memory_space<vmem>>, vector<32x128xbf16>
    %1 = arith.extf %0 : vector<32x128xbf16> to vector<32x128xf32>
    %c0_1 = arith.constant 0 : index
    %c0_2 = arith.constant 0 : index
    %2 = vector.load %arg2[%c0_1, %c0_2] : memref<1x128xf32, #tpu.memory_space<vmem>>, vector<1x128xf32>
    %3 = vector.broadcast %2 : vector<1x128xf32> to vector<32x128xf32>
    %4 = arith.mulf %1, %3 : vector<32x128xf32>
    %c0_3 = arith.constant 0 : index
    %c0_4 = arith.constant 0 : index
    %5 = vector.load %arg3[%c0_3, %c0_4] : memref<1x128xf32, #tpu.memory_space<vmem>>, vector<1x128xf32>
    %6 = vector.broadcast %5 : vector<1x128xf32> to vector<32x128xf32>
    %7 = arith.addf %4, %6 : vector<32x128xf32>
    %cst = arith.constant 0.000000e+00 : f32
    %8 = vector.broadcast %cst : f32 to vector<32x128xf32>
    %9 = arith.cmpf oge, %7, %8 : vector<32x128xf32>
    %cst_5 = arith.constant 2.000000e-01 : f32
    %10 = vector.broadcast %cst_5 : f32 to vector<32x128xf32>
    %11 = arith.mulf %10, %7 : vector<32x128xf32>
    %12 = arith.select %9, %7, %11 : vector<32x128xi1>, vector<32x128xf32>
    %13 = arith.truncf %12 : vector<32x128xf32> to vector<32x128xbf16>
    %c0_6 = arith.constant 0 : index
    %c0_7 = arith.constant 0 : index
    %14 = vector.load %arg4[%c0_6, %c0_7] : memref<32x128xbf16, #tpu.memory_space<vmem>>, vector<32x128xbf16>
    tpu.vector_store %arg4[%c0_6, %c0_7], %13 {strides = array<i32>} : memref<32x128xbf16, #tpu.memory_space<vmem>>, vector<32x128xbf16>,
    return
  }
  func.func @transform_0(%arg0: i32) -> (i32, i32) {
    %c0_i32 = arith.constant 0 : i32
    %c0_i32_0 = arith.constant 0 : i32
    return %arg0, %c0_i32 : i32, i32
  }
  func.func @transform_1(%arg0: i32) -> (i32, i32) {
    %c0_i32 = arith.constant 0 : i32
    %c0_i32_0 = arith.constant 0 : i32
    %c0_i32_1 = arith.constant 0 : i32
    return %c0_i32, %c0_i32_0 : i32, i32
  }
  func.func @transform_2(%arg0: i32) -> (i32, i32) {
    %c0_i32 = arith.constant 0 : i32
    %c0_i32_0 = arith.constant 0 : i32
    %c0_i32_1 = arith.constant 0 : i32
    return %c0_i32, %c0_i32_0 : i32, i32
  }
  func.func @transform_3(%arg0: i32) -> (i32, i32) {
    %c0_i32 = arith.constant 0 : i32
    %c0_i32_0 = arith.constant 0 : i32
    return %arg0, %c0_i32 : i32, i32
  }
}

module attributes {stable_mosaic.version = 11 : i64} {
  func.func @_conv_mm_kernel(%arg0: i32, %arg1: i32, %arg2: i32, %arg3: memref<32x256xbf16, #tpu.memory_space<vmem>>, %arg4: memref<256x128xbf16, #tpu.memory_space<vmem>>, %arg5: memref<1x128xf32, #tpu.memory_space<vmem>>, %arg6: memref<32x128xbf16, #tpu.memory_space<vmem>>, %arg7: memref<8x128xf32, #tpu.memory_space<vmem>>, %arg8: memref<32x128xf32, #tpu.memory_space<vmem>>) attributes {dimension_semantics = [#tpu.dimension_semantics<parallel>, #tpu.dimension_semantics<parallel>, #tpu.dimension_semantics<arbitrary>], iteration_bounds = array<i64: 1, 1, 1>, scalar_prefetch = 0 : i64, scratch_operands = 1 : i64, tpu.core_type = #tpu.core_type<tc>, window_params = [{transform_indices = @transform_0, window_bounds = array<i64: 32, 256>}, {transform_indices = @transform_1, window_bounds = array<i64: 256, 128>}, {transform_indices = @transform_2, window_bounds = array<i64: 1, 128>}, {transform_indices = @transform_3, window_bounds = array<i64: 32, 128>}, {transform_indices = @transform_4, window_bounds = array<i64: 8, 128>}]} {
    %c0_i32 = arith.constant 0 : i32
    %0 = arith.cmpi eq, %arg2, %c0_i32 : i32
    %1 = arith.extui %0 : i1 to i32
    %c0_i32_0 = arith.constant 0 : i32
    %2 = arith.cmpi ne, %1, %c0_i32_0 : i32
    scf.if %2 {
      %cst_10 = arith.constant 0.000000e+00 : f32
      %12 = vector.broadcast %cst_10 : f32 to vector<32x128xf32>
      %c0_11 = arith.constant 0 : index
      %c0_12 = arith.constant 0 : index
      %13 = vector.load %arg8[%c0_11, %c0_12] : memref<32x128xf32, #tpu.memory_space<vmem>>, vector<32x128xf32>
      tpu.vector_store %arg8[%c0_11, %c0_12], %12 {strides = array<i32>} : memref<32x128xf32, #tpu.memory_space<vmem>>, vector<32x128xf32>,
    } else {
    }
    %c0 = arith.constant 0 : index
    %c0_1 = arith.constant 0 : index
    %3 = vector.load %arg8[%c0, %c0_1] : memref<32x128xf32, #tpu.memory_space<vmem>>, vector<32x128xf32>
    %c0_2 = arith.constant 0 : index
    %c0_3 = arith.constant 0 : index
    %4 = vector.load %arg3[%c0_2, %c0_3] : memref<32x256xbf16, #tpu.memory_space<vmem>>, vector<32x256xbf16>
    %c0_4 = arith.constant 0 : index
    %c0_5 = arith.constant 0 : index
    %5 = vector.load %arg4[%c0_4, %c0_5] : memref<256x128xbf16, #tpu.memory_space<vmem>>, vector<256x128xbf16>
    %cst = arith.constant dense<0.000000e+00> : vector<32x128xf32>
    %6 = tpu.matmul %4, %5, %cst {dimension_numbers = #tpu.dot_dimension_numbers<[1], [0], [0], [1], [0, 0, 1, 1], [], []>} : vector<32x256xbf16>, vector<256x128xbf16>, vector<32x128xf32> -> vector<32x128xf32>
    %7 = arith.addf %3, %6 : vector<32x128xf32>
    %c0_6 = arith.constant 0 : index
    %c0_7 = arith.constant 0 : index
    %8 = vector.load %arg8[%c0_6, %c0_7] : memref<32x128xf32, #tpu.memory_space<vmem>>, vector<32x128xf32>
    tpu.vector_store %arg8[%c0_6, %c0_7], %7 {strides = array<i32>} : memref<32x128xf32, #tpu.memory_space<vmem>>, vector<32x128xf32>,
    %c0_i32_8 = arith.constant 0 : i32
    %9 = arith.cmpi eq, %arg2, %c0_i32_8 : i32
    %10 = arith.extui %9 : i1 to i32
    %c0_i32_9 = arith.constant 0 : i32
    %11 = arith.cmpi ne, %10, %c0_i32_9 : i32
    scf.if %11 {
      %c0_10 = arith.constant 0 : index
      %c0_11 = arith.constant 0 : index
      %12 = vector.load %arg8[%c0_10, %c0_11] : memref<32x128xf32, #tpu.memory_space<vmem>>, vector<32x128xf32>
      %c0_12 = arith.constant 0 : index
      %c0_13 = arith.constant 0 : index
      %13 = vector.load %arg5[%c0_12, %c0_13] : memref<1x128xf32, #tpu.memory_space<vmem>>, vector<1x128xf32>
      %14 = vector.broadcast %13 : vector<1x128xf32> to vector<32x128xf32>
      %15 = arith.addf %12, %14 : vector<32x128xf32>
      %16 = arith.truncf %15 : vector<32x128xf32> to vector<32x128xbf16>
      %c0_14 = arith.constant 0 : index
      %c0_15 = arith.constant 0 : index
      %17 = vector.load %arg6[%c0_14, %c0_15] : memref<32x128xbf16, #tpu.memory_space<vmem>>, vector<32x128xbf16>
      tpu.vector_store %arg6[%c0_14, %c0_15], %16 {strides = array<i32>} : memref<32x128xbf16, #tpu.memory_space<vmem>>, vector<32x128xbf16>,
      %cst_16 = arith.constant 0.000000e+00 : f32
      %18 = vector.broadcast %cst_16 : f32 to vector<8x128xf32>
      %c0_17 = arith.constant 0 : index
      %c0_18 = arith.constant 0 : index
      %19 = vector.load %arg7[%c0_17, %c0_18] : memref<8x128xf32, #tpu.memory_space<vmem>>, vector<8x128xf32>
      tpu.vector_store %arg7[%c0_17, %c0_18], %18 {strides = array<i32>} : memref<8x128xf32, #tpu.memory_space<vmem>>, vector<8x128xf32>,
      %cst_19 = arith.constant dense<0.000000e+00> : vector<128xf32>
      %20 = vector.multi_reduction <add>, %15, %cst_19 [0] : vector<32x128xf32> to vector<128xf32>
      %21 = vector.shape_cast %20 : vector<128xf32> to vector<1x128xf32>
      %c0_20 = arith.constant 0 : index
      %c0_21 = arith.constant 0 : index
      %22 = vector.load %arg7[%c0_20, %c0_21] : memref<8x128xf32, #tpu.memory_space<vmem>>, vector<1x128xf32>
      tpu.vector_store %arg7[%c0_20, %c0_21], %21 {strides = array<i32>} : memref<8x128xf32, #tpu.memory_space<vmem>>, vector<1x128xf32>,
      %23 = arith.mulf %15, %15 : vector<32x128xf32>
      %cst_22 = arith.constant dense<0.000000e+00> : vector<128xf32>
      %24 = vector.multi_reduction <add>, %23, %cst_22 [0] : vector<32x128xf32> to vector<128xf32>
      %25 = vector.shape_cast %24 : vector<128xf32> to vector<1x128xf32>
      %c1 = arith.constant 1 : index
      %c0_23 = arith.constant 0 : index
      %26 = vector.load %arg7[%c1, %c0_23] : memref<8x128xf32, #tpu.memory_space<vmem>>, vector<1x128xf32>
      tpu.vector_store %arg7[%c1, %c0_23], %25 {strides = array<i32>} : memref<8x128xf32, #tpu.memory_space<vmem>>, vector<1x128xf32>,
    } else {
    }
    return
  }
  func.func @transform_0(%arg0: i32, %arg1: i32, %arg2: i32) -> (i32, i32) {
    %c0_i32 = arith.constant 0 : i32
    return %arg0, %arg2 : i32, i32
  }
  func.func @transform_1(%arg0: i32, %arg1: i32, %arg2: i32) -> (i32, i32) {
    %c0_i32 = arith.constant 0 : i32
    return %arg2, %arg1 : i32, i32
  }
  func.func @transform_2(%arg0: i32, %arg1: i32, %arg2: i32) -> (i32, i32) {
    %c0_i32 = arith.constant 0 : i32
    %c0_i32_0 = arith.constant 0 : i32
    return %c0_i32, %arg1 : i32, i32
  }
  func.func @transform_3(%arg0: i32, %arg1: i32, %arg2: i32) -> (i32, i32) {
    %c0_i32 = arith.constant 0 : i32
    return %arg0, %arg1 : i32, i32
  }
  func.func @transform_4(%arg0: i32, %arg1: i32, %arg2: i32) -> (i32, i32) {
    %c0_i32 = arith.constant 0 : i32
    return %arg0, %arg1 : i32, i32
  }
}

module attributes {stable_mosaic.version = 11 : i64} {
  func.func @_conv_mm_kernel(%arg0: i32, %arg1: i32, %arg2: i32, %arg3: memref<32x512xbf16, #tpu.memory_space<vmem>>, %arg4: memref<512x128xbf16, #tpu.memory_space<vmem>>, %arg5: memref<1x128xf32, #tpu.memory_space<vmem>>, %arg6: memref<32x128xbf16, #tpu.memory_space<vmem>>, %arg7: memref<8x128xf32, #tpu.memory_space<vmem>>, %arg8: memref<32x128xf32, #tpu.memory_space<vmem>>) attributes {dimension_semantics = [#tpu.dimension_semantics<parallel>, #tpu.dimension_semantics<parallel>, #tpu.dimension_semantics<arbitrary>], iteration_bounds = array<i64: 1, 1, 1>, scalar_prefetch = 0 : i64, scratch_operands = 1 : i64, tpu.core_type = #tpu.core_type<tc>, window_params = [{transform_indices = @transform_0, window_bounds = array<i64: 32, 512>}, {transform_indices = @transform_1, window_bounds = array<i64: 512, 128>}, {transform_indices = @transform_2, window_bounds = array<i64: 1, 128>}, {transform_indices = @transform_3, window_bounds = array<i64: 32, 128>}, {transform_indices = @transform_4, window_bounds = array<i64: 8, 128>}]} {
    %c0_i32 = arith.constant 0 : i32
    %0 = arith.cmpi eq, %arg2, %c0_i32 : i32
    %1 = arith.extui %0 : i1 to i32
    %c0_i32_0 = arith.constant 0 : i32
    %2 = arith.cmpi ne, %1, %c0_i32_0 : i32
    scf.if %2 {
      %cst_10 = arith.constant 0.000000e+00 : f32
      %12 = vector.broadcast %cst_10 : f32 to vector<32x128xf32>
      %c0_11 = arith.constant 0 : index
      %c0_12 = arith.constant 0 : index
      %13 = vector.load %arg8[%c0_11, %c0_12] : memref<32x128xf32, #tpu.memory_space<vmem>>, vector<32x128xf32>
      tpu.vector_store %arg8[%c0_11, %c0_12], %12 {strides = array<i32>} : memref<32x128xf32, #tpu.memory_space<vmem>>, vector<32x128xf32>,
    } else {
    }
    %c0 = arith.constant 0 : index
    %c0_1 = arith.constant 0 : index
    %3 = vector.load %arg8[%c0, %c0_1] : memref<32x128xf32, #tpu.memory_space<vmem>>, vector<32x128xf32>
    %c0_2 = arith.constant 0 : index
    %c0_3 = arith.constant 0 : index
    %4 = vector.load %arg3[%c0_2, %c0_3] : memref<32x512xbf16, #tpu.memory_space<vmem>>, vector<32x512xbf16>
    %c0_4 = arith.constant 0 : index
    %c0_5 = arith.constant 0 : index
    %5 = vector.load %arg4[%c0_4, %c0_5] : memref<512x128xbf16, #tpu.memory_space<vmem>>, vector<512x128xbf16>
    %cst = arith.constant dense<0.000000e+00> : vector<32x128xf32>
    %6 = tpu.matmul %4, %5, %cst {dimension_numbers = #tpu.dot_dimension_numbers<[1], [0], [0], [1], [0, 0, 1, 1], [], []>} : vector<32x512xbf16>, vector<512x128xbf16>, vector<32x128xf32> -> vector<32x128xf32>
    %7 = arith.addf %3, %6 : vector<32x128xf32>
    %c0_6 = arith.constant 0 : index
    %c0_7 = arith.constant 0 : index
    %8 = vector.load %arg8[%c0_6, %c0_7] : memref<32x128xf32, #tpu.memory_space<vmem>>, vector<32x128xf32>
    tpu.vector_store %arg8[%c0_6, %c0_7], %7 {strides = array<i32>} : memref<32x128xf32, #tpu.memory_space<vmem>>, vector<32x128xf32>,
    %c0_i32_8 = arith.constant 0 : i32
    %9 = arith.cmpi eq, %arg2, %c0_i32_8 : i32
    %10 = arith.extui %9 : i1 to i32
    %c0_i32_9 = arith.constant 0 : i32
    %11 = arith.cmpi ne, %10, %c0_i32_9 : i32
    scf.if %11 {
      %c0_10 = arith.constant 0 : index
      %c0_11 = arith.constant 0 : index
      %12 = vector.load %arg8[%c0_10, %c0_11] : memref<32x128xf32, #tpu.memory_space<vmem>>, vector<32x128xf32>
      %c0_12 = arith.constant 0 : index
      %c0_13 = arith.constant 0 : index
      %13 = vector.load %arg5[%c0_12, %c0_13] : memref<1x128xf32, #tpu.memory_space<vmem>>, vector<1x128xf32>
      %14 = vector.broadcast %13 : vector<1x128xf32> to vector<32x128xf32>
      %15 = arith.addf %12, %14 : vector<32x128xf32>
      %16 = arith.truncf %15 : vector<32x128xf32> to vector<32x128xbf16>
      %c0_14 = arith.constant 0 : index
      %c0_15 = arith.constant 0 : index
      %17 = vector.load %arg6[%c0_14, %c0_15] : memref<32x128xbf16, #tpu.memory_space<vmem>>, vector<32x128xbf16>
      tpu.vector_store %arg6[%c0_14, %c0_15], %16 {strides = array<i32>} : memref<32x128xbf16, #tpu.memory_space<vmem>>, vector<32x128xbf16>,
      %cst_16 = arith.constant 0.000000e+00 : f32
      %18 = vector.broadcast %cst_16 : f32 to vector<8x128xf32>
      %c0_17 = arith.constant 0 : index
      %c0_18 = arith.constant 0 : index
      %19 = vector.load %arg7[%c0_17, %c0_18] : memref<8x128xf32, #tpu.memory_space<vmem>>, vector<8x128xf32>
      tpu.vector_store %arg7[%c0_17, %c0_18], %18 {strides = array<i32>} : memref<8x128xf32, #tpu.memory_space<vmem>>, vector<8x128xf32>,
      %cst_19 = arith.constant dense<0.000000e+00> : vector<128xf32>
      %20 = vector.multi_reduction <add>, %15, %cst_19 [0] : vector<32x128xf32> to vector<128xf32>
      %21 = vector.shape_cast %20 : vector<128xf32> to vector<1x128xf32>
      %c0_20 = arith.constant 0 : index
      %c0_21 = arith.constant 0 : index
      %22 = vector.load %arg7[%c0_20, %c0_21] : memref<8x128xf32, #tpu.memory_space<vmem>>, vector<1x128xf32>
      tpu.vector_store %arg7[%c0_20, %c0_21], %21 {strides = array<i32>} : memref<8x128xf32, #tpu.memory_space<vmem>>, vector<1x128xf32>,
      %23 = arith.mulf %15, %15 : vector<32x128xf32>
      %cst_22 = arith.constant dense<0.000000e+00> : vector<128xf32>
      %24 = vector.multi_reduction <add>, %23, %cst_22 [0] : vector<32x128xf32> to vector<128xf32>
      %25 = vector.shape_cast %24 : vector<128xf32> to vector<1x128xf32>
      %c1 = arith.constant 1 : index
      %c0_23 = arith.constant 0 : index
      %26 = vector.load %arg7[%c1, %c0_23] : memref<8x128xf32, #tpu.memory_space<vmem>>, vector<1x128xf32>
      tpu.vector_store %arg7[%c1, %c0_23], %25 {strides = array<i32>} : memref<8x128xf32, #tpu.memory_space<vmem>>, vector<1x128xf32>,
    } else {
    }
    return
  }
  func.func @transform_0(%arg0: i32, %arg1: i32, %arg2: i32) -> (i32, i32) {
    %c0_i32 = arith.constant 0 : i32
    return %arg0, %arg2 : i32, i32
  }
  func.func @transform_1(%arg0: i32, %arg1: i32, %arg2: i32) -> (i32, i32) {
    %c0_i32 = arith.constant 0 : i32
    return %arg2, %arg1 : i32, i32
  }
  func.func @transform_2(%arg0: i32, %arg1: i32, %arg2: i32) -> (i32, i32) {
    %c0_i32 = arith.constant 0 : i32
    %c0_i32_0 = arith.constant 0 : i32
    return %c0_i32, %arg1 : i32, i32
  }
  func.func @transform_3(%arg0: i32, %arg1: i32, %arg2: i32) -> (i32, i32) {
    %c0_i32 = arith.constant 0 : i32
    return %arg0, %arg1 : i32, i32
  }
  func.func @transform_4(%arg0: i32, %arg1: i32, %arg2: i32) -> (i32, i32) {
    %c0_i32 = arith.constant 0 : i32
    return %arg0, %arg1 : i32, i32
  }
}

module attributes {stable_mosaic.version = 11 : i64} {
  func.func @_conv_mm_kernel(%arg0: i32, %arg1: i32, %arg2: i32, %arg3: memref<64x512xbf16, #tpu.memory_space<vmem>>, %arg4: memref<512x128xbf16, #tpu.memory_space<vmem>>, %arg5: memref<1x128xf32, #tpu.memory_space<vmem>>, %arg6: memref<64x128xf32, #tpu.memory_space<vmem>>, %arg7: memref<8x128xf32, #tpu.memory_space<vmem>>, %arg8: memref<64x128xf32, #tpu.memory_space<vmem>>) attributes {dimension_semantics = [#tpu.dimension_semantics<parallel>, #tpu.dimension_semantics<parallel>, #tpu.dimension_semantics<arbitrary>], iteration_bounds = array<i64: 1, 1, 2>, scalar_prefetch = 0 : i64, scratch_operands = 1 : i64, tpu.core_type = #tpu.core_type<tc>, window_params = [{transform_indices = @transform_0, window_bounds = array<i64: 64, 512>}, {transform_indices = @transform_1, window_bounds = array<i64: 512, 128>}, {transform_indices = @transform_2, window_bounds = array<i64: 1, 128>}, {transform_indices = @transform_3, window_bounds = array<i64: 64, 128>}, {transform_indices = @transform_4, window_bounds = array<i64: 8, 128>}]} {
    %c0_i32 = arith.constant 0 : i32
    %0 = arith.cmpi eq, %arg2, %c0_i32 : i32
    %1 = arith.extui %0 : i1 to i32
    %c0_i32_0 = arith.constant 0 : i32
    %2 = arith.cmpi ne, %1, %c0_i32_0 : i32
    scf.if %2 {
      %cst_9 = arith.constant 0.000000e+00 : f32
      %12 = vector.broadcast %cst_9 : f32 to vector<64x128xf32>
      %c0_10 = arith.constant 0 : index
      %c0_11 = arith.constant 0 : index
      %13 = vector.load %arg8[%c0_10, %c0_11] : memref<64x128xf32, #tpu.memory_space<vmem>>, vector<64x128xf32>
      tpu.vector_store %arg8[%c0_10, %c0_11], %12 {strides = array<i32>} : memref<64x128xf32, #tpu.memory_space<vmem>>, vector<64x128xf32>,
    } else {
    }
    %c0 = arith.constant 0 : index
    %c0_1 = arith.constant 0 : index
    %3 = vector.load %arg8[%c0, %c0_1] : memref<64x128xf32, #tpu.memory_space<vmem>>, vector<64x128xf32>
    %c0_2 = arith.constant 0 : index
    %c0_3 = arith.constant 0 : index
    %4 = vector.load %arg3[%c0_2, %c0_3] : memref<64x512xbf16, #tpu.memory_space<vmem>>, vector<64x512xbf16>
    %c0_4 = arith.constant 0 : index
    %c0_5 = arith.constant 0 : index
    %5 = vector.load %arg4[%c0_4, %c0_5] : memref<512x128xbf16, #tpu.memory_space<vmem>>, vector<512x128xbf16>
    %cst = arith.constant dense<0.000000e+00> : vector<64x128xf32>
    %6 = tpu.matmul %4, %5, %cst {dimension_numbers = #tpu.dot_dimension_numbers<[1], [0], [0], [1], [0, 0, 1, 1], [], []>} : vector<64x512xbf16>, vector<512x128xbf16>, vector<64x128xf32> -> vector<64x128xf32>
    %7 = arith.addf %3, %6 : vector<64x128xf32>
    %c0_6 = arith.constant 0 : index
    %c0_7 = arith.constant 0 : index
    %8 = vector.load %arg8[%c0_6, %c0_7] : memref<64x128xf32, #tpu.memory_space<vmem>>, vector<64x128xf32>
    tpu.vector_store %arg8[%c0_6, %c0_7], %7 {strides = array<i32>} : memref<64x128xf32, #tpu.memory_space<vmem>>, vector<64x128xf32>,
    %c1_i32 = arith.constant 1 : i32
    %9 = arith.cmpi eq, %arg2, %c1_i32 : i32
    %10 = arith.extui %9 : i1 to i32
    %c0_i32_8 = arith.constant 0 : i32
    %11 = arith.cmpi ne, %10, %c0_i32_8 : i32
    scf.if %11 {
      %c0_9 = arith.constant 0 : index
      %c0_10 = arith.constant 0 : index
      %12 = vector.load %arg8[%c0_9, %c0_10] : memref<64x128xf32, #tpu.memory_space<vmem>>, vector<64x128xf32>
      %c0_11 = arith.constant 0 : index
      %c0_12 = arith.constant 0 : index
      %13 = vector.load %arg5[%c0_11, %c0_12] : memref<1x128xf32, #tpu.memory_space<vmem>>, vector<1x128xf32>
      %14 = vector.broadcast %13 : vector<1x128xf32> to vector<64x128xf32>
      %15 = arith.addf %12, %14 : vector<64x128xf32>
      %c0_13 = arith.constant 0 : index
      %c0_14 = arith.constant 0 : index
      %16 = vector.load %arg6[%c0_13, %c0_14] : memref<64x128xf32, #tpu.memory_space<vmem>>, vector<64x128xf32>
      tpu.vector_store %arg6[%c0_13, %c0_14], %15 {strides = array<i32>} : memref<64x128xf32, #tpu.memory_space<vmem>>, vector<64x128xf32>,
      %cst_15 = arith.constant 0.000000e+00 : f32
      %17 = vector.broadcast %cst_15 : f32 to vector<8x128xf32>
      %c0_16 = arith.constant 0 : index
      %c0_17 = arith.constant 0 : index
      %18 = vector.load %arg7[%c0_16, %c0_17] : memref<8x128xf32, #tpu.memory_space<vmem>>, vector<8x128xf32>
      tpu.vector_store %arg7[%c0_16, %c0_17], %17 {strides = array<i32>} : memref<8x128xf32, #tpu.memory_space<vmem>>, vector<8x128xf32>,
      %cst_18 = arith.constant dense<0.000000e+00> : vector<128xf32>
      %19 = vector.multi_reduction <add>, %15, %cst_18 [0] : vector<64x128xf32> to vector<128xf32>
      %20 = vector.shape_cast %19 : vector<128xf32> to vector<1x128xf32>
      %c0_19 = arith.constant 0 : index
      %c0_20 = arith.constant 0 : index
      %21 = vector.load %arg7[%c0_19, %c0_20] : memref<8x128xf32, #tpu.memory_space<vmem>>, vector<1x128xf32>
      tpu.vector_store %arg7[%c0_19, %c0_20], %20 {strides = array<i32>} : memref<8x128xf32, #tpu.memory_space<vmem>>, vector<1x128xf32>,
      %22 = arith.mulf %15, %15 : vector<64x128xf32>
      %cst_21 = arith.constant dense<0.000000e+00> : vector<128xf32>
      %23 = vector.multi_reduction <add>, %22, %cst_21 [0] : vector<64x128xf32> to vector<128xf32>
      %24 = vector.shape_cast %23 : vector<128xf32> to vector<1x128xf32>
      %c1 = arith.constant 1 : index
      %c0_22 = arith.constant 0 : index
      %25 = vector.load %arg7[%c1, %c0_22] : memref<8x128xf32, #tpu.memory_space<vmem>>, vector<1x128xf32>
      tpu.vector_store %arg7[%c1, %c0_22], %24 {strides = array<i32>} : memref<8x128xf32, #tpu.memory_space<vmem>>, vector<1x128xf32>,
    } else {
    }
    return
  }
  func.func @transform_0(%arg0: i32, %arg1: i32, %arg2: i32) -> (i32, i32) {
    %c0_i32 = arith.constant 0 : i32
    return %arg0, %arg2 : i32, i32
  }
  func.func @transform_1(%arg0: i32, %arg1: i32, %arg2: i32) -> (i32, i32) {
    %c0_i32 = arith.constant 0 : i32
    return %arg2, %arg1 : i32, i32
  }
  func.func @transform_2(%arg0: i32, %arg1: i32, %arg2: i32) -> (i32, i32) {
    %c0_i32 = arith.constant 0 : i32
    %c0_i32_0 = arith.constant 0 : i32
    return %c0_i32, %arg1 : i32, i32
  }
  func.func @transform_3(%arg0: i32, %arg1: i32, %arg2: i32) -> (i32, i32) {
    %c0_i32 = arith.constant 0 : i32
    return %arg0, %arg1 : i32, i32
  }
  func.func @transform_4(%arg0: i32, %arg1: i32, %arg2: i32) -> (i32, i32) {
    %c0_i32 = arith.constant 0 : i32
    return %arg0, %arg1 : i32, i32
  }
}

</mosaic_0001>

<llo_original>
// kernel: nlayer_discriminator_forward.8
$region0: #{nlayer_discriminator_forward.8}
  #allocation0 [shape = 'u32[]', space=smem, size = 0x4, offset = 0x4, fixed_abs, tag = 'smem constant byte address 0x4 - core index']
  #allocation1 [shape = 'u32[144,128]{1,0:T(1,128)}', space=vmem, size = 0x12000, scoped, tag = 'internal scratch']
  #allocation2 [shape = 'f32[176,128]{1,0:T(8,128)}', space=vmem, size = 0x16000, scoped, tag = 'scratch operand']
  %s0 = inlined_call_operand.vmem [shape: bf16[176,128], index: 0, kind: input, shape index: {}]
  %s1 = inlined_call_operand.vmem [shape: bf16[128,128], index: 1, kind: input, shape index: {}]
  %s2 = inlined_call_operand.vmem [shape: f32[1,128], index: 2, kind: input, shape index: {}]
  %s3 = inlined_call_operand.vmem [shape: bf16[176,128], index: 3, kind: output, shape index: {0}]
  %s4 = inlined_call_operand.hbm [shape: f32[8,128], index: 4, kind: output, shape index: {1}]
  %5 = xla_tuple %s3, %s4
  %s6 = sld [smem:[#allocation0]]
  $region38: #{nlayer_discriminator_forward.8} parent=0
    _
  %s8 = ssub.s32 1, %s6
  %s9 = scalar_select 0, %s8, %s6
  $region1: #{nlayer_discriminator_forward.8} parent=0
    #allocation3 [shape = 'u8[4096]{0}', space=vmem, size = 0x1000, scoped, tag = 'output window, operand 1, single buffered']
    #allocation4 [shape = 's32[1]{0}', space=sflag, size = 0x4, scoped, tag = 'scoped memory for nlayer_discriminator_forward.8']
    %10 = vsyncpa [#allocation4], 0
    // Predicated region
    $region2: #{nlayer_discriminator_forward.8} parent=1 // pred_check
      _
    $region3: #{nlayer_discriminator_forward.8} parent=1 // pred_check_branch
      %12 = sbr.rel (0) target = $region5
    $region4: #{nlayer_discriminator_forward.8} parent=1 // pred_region
      _
    $region5: #{nlayer_discriminator_forward.8} parent=1 // pred_fallthru
      _
    // Predicated region
    $region6: #{nlayer_discriminator_forward.8} parent=1 // pred_check
      _
    $region7: #{nlayer_discriminator_forward.8} parent=1 // pred_check_branch
      %14 = sbr.rel (0) target = $region9
    $region8: #{nlayer_discriminator_forward.8} parent=1 // pred_region
      _
    $region9: #{nlayer_discriminator_forward.8} parent=1 // pred_fallthru
      _
    // Predicated region
    $region10: #{nlayer_discriminator_forward.8} parent=1 // pred_check
      _
    $region11: #{nlayer_discriminator_forward.8} parent=1 // pred_check_branch
      %16 = sbr.rel (0) target = $region13
    $region12: #{nlayer_discriminator_forward.8} parent=1 // pred_region
      _
    $region13: #{nlayer_discriminator_forward.8} parent=1 // pred_fallthru
      _
    %p18 = scmp.eq.s32.totalorder 0, 0
    // Predicated region
    $region14: #{nlayer_discriminator_forward.8} parent=1 // pred_check
      %p19 = pneg %p18
    $region15: #{nlayer_discriminator_forward.8} parent=1 // pred_check_branch
      %21 = sbr.rel (%p19) target = $region17
    $region16: #{nlayer_discriminator_forward.8} parent=1 // pred_region
      %22 = vst [vmem:[#allocation2] sm:$0xff] 0.0
      %23 = vst [vmem:[#allocation2 + $0x8] sm:$0xff] 0.0
      %24 = vst [vmem:[#allocation2 + $0x10] sm:$0xff] 0.0
      %25 = vst [vmem:[#allocation2 + $0x18] sm:$0xff] 0.0
      %26 = vst [vmem:[#allocation2 + $0x20] sm:$0xff] 0.0
      %27 = vst [vmem:[#allocation2 + $0x28] sm:$0xff] 0.0
      %28 = vst [vmem:[#allocation2 + $0x30] sm:$0xff] 0.0
      %29 = vst [vmem:[#allocation2 + $0x38] sm:$0xff] 0.0
      %30 = vst [vmem:[#allocation2 + $0x40] sm:$0xff] 0.0
      %31 = vst [vmem:[#allocation2 + $0x48] sm:$0xff] 0.0
      %32 = vst [vmem:[#allocation2 + $0x50] sm:$0xff] 0.0
      %33 = vst [vmem:[#allocation2 + $0x58] sm:$0xff] 0.0
      %34 = vst [vmem:[#allocation2 + $0x60] sm:$0xff] 0.0
      %35 = vst [vmem:[#allocation2 + $0x68] sm:$0xff] 0.0
      %36 = vst [vmem:[#allocation2 + $0x70] sm:$0xff] 0.0
      %37 = vst [vmem:[#allocation2 + $0x78] sm:$0xff] 0.0
      %38 = vst [vmem:[#allocation2 + $0x80] sm:$0xff] 0.0
      %39 = vst [vmem:[#allocation2 + $0x88] sm:$0xff] 0.0
      %40 = vst [vmem:[#allocation2 + $0x90] sm:$0xff] 0.0
      %41 = vst [vmem:[#allocation2 + $0x98] sm:$0xff] 0.0
      %42 = vst [vmem:[#allocation2 + $0xa0] sm:$0xff] 0.0
      %43 = vst [vmem:[#allocation2 + $0xa8] sm:$0xff] 0.0
    $region17: #{nlayer_discriminator_forward.8} parent=1 // pred_fallthru
      _
    %v44 = vld [vmem:[#allocation2] sm:$0xff]
    %v45 = vld [vmem:[#allocation2 + $0x8] sm:$0xff]
    %v46 = vld [vmem:[#allocation2 + $0x10] sm:$0xff]
    %v47 = vld [vmem:[#allocation2 + $0x18] sm:$0xff]
    %v48 = vld [vmem:[#allocation2 + $0x20] sm:$0xff]
    %v49 = vld [vmem:[#allocation2 + $0x28] sm:$0xff]
    %v50 = vld [vmem:[#allocation2 + $0x30] sm:$0xff]
    %v51 = vld [vmem:[#allocation2 + $0x38] sm:$0xff]
    %v52 = vld [vmem:[#allocation2 + $0x40] sm:$0xff]
    %v53 = vld [vmem:[#allocation2 + $0x48] sm:$0xff]
    %v54 = vld [vmem:[#allocation2 + $0x50] sm:$0xff]
    %v55 = vld [vmem:[#allocation2 + $0x58] sm:$0xff]
    %v56 = vld [vmem:[#allocation2 + $0x60] sm:$0xff]
    %v57 = vld [vmem:[#allocation2 + $0x68] sm:$0xff]
    %v58 = vld [vmem:[#allocation2 + $0x70] sm:$0xff]
    %v59 = vld [vmem:[#allocation2 + $0x78] sm:$0xff]
    %v60 = vld [vmem:[#allocation2 + $0x80] sm:$0xff]
    %v61 = vld [vmem:[#allocation2 + $0x88] sm:$0xff]
    %v62 = vld [vmem:[#allocation2 + $0x90] sm:$0xff]
    %v63 = vld [vmem:[#allocation2 + $0x98] sm:$0xff]
    %v64 = vld [vmem:[#allocation2 + $0xa0] sm:$0xff]
    %v65 = vld [vmem:[#allocation2 + $0xa8] sm:$0xff]
    %v66 = vld [vmem:[%s0] sm:$0xf]
    %v67 = vld [vmem:[%s0 + $0x4] sm:$0xf]
    %v68 = vld [vmem:[%s0 + $0x8] sm:$0xf]
    %v69 = vld [vmem:[%s0 + $0xc] sm:$0xf]
    %v70 = vld [vmem:[%s0 + $0x10] sm:$0xf]
    %v71 = vld [vmem:[%s0 + $0x14] sm:$0xf]
    %v72 = vld [vmem:[%s0 + $0x18] sm:$0xf]
    %v73 = vld [vmem:[%s0 + $0x1c] sm:$0xf]
    %v74 = vld [vmem:[%s0 + $0x20] sm:$0xf]
    %v75 = vld [vmem:[%s0 + $0x24] sm:$0xf]
    %v76 = vld [vmem:[%s0 + $0x28] sm:$0xf]
    %v77 = vld [vmem:[%s0 + $0x2c] sm:$0xf]
    %v78 = vld [vmem:[%s0 + $0x30] sm:$0xf]
    %v79 = vld [vmem:[%s0 + $0x34] sm:$0xf]
    %v80 = vld [vmem:[%s0 + $0x38] sm:$0xf]
    %v81 = vld [vmem:[%s0 + $0x3c] sm:$0xf]
    %v82 = vld [vmem:[%s0 + $0x40] sm:$0xf]
    %v83 = vld [vmem:[%s0 + $0x44] sm:$0xf]
    %v84 = vld [vmem:[%s0 + $0x48] sm:$0xf]
    %v85 = vld [vmem:[%s0 + $0x4c] sm:$0xf]
    %v86 = vld [vmem:[%s0 + $0x50] sm:$0xf]
    %v87 = vld [vmem:[%s0 + $0x54] sm:$0xf]
    %v88 = vld [vmem:[%s1] sm:$0xf]
    %v89 = vld [vmem:[%s1 + $0x4] sm:$0xf]
    %v90 = vld [vmem:[%s1 + $0x8] sm:$0xf]
    %v91 = vld [vmem:[%s1 + $0xc] sm:$0xf]
    %v92 = vld [vmem:[%s1 + $0x10] sm:$0xf]
    %v93 = vld [vmem:[%s1 + $0x14] sm:$0xf]
    %v94 = vld [vmem:[%s1 + $0x18] sm:$0xf]
    %v95 = vld [vmem:[%s1 + $0x1c] sm:$0xf]
    %v96 = vld [vmem:[%s1 + $0x20] sm:$0xf]
    %v97 = vld [vmem:[%s1 + $0x24] sm:$0xf]
    %v98 = vld [vmem:[%s1 + $0x28] sm:$0xf]
    %v99 = vld [vmem:[%s1 + $0x2c] sm:$0xf]
    %v100 = vld [vmem:[%s1 + $0x30] sm:$0xf]
    %v101 = vld [vmem:[%s1 + $0x34] sm:$0xf]
    %v102 = vld [vmem:[%s1 + $0x38] sm:$0xf]
    %v103 = vld [vmem:[%s1 + $0x3c] sm:$0xf]
    %v126 = vunpack.c.l.b16 %v66
    %v127 = vunpack.c.l.b16 %v67
    %v128 = vunpack.c.l.b16 %v68
    %v129 = vunpack.c.l.b16 %v69
    %v130 = vunpack.c.l.b16 %v70
    %v131 = vunpack.c.l.b16 %v71
    %v132 = vunpack.c.l.b16 %v72
    %v133 = vunpack.c.l.b16 %v73
    %v134 = vunpack.c.l.b16 %v74
    %v135 = vunpack.c.l.b16 %v75
    %v136 = vunpack.c.l.b16 %v76
    %v137 = vunpack.c.l.b16 %v77
    %v138 = vunpack.c.l.b16 %v78
    %v139 = vunpack.c.l.b16 %v79
    %v140 = vunpack.c.l.b16 %v80
    %v141 = vunpack.c.l.b16 %v81
    %v142 = vunpack.c.l.b16 %v82
    %v143 = vunpack.c.l.b16 %v83
    %v144 = vunpack.c.l.b16 %v84
    %v145 = vunpack.c.l.b16 %v85
    %v146 = vunpack.c.l.b16 %v86
    %v147 = vunpack.c.l.b16 %v87
    %v148 = vpack.c.b16 %v127, %v126
    %v149 = vpack.c.b16 %v129, %v128
    %v150 = vpack.c.b16 %v131, %v130
    %v151 = vpack.c.b16 %v133, %v132
    %v152 = vpack.c.b16 %v135, %v134
    %v153 = vpack.c.b16 %v137, %v136
    %v154 = vpack.c.b16 %v139, %v138
    %v155 = vpack.c.b16 %v141, %v140
    %v156 = vpack.c.b16 %v143, %v142
    %v157 = vpack.c.b16 %v145, %v144
    %v158 = vpack.c.b16 %v147, %v146
    %v186 = vunpack.c.l.b16 %v88
    %v187 = vunpack.c.l.b16 %v89
    %v188 = vunpack.c.l.b16 %v90
    %v189 = vunpack.c.l.b16 %v91
    %v190 = vunpack.c.l.b16 %v92
    %v191 = vunpack.c.l.b16 %v93
    %v192 = vunpack.c.l.b16 %v94
    %v193 = vunpack.c.l.b16 %v95
    %v194 = vunpack.c.l.b16 %v96
    %v195 = vunpack.c.l.b16 %v97
    %v196 = vunpack.c.l.b16 %v98
    %v197 = vunpack.c.l.b16 %v99
    %v198 = vunpack.c.l.b16 %v100
    %v199 = vunpack.c.l.b16 %v101
    %v200 = vunpack.c.l.b16 %v102
    %v201 = vunpack.c.l.b16 %v103
    %v202 = vpack.c.b16 %v187, %v186
    %v203 = vpack.c.b16 %v189, %v188
    %v204 = vpack.c.b16 %v191, %v190
    %v205 = vpack.c.b16 %v193, %v192
    %v206 = vpack.c.b16 %v195, %v194
    %v207 = vpack.c.b16 %v197, %v196
    %v208 = vpack.c.b16 %v199, %v198
    %v209 = vpack.c.b16 %v201, %v200
    %218 = vmatprep.subr.bf16.mxu0 0
    %219 = vmatpush1.bf16.msra.mxu0 %v202
    %220 = vmatprep.subr.bf16.mxu0 0
    %221 = vmatpush1.bf16.msra.mxu0 %v203
    %222 = vmatprep.subr.bf16.mxu0 0
    %223 = vmatpush1.bf16.msra.mxu0 %v204
    %224 = vmatprep.subr.bf16.mxu0 0
    %225 = vmatpush1.bf16.msra.mxu0 %v205
    %226 = vmatprep.subr.bf16.mxu0 0
    %227 = vmatpush1.bf16.msra.mxu0 %v206
    %228 = vmatprep.subr.bf16.mxu0 0
    %229 = vmatpush1.bf16.msra.mxu0 %v207
    %230 = vmatprep.subr.bf16.mxu0 0
    %231 = vmatpush1.bf16.msra.mxu0 %v208
    %232 = vmatprep.subr.bf16.mxu0 0
    %233 = vmatpush1.bf16.msra.mxu0 %v209
    %234 = vmatprep.subr.bf16.mxu0 0
    %235 = vmatpush1.bf16.msra.mxu0 0
    %236 = vmatprep.subr.bf16.mxu0 0
    %237 = vmatpush1.bf16.msra.mxu0 0
    %238 = vmatprep.subr.bf16.mxu0 0
    %239 = vmatpush1.bf16.msra.mxu0 0
    %240 = vmatprep.subr.bf16.mxu0 0
    %241 = vmatpush1.bf16.msra.mxu0 0
    %242 = vmatprep.subr.bf16.mxu0 0
    %243 = vmatpush1.bf16.msra.mxu0 0
    %244 = vmatprep.subr.bf16.mxu0 0
    %245 = vmatpush1.bf16.msra.mxu0 0
    %246 = vmatprep.subr.bf16.mxu0 0
    %247 = vmatpush1.bf16.msra.mxu0 0
    %248 = vmatprep.subr.bf16.mxu0 0
    %249 = vmatpush1.bf16.msra.mxu0 0
    %250 = vmatprep.mubr.bf16.mxu0 0
    %251 = vmatmul.mubr.bf16.gmra.mrb[0].mxu0 %v148
    %v252 = vpop.f32.mrb[0].mxu0
    %v253 = vadd.f32 0.0, %v252
    %v254 = vpop.f32.mrb[0].mxu0
    %v255 = vpop.f32.mrb[0].mxu0
    %v256 = vadd.f32 0.0, %v255
    %v257 = vpop.f32.mrb[0].mxu0
    %258 = vmatprep.mubr.bf16.mxu0 0
    %259 = vmatmul.mubr.bf16.gmra.mrb[0].mxu0 %v149
    %v260 = vpop.f32.mrb[0].mxu0
    %v261 = vadd.f32 0.0, %v260
    %v262 = vpop.f32.mrb[0].mxu0
    %v263 = vpop.f32.mrb[0].mxu0
    %v264 = vadd.f32 0.0, %v263
    %v265 = vpop.f32.mrb[0].mxu0
    %266 = vmatprep.mubr.bf16.mxu0 0
    %267 = vmatmul.mubr.bf16.gmra.mrb[0].mxu0 %v150
    %v268 = vpop.f32.mrb[0].mxu0
    %v269 = vadd.f32 0.0, %v268
    %v270 = vpop.f32.mrb[0].mxu0
    %v271 = vpop.f32.mrb[0].mxu0
    %v272 = vadd.f32 0.0, %v271
    %v273 = vpop.f32.mrb[0].mxu0
    %274 = vmatprep.mubr.bf16.mxu0 0
    %275 = vmatmul.mubr.bf16.gmra.mrb[0].mxu0 %v151
    %v276 = vpop.f32.mrb[0].mxu0
    %v277 = vadd.f32 0.0, %v276
    %v278 = vpop.f32.mrb[0].mxu0
    %v279 = vpop.f32.mrb[0].mxu0
    %v280 = vadd.f32 0.0, %v279
    %v281 = vpop.f32.mrb[0].mxu0
    %282 = vmatprep.mubr.bf16.mxu0 0
    %283 = vmatmul.mubr.bf16.gmra.mrb[0].mxu0 %v152
    %v284 = vpop.f32.mrb[0].mxu0
    %v285 = vadd.f32 0.0, %v284
    %v286 = vpop.f32.mrb[0].mxu0
    %v287 = vpop.f32.mrb[0].mxu0
    %v288 = vadd.f32 0.0, %v287
    %v289 = vpop.f32.mrb[0].mxu0
    %290 = vmatprep.mubr.bf16.mxu0 0
    %291 = vmatmul.mubr.bf16.gmra.mrb[0].mxu0 %v153
    %v292 = vpop.f32.mrb[0].mxu0
    %v293 = vadd.f32 0.0, %v292
    %v294 = vpop.f32.mrb[0].mxu0
    %v295 = vpop.f32.mrb[0].mxu0
    %v296 = vadd.f32 0.0, %v295
    %v297 = vpop.f32.mrb[0].mxu0
    %298 = vmatprep.mubr.bf16.mxu0 0
    %299 = vmatmul.mubr.bf16.gmra.mrb[0].mxu0 %v154
    %v300 = vpop.f32.mrb[0].mxu0
    %v301 = vadd.f32 0.0, %v300
    %v302 = vpop.f32.mrb[0].mxu0
    %v303 = vpop.f32.mrb[0].mxu0
    %v304 = vadd.f32 0.0, %v303
    %v305 = vpop.f32.mrb[0].mxu0
    %306 = vmatprep.mubr.bf16.mxu0 0
    %307 = vmatmul.mubr.bf16.gmra.mrb[0].mxu0 %v155
    %v308 = vpop.f32.mrb[0].mxu0
    %v309 = vadd.f32 0.0, %v308
    %v310 = vpop.f32.mrb[0].mxu0
    %v311 = vpop.f32.mrb[0].mxu0
    %v312 = vadd.f32 0.0, %v311
    %v313 = vpop.f32.mrb[0].mxu0
    %314 = vmatprep.mubr.bf16.mxu0 0
    %315 = vmatmul.mubr.bf16.gmra.mrb[0].mxu0 %v156
    %v316 = vpop.f32.mrb[0].mxu0
    %v317 = vadd.f32 0.0, %v316
    %v318 = vpop.f32.mrb[0].mxu0
    %v319 = vpop.f32.mrb[0].mxu0
    %v320 = vadd.f32 0.0, %v319
    %v321 = vpop.f32.mrb[0].mxu0
    %322 = vmatprep.mubr.bf16.mxu0 0
    %323 = vmatmul.mubr.bf16.gmra.mrb[0].mxu0 %v157
    %v324 = vpop.f32.mrb[0].mxu0
    %v325 = vadd.f32 0.0, %v324
    %v326 = vpop.f32.mrb[0].mxu0
    %v327 = vpop.f32.mrb[0].mxu0
    %v328 = vadd.f32 0.0, %v327
    %v329 = vpop.f32.mrb[0].mxu0
    %330 = vmatprep.mubr.bf16.mxu0 0
    %331 = vmatmul.mubr.bf16.gmra.mrb[0].mxu0 %v158
    %v332 = vpop.f32.mrb[0].mxu0
    %v333 = vadd.f32 0.0, %v332
    %v334 = vpop.f32.mrb[0].mxu0
    %v335 = vpop.f32.mrb[0].mxu0
    %v336 = vadd.f32 0.0, %v335
    %v337 = vpop.f32.mrb[0].mxu0
    %338 = vdwg.mxu0
    %v339 = vadd.f32 %v44, %v253
    %v340 = vadd.f32 %v45, %v256
    %v341 = vadd.f32 %v46, %v261
    %v342 = vadd.f32 %v47, %v264
    %v343 = vadd.f32 %v48, %v269
    %v344 = vadd.f32 %v49, %v272
    %v345 = vadd.f32 %v50, %v277
    %v346 = vadd.f32 %v51, %v280
    %v347 = vadd.f32 %v52, %v285
    %v348 = vadd.f32 %v53, %v288
    %v349 = vadd.f32 %v54, %v293
    %v350 = vadd.f32 %v55, %v296
    %v351 = vadd.f32 %v56, %v301
    %v352 = vadd.f32 %v57, %v304
    %v353 = vadd.f32 %v58, %v309
    %v354 = vadd.f32 %v59, %v312
    %v355 = vadd.f32 %v60, %v317
    %v356 = vadd.f32 %v61, %v320
    %v357 = vadd.f32 %v62, %v325
    %v358 = vadd.f32 %v63, %v328
    %v359 = vadd.f32 %v64, %v333
    %v360 = vadd.f32 %v65, %v336
    %361 = vst [vmem:[#allocation2] sm:$0xff] %v339
    %362 = vst [vmem:[#allocation2 + $0x8] sm:$0xff] %v340
    %363 = vst [vmem:[#allocation2 + $0x10] sm:$0xff] %v341
    %364 = vst [vmem:[#allocation2 + $0x18] sm:$0xff] %v342
    %365 = vst [vmem:[#allocation2 + $0x20] sm:$0xff] %v343
    %366 = vst [vmem:[#allocation2 + $0x28] sm:$0xff] %v344
    %367 = vst [vmem:[#allocation2 + $0x30] sm:$0xff] %v345
    %368 = vst [vmem:[#allocation2 + $0x38] sm:$0xff] %v346
    %369 = vst [vmem:[#allocation2 + $0x40] sm:$0xff] %v347
    %370 = vst [vmem:[#allocation2 + $0x48] sm:$0xff] %v348
    %371 = vst [vmem:[#allocation2 + $0x50] sm:$0xff] %v349
    %372 = vst [vmem:[#allocation2 + $0x58] sm:$0xff] %v350
    %373 = vst [vmem:[#allocation2 + $0x60] sm:$0xff] %v351
    %374 = vst [vmem:[#allocation2 + $0x68] sm:$0xff] %v352
    %375 = vst [vmem:[#allocation2 + $0x70] sm:$0xff] %v353
    %376 = vst [vmem:[#allocation2 + $0x78] sm:$0xff] %v354
    %377 = vst [vmem:[#allocation2 + $0x80] sm:$0xff] %v355
    %378 = vst [vmem:[#allocation2 + $0x88] sm:$0xff] %v356
    %379 = vst [vmem:[#allocation2 + $0x90] sm:$0xff] %v357
    %380 = vst [vmem:[#allocation2 + $0x98] sm:$0xff] %v358
    %381 = vst [vmem:[#allocation2 + $0xa0] sm:$0xff] %v359
    %382 = vst [vmem:[#allocation2 + $0xa8] sm:$0xff] %v360
    // Predicated region
    $region18: #{nlayer_discriminator_forward.8} parent=1 // pred_check
      %p383 = pneg %p18
    $region19: #{nlayer_discriminator_forward.8} parent=1 // pred_check_branch
      %385 = sbr.rel (%p383) target = $region21
    $region20: #{nlayer_discriminator_forward.8} parent=1 // pred_region
      %v386 = vld [vmem:[#allocation2] sm:$0xff]
      %v387 = vld [vmem:[#allocation2 + $0x8] sm:$0xff]
      %v388 = vld [vmem:[#allocation2 + $0x10] sm:$0xff]
      %v389 = vld [vmem:[#allocation2 + $0x18] sm:$0xff]
      %v390 = vld [vmem:[#allocation2 + $0x20] sm:$0xff]
      %v391 = vld [vmem:[#allocation2 + $0x28] sm:$0xff]
      %v392 = vld [vmem:[#allocation2 + $0x30] sm:$0xff]
      %v393 = vld [vmem:[#allocation2 + $0x38] sm:$0xff]
      %v394 = vld [vmem:[#allocation2 + $0x40] sm:$0xff]
      %v395 = vld [vmem:[#allocation2 + $0x48] sm:$0xff]
      %v396 = vld [vmem:[#allocation2 + $0x50] sm:$0xff]
      %v397 = vld [vmem:[#allocation2 + $0x58] sm:$0xff]
      %v398 = vld [vmem:[#allocation2 + $0x60] sm:$0xff]
      %v399 = vld [vmem:[#allocation2 + $0x68] sm:$0xff]
      %v400 = vld [vmem:[#allocation2 + $0x70] sm:$0xff]
      %v401 = vld [vmem:[#allocation2 + $0x78] sm:$0xff]
      %v402 = vld [vmem:[#allocation2 + $0x80] sm:$0xff]
      %v403 = vld [vmem:[#allocation2 + $0x88] sm:$0xff]
      %v404 = vld [vmem:[#allocation2 + $0x90] sm:$0xff]
      %v405 = vld [vmem:[#allocation2 + $0x98] sm:$0xff]
      %v406 = vld [vmem:[#allocation2 + $0xa0] sm:$0xff]
      %v407 = vld [vmem:[#allocation2 + $0xa8] sm:$0xff]
      %v408 = vld [vmem:[%s2] sm:$0x1]
      %v410 = vlaneseq
      %v411 = vshrl.u32 %v410, 7
      %v412 = vsub.s32 0, %v411
      %v413 = vrot.slane %v408, %v412
      %v415 = vadd.f32 %v386, %v413
      %v416 = vadd.f32 %v387, %v413
      %v417 = vadd.f32 %v388, %v413
      %v418 = vadd.f32 %v389, %v413
      %v419 = vadd.f32 %v390, %v413
      %v420 = vadd.f32 %v391, %v413
      %v421 = vadd.f32 %v392, %v413
      %v422 = vadd.f32 %v393, %v413
      %v423 = vadd.f32 %v394, %v413
      %v424 = vadd.f32 %v395, %v413
      %v425 = vadd.f32 %v396, %v413
      %v426 = vadd.f32 %v397, %v413
      %v427 = vadd.f32 %v398, %v413
      %v428 = vadd.f32 %v399, %v413
      %v429 = vadd.f32 %v400, %v413
      %v430 = vadd.f32 %v401, %v413
      %v431 = vadd.f32 %v402, %v413
      %v432 = vadd.f32 %v403, %v413
      %v433 = vadd.f32 %v404, %v413
      %v434 = vadd.f32 %v405, %v413
      %v435 = vadd.f32 %v406, %v413
      %v436 = vadd.f32 %v407, %v413
      %vm437 = vcmp.ge.f32.partialorder %v415, 0.0
      %vm438 = vcmp.ge.f32.partialorder %v416, 0.0
      %vm439 = vcmp.ge.f32.partialorder %v417, 0.0
      %vm440 = vcmp.ge.f32.partialorder %v418, 0.0
      %vm441 = vcmp.ge.f32.partialorder %v419, 0.0
      %vm442 = vcmp.ge.f32.partialorder %v420, 0.0
      %vm443 = vcmp.ge.f32.partialorder %v421, 0.0
      %vm444 = vcmp.ge.f32.partialorder %v422, 0.0
      %vm445 = vcmp.ge.f32.partialorder %v423, 0.0
      %vm446 = vcmp.ge.f32.partialorder %v424, 0.0
      %vm447 = vcmp.ge.f32.partialorder %v425, 0.0
      %vm448 = vcmp.ge.f32.partialorder %v426, 0.0
      %vm449 = vcmp.ge.f32.partialorder %v427, 0.0
      %vm450 = vcmp.ge.f32.partialorder %v428, 0.0
      %vm451 = vcmp.ge.f32.partialorder %v429, 0.0
      %vm452 = vcmp.ge.f32.partialorder %v430, 0.0
      %vm453 = vcmp.ge.f32.partialorder %v431, 0.0
      %vm454 = vcmp.ge.f32.partialorder %v432, 0.0
      %vm455 = vcmp.ge.f32.partialorder %v433, 0.0
      %vm456 = vcmp.ge.f32.partialorder %v434, 0.0
      %vm457 = vcmp.ge.f32.partialorder %v435, 0.0
      %vm458 = vcmp.ge.f32.partialorder %v436, 0.0
      %v459 = vmul.f32 %v415, 0.2
      %v460 = vmul.f32 %v416, 0.2
      %v461 = vmul.f32 %v417, 0.2
      %v462 = vmul.f32 %v418, 0.2
      %v463 = vmul.f32 %v419, 0.2
      %v464 = vmul.f32 %v420, 0.2
      %v465 = vmul.f32 %v421, 0.2
      %v466 = vmul.f32 %v422, 0.2
      %v467 = vmul.f32 %v423, 0.2
      %v468 = vmul.f32 %v424, 0.2
      %v469 = vmul.f32 %v425, 0.2
      %v470 = vmul.f32 %v426, 0.2
      %v471 = vmul.f32 %v427, 0.2
      %v472 = vmul.f32 %v428, 0.2
      %v473 = vmul.f32 %v429, 0.2
      %v474 = vmul.f32 %v430, 0.2
      %v475 = vmul.f32 %v431, 0.2
      %v476 = vmul.f32 %v432, 0.2
      %v477 = vmul.f32 %v433, 0.2
      %v478 = vmul.f32 %v434, 0.2
      %v479 = vmul.f32 %v435, 0.2
      %v480 = vmul.f32 %v436, 0.2
      %v481 = vsel %vm437, %v415, %v459
      %v482 = vsel %vm438, %v416, %v460
      %v483 = vsel %vm439, %v417, %v461
      %v484 = vsel %vm440, %v418, %v462
      %v485 = vsel %vm441, %v419, %v463
      %v486 = vsel %vm442, %v420, %v464
      %v487 = vsel %vm443, %v421, %v465
      %v488 = vsel %vm444, %v422, %v466
      %v489 = vsel %vm445, %v423, %v467
      %v490 = vsel %vm446, %v424, %v468
      %v491 = vsel %vm447, %v425, %v469
      %v492 = vsel %vm448, %v426, %v470
      %v493 = vsel %vm449, %v427, %v471
      %v494 = vsel %vm450, %v428, %v472
      %v495 = vsel %vm451, %v429, %v473
      %v496 = vsel %vm452, %v430, %v474
      %v497 = vsel %vm453, %v431, %v475
      %v498 = vsel %vm454, %v432, %v476
      %v499 = vsel %vm455, %v433, %v477
      %v500 = vsel %vm456, %v434, %v478
      %v501 = vsel %vm457, %v435, %v479
      %v502 = vsel %vm458, %v436, %v480
      %v503 = vpack.c.bf16 %v482, %v481
      %v504 = vpack.c.bf16 %v484, %v483
      %v505 = vpack.c.bf16 %v486, %v485
      %v506 = vpack.c.bf16 %v488, %v487
      %v507 = vpack.c.bf16 %v490, %v489
      %v508 = vpack.c.bf16 %v492, %v491
      %v509 = vpack.c.bf16 %v494, %v493
      %v510 = vpack.c.bf16 %v496, %v495
      %v511 = vpack.c.bf16 %v498, %v497
      %v512 = vpack.c.bf16 %v500, %v499
      %v513 = vpack.c.bf16 %v502, %v501
      %v525 = vunpack.c.l.b16 %v503
      %v526 = vunpack.c.h.b16 %v503
      %v527 = vunpack.c.l.b16 %v504
      %v528 = vunpack.c.h.b16 %v504
      %v529 = vunpack.c.l.b16 %v505
      %v530 = vunpack.c.h.b16 %v505
      %v531 = vunpack.c.l.b16 %v506
      %v532 = vunpack.c.h.b16 %v506
      %v533 = vunpack.c.l.b16 %v507
      %v534 = vunpack.c.h.b16 %v507
      %v535 = vunpack.c.l.b16 %v508
      %v536 = vunpack.c.h.b16 %v508
      %v537 = vunpack.c.l.b16 %v509
      %v538 = vunpack.c.h.b16 %v509
      %v539 = vunpack.c.l.b16 %v510
      %v540 = vunpack.c.h.b16 %v510
      %v541 = vunpack.c.l.b16 %v511
      %v542 = vunpack.c.h.b16 %v511
      %v543 = vunpack.c.l.b16 %v512
      %v544 = vunpack.c.h.b16 %v512
      %v545 = vunpack.c.l.b16 %v513
      %v546 = vunpack.c.h.b16 %v513
      %v547 = vpack.c.b16 %v525, %v525
      %v548 = vpack.c.b16 %v526, %v526
      %v549 = vpack.c.b16 %v527, %v527
      %v550 = vpack.c.b16 %v528, %v528
      %v551 = vpack.c.b16 %v529, %v529
      %v552 = vpack.c.b16 %v530, %v530
      %v553 = vpack.c.b16 %v531, %v531
      %v554 = vpack.c.b16 %v532, %v532
      %v555 = vpack.c.b16 %v533, %v533
      %v556 = vpack.c.b16 %v534, %v534
      %v557 = vpack.c.b16 %v535, %v535
      %v558 = vpack.c.b16 %v536, %v536
      %v559 = vpack.c.b16 %v537, %v537
      %v560 = vpack.c.b16 %v538, %v538
      %v561 = vpack.c.b16 %v539, %v539
      %v562 = vpack.c.b16 %v540, %v540
      %v563 = vpack.c.b16 %v541, %v541
      %v564 = vpack.c.b16 %v542, %v542
      %v565 = vpack.c.b16 %v543, %v543
      %v566 = vpack.c.b16 %v544, %v544
      %v567 = vpack.c.b16 %v545, %v545
      %v568 = vpack.c.b16 %v546, %v546
      %591 = vst [vmem:[%s3] sm:$0xf] %v547
      %592 = vst [vmem:[%s3 + $0x4] sm:$0xf] %v548
      %593 = vst [vmem:[%s3 + $0x8] sm:$0xf] %v549
      %594 = vst [vmem:[%s3 + $0xc] sm:$0xf] %v550
      %595 = vst [vmem:[%s3 + $0x10] sm:$0xf] %v551
      %596 = vst [vmem:[%s3 + $0x14] sm:$0xf] %v552
      %597 = vst [vmem:[%s3 + $0x18] sm:$0xf] %v553
      %598 = vst [vmem:[%s3 + $0x1c] sm:$0xf] %v554
      %599 = vst [vmem:[%s3 + $0x20] sm:$0xf] %v555
      %600 = vst [vmem:[%s3 + $0x24] sm:$0xf] %v556
      %601 = vst [vmem:[%s3 + $0x28] sm:$0xf] %v557
      %602 = vst [vmem:[%s3 + $0x2c] sm:$0xf] %v558
      %603 = vst [vmem:[%s3 + $0x30] sm:$0xf] %v559
      %604 = vst [vmem:[%s3 + $0x34] sm:$0xf] %v560
      %605 = vst [vmem:[%s3 + $0x38] sm:$0xf] %v561
      %606 = vst [vmem:[%s3 + $0x3c] sm:$0xf] %v562
      %607 = vst [vmem:[%s3 + $0x40] sm:$0xf] %v563
      %608 = vst [vmem:[%s3 + $0x44] sm:$0xf] %v564
      %609 = vst [vmem:[%s3 + $0x48] sm:$0xf] %v565
      %610 = vst [vmem:[%s3 + $0x4c] sm:$0xf] %v566
      %611 = vst [vmem:[%s3 + $0x50] sm:$0xf] %v567
      %612 = vst [vmem:[%s3 + $0x54] sm:$0xf] %v568
      %613 = vst [vmem:[#allocation3] sm:$0xff] 0.0
      %v614 = vadd.f32 %v481, %v482
      %v615 = vadd.f32 %v614, %v483
      %v616 = vadd.f32 %v615, %v484
      %v617 = vadd.f32 %v616, %v485
      %v618 = vadd.f32 %v617, %v486
      %v619 = vadd.f32 %v618, %v487
      %v620 = vadd.f32 %v619, %v488
      %v621 = vadd.f32 %v620, %v489
      %v622 = vadd.f32 %v621, %v490
      %v623 = vadd.f32 %v622, %v491
      %v624 = vadd.f32 %v623, %v492
      %v625 = vadd.f32 %v624, %v493
      %v626 = vadd.f32 %v625, %v494
      %v627 = vadd.f32 %v626, %v495
      %v628 = vadd.f32 %v627, %v496
      %v629 = vadd.f32 %v628, %v497
      %v630 = vadd.f32 %v629, %v498
      %v631 = vadd.f32 %v630, %v499
      %v632 = vadd.f32 %v631, %v500
      %v633 = vadd.f32 %v632, %v501
      %v634 = vadd.f32 %v633, %v502
      %v635 = vrot.slane %v634, 4
      %v636 = vadd.f32 %v634, %v635
      %v637 = vrot.slane %v636, 2
      %v638 = vadd.f32 %v636, %v637
      %v639 = vrot.slane %v638, 1
      %v640 = vadd.f32 %v638, %v639
      %641 = vst [vmem:[#allocation3] sm:$0x1] %v640
      %v642 = vmul.f32 %v481, %v481
      %v643 = vmul.f32 %v482, %v482
      %v644 = vmul.f32 %v483, %v483
      %v645 = vmul.f32 %v484, %v484
      %v646 = vmul.f32 %v485, %v485
      %v647 = vmul.f32 %v486, %v486
      %v648 = vmul.f32 %v487, %v487
      %v649 = vmul.f32 %v488, %v488
      %v650 = vmul.f32 %v489, %v489
      %v651 = vmul.f32 %v490, %v490
      %v652 = vmul.f32 %v491, %v491
      %v653 = vmul.f32 %v492, %v492
      %v654 = vmul.f32 %v493, %v493
      %v655 = vmul.f32 %v494, %v494
      %v656 = vmul.f32 %v495, %v495
      %v657 = vmul.f32 %v496, %v496
      %v658 = vmul.f32 %v497, %v497
      %v659 = vmul.f32 %v498, %v498
      %v660 = vmul.f32 %v499, %v499
      %v661 = vmul.f32 %v500, %v500
      %v662 = vmul.f32 %v501, %v501
      %v663 = vmul.f32 %v502, %v502
      %v664 = vadd.f32 %v642, %v643
      %v665 = vadd.f32 %v664, %v644
      %v666 = vadd.f32 %v665, %v645
      %v667 = vadd.f32 %v666, %v646
      %v668 = vadd.f32 %v667, %v647
      %v669 = vadd.f32 %v668, %v648
      %v670 = vadd.f32 %v669, %v649
      %v671 = vadd.f32 %v670, %v650
      %v672 = vadd.f32 %v671, %v651
      %v673 = vadd.f32 %v672, %v652
      %v674 = vadd.f32 %v673, %v653
      %v675 = vadd.f32 %v674, %v654
      %v676 = vadd.f32 %v675, %v655
      %v677 = vadd.f32 %v676, %v656
      %v678 = vadd.f32 %v677, %v657
      %v679 = vadd.f32 %v678, %v658
      %v680 = vadd.f32 %v679, %v659
      %v681 = vadd.f32 %v680, %v660
      %v682 = vadd.f32 %v681, %v661
      %v683 = vadd.f32 %v682, %v662
      %v684 = vadd.f32 %v683, %v663
      %v685 = vrot.slane %v684, 4
      %v686 = vadd.f32 %v684, %v685
      %v687 = vrot.slane %v686, 2
      %v688 = vadd.f32 %v686, %v687
      %v689 = vrot.slane %v688, 1
      %v690 = vadd.f32 %v688, %v689
      %691 = vst [vmem:[#allocation3 + $0x1] sm:$0x1] %v690
    $region21: #{nlayer_discriminator_forward.8} parent=1 // pred_fallthru
      _
    // Predicated region
    $region22: #{nlayer_discriminator_forward.8} parent=1 // pred_check
      _
    $region23: #{nlayer_discriminator_forward.8} parent=1 // pred_check_branch
      %693 = sbr.rel (0) target = $region25
    $region24: #{nlayer_discriminator_forward.8} parent=1 // pred_region
      _
    $region25: #{nlayer_discriminator_forward.8} parent=1 // pred_fallthru
      _
    // Predicated region
    $region26: #{nlayer_discriminator_forward.8} parent=1 // pred_check
      _
    $region27: #{nlayer_discriminator_forward.8} parent=1 // pred_check_branch
      %695 = sbr.rel (0) target = $region29
    $region28: #{nlayer_discriminator_forward.8} parent=1 // pred_region
      %s697 = ssub.s32 128, 128
      %698 = vsyncadd [#allocation4], %s697
      %s700 = sshll.u32 [#allocation3], 4
      %s701 = int_to_ptr.vmem [resolvable:$true] %s700
      %703 = dma.vmem_to_hbm [thread:$0]  %s701, 128, %s4, [#allocation4]
    $region29: #{nlayer_discriminator_forward.8} parent=1 // pred_fallthru
      _
    // Predicated region
    $region30: #{nlayer_discriminator_forward.8} parent=1 // pred_check
      _
    $region31: #{nlayer_discriminator_forward.8} parent=1 // pred_check_branch
      %705 = sbr.rel (0) target = $region33
    $region32: #{nlayer_discriminator_forward.8} parent=1 // pred_region
      _
    $region33: #{nlayer_discriminator_forward.8} parent=1 // pred_fallthru
      _
    // Predicated region
    $region34: #{nlayer_discriminator_forward.8} parent=1 // pred_check
      _
    $region35: #{nlayer_discriminator_forward.8} parent=1 // pred_check_branch
      %707 = sbr.rel (0) target = $region37
    $region36: #{nlayer_discriminator_forward.8} parent=1 // pred_region
      %708 = dma.done [#allocation4], 128
    $region37: #{nlayer_discriminator_forward.8} parent=1 // pred_fallthru
      _
    %709 = vsyncpa [#allocation4], 1

// kernel: nlayer_discriminator_forward.9
$region0: #{nlayer_discriminator_forward.9}
  #allocation0 [shape = 'u32[]', space=smem, size = 0x4, offset = 0x4, fixed_abs, tag = 'smem constant byte address 0x4 - core index']
  #allocation1 [shape = 'u32[144,128]{1,0:T(1,128)}', space=vmem, size = 0x12000, scoped, tag = 'internal scratch']
  #allocation2 [shape = 'f32[64,128]{1,0:T(8,128)}', space=vmem, size = 0x8000, scoped, tag = 'scratch operand']
  %s0 = inlined_call_operand.vmem [shape: bf16[64,128], index: 0, kind: input, shape index: {}]
  %s1 = inlined_call_operand.vmem [shape: bf16[128,128], index: 1, kind: input, shape index: {}]
  %s2 = inlined_call_operand.vmem [shape: f32[1,128], index: 2, kind: input, shape index: {}]
  %s3 = inlined_call_operand.vmem [shape: bf16[64,128], index: 3, kind: output, shape index: {0}]
  %s4 = inlined_call_operand.vmem [shape: f32[8,128], index: 4, kind: output, shape index: {1}]
  %5 = xla_tuple %s3, %s4
  %s6 = sld [smem:[#allocation0]]
  $region38: #{nlayer_discriminator_forward.9} parent=0
    _
  %s8 = ssub.s32 1, %s6
  %s9 = scalar_select 0, %s8, %s6
  // Predicated region
  $region2: #{nlayer_discriminator_forward.9} parent=0 // pred_check
    _
  $region3: #{nlayer_discriminator_forward.9} parent=0 // pred_check_branch
    %11 = sbr.rel (0) target = $region5
  $region4: #{nlayer_discriminator_forward.9} parent=0 // pred_region
    _
  $region5: #{nlayer_discriminator_forward.9} parent=0 // pred_fallthru
    _
  // Predicated region
  $region6: #{nlayer_discriminator_forward.9} parent=0 // pred_check
    _
  $region7: #{nlayer_discriminator_forward.9} parent=0 // pred_check_branch
    %13 = sbr.rel (0) target = $region9
  $region8: #{nlayer_discriminator_forward.9} parent=0 // pred_region
    _
  $region9: #{nlayer_discriminator_forward.9} parent=0 // pred_fallthru
    _
  // Predicated region
  $region10: #{nlayer_discriminator_forward.9} parent=0 // pred_check
    _
  $region11: #{nlayer_discriminator_forward.9} parent=0 // pred_check_branch
    %15 = sbr.rel (0) target = $region13
  $region12: #{nlayer_discriminator_forward.9} parent=0 // pred_region
    _
  $region13: #{nlayer_discriminator_forward.9} parent=0 // pred_fallthru
    _
  %p17 = scmp.eq.s32.totalorder 0, 0
  // Predicated region
  $region14: #{nlayer_discriminator_forward.9} parent=0 // pred_check
    %p18 = pneg %p17
  $region15: #{nlayer_discriminator_forward.9} parent=0 // pred_check_branch
    %20 = sbr.rel (%p18) target = $region17
  $region16: #{nlayer_discriminator_forward.9} parent=0 // pred_region
    %21 = vst [vmem:[#allocation2] sm:$0xff] 0.0
    %22 = vst [vmem:[#allocation2 + $0x8] sm:$0xff] 0.0
    %23 = vst [vmem:[#allocation2 + $0x10] sm:$0xff] 0.0
    %24 = vst [vmem:[#allocation2 + $0x18] sm:$0xff] 0.0
    %25 = vst [vmem:[#allocation2 + $0x20] sm:$0xff] 0.0
    %26 = vst [vmem:[#allocation2 + $0x28] sm:$0xff] 0.0
    %27 = vst [vmem:[#allocation2 + $0x30] sm:$0xff] 0.0
    %28 = vst [vmem:[#allocation2 + $0x38] sm:$0xff] 0.0
  $region17: #{nlayer_discriminator_forward.9} parent=0 // pred_fallthru
    _
  %v29 = vld [vmem:[#allocation2] sm:$0xff]
  %v30 = vld [vmem:[#allocation2 + $0x8] sm:$0xff]
  %v31 = vld [vmem:[#allocation2 + $0x10] sm:$0xff]
  %v32 = vld [vmem:[#allocation2 + $0x18] sm:$0xff]
  %v33 = vld [vmem:[#allocation2 + $0x20] sm:$0xff]
  %v34 = vld [vmem:[#allocation2 + $0x28] sm:$0xff]
  %v35 = vld [vmem:[#allocation2 + $0x30] sm:$0xff]
  %v36 = vld [vmem:[#allocation2 + $0x38] sm:$0xff]
  %v37 = vld [vmem:[%s0] sm:$0xf]
  %v38 = vld [vmem:[%s0 + $0x4] sm:$0xf]
  %v39 = vld [vmem:[%s0 + $0x8] sm:$0xf]
  %v40 = vld [vmem:[%s0 + $0xc] sm:$0xf]
  %v41 = vld [vmem:[%s0 + $0x10] sm:$0xf]
  %v42 = vld [vmem:[%s0 + $0x14] sm:$0xf]
  %v43 = vld [vmem:[%s0 + $0x18] sm:$0xf]
  %v44 = vld [vmem:[%s0 + $0x1c] sm:$0xf]
  %v45 = vld [vmem:[%s1] sm:$0xf]
  %v46 = vld [vmem:[%s1 + $0x4] sm:$0xf]
  %v47 = vld [vmem:[%s1 + $0x8] sm:$0xf]
  %v48 = vld [vmem:[%s1 + $0xc] sm:$0xf]
  %v49 = vld [vmem:[%s1 + $0x10] sm:$0xf]
  %v50 = vld [vmem:[%s1 + $0x14] sm:$0xf]
  %v51 = vld [vmem:[%s1 + $0x18] sm:$0xf]
  %v52 = vld [vmem:[%s1 + $0x1c] sm:$0xf]
  %v53 = vld [vmem:[%s1 + $0x20] sm:$0xf]
  %v54 = vld [vmem:[%s1 + $0x24] sm:$0xf]
  %v55 = vld [vmem:[%s1 + $0x28] sm:$0xf]
  %v56 = vld [vmem:[%s1 + $0x2c] sm:$0xf]
  %v57 = vld [vmem:[%s1 + $0x30] sm:$0xf]
  %v58 = vld [vmem:[%s1 + $0x34] sm:$0xf]
  %v59 = vld [vmem:[%s1 + $0x38] sm:$0xf]
  %v60 = vld [vmem:[%s1 + $0x3c] sm:$0xf]
  %v69 = vunpack.c.l.b16 %v37
  %v70 = vunpack.c.l.b16 %v38
  %v71 = vunpack.c.l.b16 %v39
  %v72 = vunpack.c.l.b16 %v40
  %v73 = vunpack.c.l.b16 %v41
  %v74 = vunpack.c.l.b16 %v42
  %v75 = vunpack.c.l.b16 %v43
  %v76 = vunpack.c.l.b16 %v44
  %v77 = vpack.c.b16 %v70, %v69
  %v78 = vpack.c.b16 %v72, %v71
  %v79 = vpack.c.b16 %v74, %v73
  %v80 = vpack.c.b16 %v76, %v75
  %v101 = vunpack.c.l.b16 %v45
  %v102 = vunpack.c.l.b16 %v46
  %v103 = vunpack.c.l.b16 %v47
  %v104 = vunpack.c.l.b16 %v48
  %v105 = vunpack.c.l.b16 %v49
  %v106 = vunpack.c.l.b16 %v50
  %v107 = vunpack.c.l.b16 %v51
  %v108 = vunpack.c.l.b16 %v52
  %v109 = vunpack.c.l.b16 %v53
  %v110 = vunpack.c.l.b16 %v54
  %v111 = vunpack.c.l.b16 %v55
  %v112 = vunpack.c.l.b16 %v56
  %v113 = vunpack.c.l.b16 %v57
  %v114 = vunpack.c.l.b16 %v58
  %v115 = vunpack.c.l.b16 %v59
  %v116 = vunpack.c.l.b16 %v60
  %v117 = vpack.c.b16 %v102, %v101
  %v118 = vpack.c.b16 %v104, %v103
  %v119 = vpack.c.b16 %v106, %v105
  %v120 = vpack.c.b16 %v108, %v107
  %v121 = vpack.c.b16 %v110, %v109
  %v122 = vpack.c.b16 %v112, %v111
  %v123 = vpack.c.b16 %v114, %v113
  %v124 = vpack.c.b16 %v116, %v115
  %133 = vmatprep.subr.bf16.mxu0 0
  %134 = vmatpush1.bf16.msra.mxu0 %v117
  %135 = vmatprep.subr.bf16.mxu0 0
  %136 = vmatpush1.bf16.msra.mxu0 %v118
  %137 = vmatprep.subr.bf16.mxu0 0
  %138 = vmatpush1.bf16.msra.mxu0 %v119
  %139 = vmatprep.subr.bf16.mxu0 0
  %140 = vmatpush1.bf16.msra.mxu0 %v120
  %141 = vmatprep.subr.bf16.mxu0 0
  %142 = vmatpush1.bf16.msra.mxu0 %v121
  %143 = vmatprep.subr.bf16.mxu0 0
  %144 = vmatpush1.bf16.msra.mxu0 %v122
  %145 = vmatprep.subr.bf16.mxu0 0
  %146 = vmatpush1.bf16.msra.mxu0 %v123
  %147 = vmatprep.subr.bf16.mxu0 0
  %148 = vmatpush1.bf16.msra.mxu0 %v124
  %149 = vmatprep.subr.bf16.mxu0 0
  %150 = vmatpush1.bf16.msra.mxu0 0
  %151 = vmatprep.subr.bf16.mxu0 0
  %152 = vmatpush1.bf16.msra.mxu0 0
  %153 = vmatprep.subr.bf16.mxu0 0
  %154 = vmatpush1.bf16.msra.mxu0 0
  %155 = vmatprep.subr.bf16.mxu0 0
  %156 = vmatpush1.bf16.msra.mxu0 0
  %157 = vmatprep.subr.bf16.mxu0 0
  %158 = vmatpush1.bf16.msra.mxu0 0
  %159 = vmatprep.subr.bf16.mxu0 0
  %160 = vmatpush1.bf16.msra.mxu0 0
  %161 = vmatprep.subr.bf16.mxu0 0
  %162 = vmatpush1.bf16.msra.mxu0 0
  %163 = vmatprep.subr.bf16.mxu0 0
  %164 = vmatpush1.bf16.msra.mxu0 0
  %165 = vmatprep.mubr.bf16.mxu0 0
  %166 = vmatmul.mubr.bf16.gmra.mrb[0].mxu0 %v77
  %v167 = vpop.f32.mrb[0].mxu0
  %v168 = vadd.f32 0.0, %v167
  %v169 = vpop.f32.mrb[0].mxu0
  %v170 = vpop.f32.mrb[0].mxu0
  %v171 = vadd.f32 0.0, %v170
  %v172 = vpop.f32.mrb[0].mxu0
  %173 = vmatprep.mubr.bf16.mxu0 0
  %174 = vmatmul.mubr.bf16.gmra.mrb[0].mxu0 %v78
  %v175 = vpop.f32.mrb[0].mxu0
  %v176 = vadd.f32 0.0, %v175
  %v177 = vpop.f32.mrb[0].mxu0
  %v178 = vpop.f32.mrb[0].mxu0
  %v179 = vadd.f32 0.0, %v178
  %v180 = vpop.f32.mrb[0].mxu0
  %181 = vmatprep.mubr.bf16.mxu0 0
  %182 = vmatmul.mubr.bf16.gmra.mrb[0].mxu0 %v79
  %v183 = vpop.f32.mrb[0].mxu0
  %v184 = vadd.f32 0.0, %v183
  %v185 = vpop.f32.mrb[0].mxu0
  %v186 = vpop.f32.mrb[0].mxu0
  %v187 = vadd.f32 0.0, %v186
  %v188 = vpop.f32.mrb[0].mxu0
  %189 = vmatprep.mubr.bf16.mxu0 0
  %190 = vmatmul.mubr.bf16.gmra.mrb[0].mxu0 %v80
  %v191 = vpop.f32.mrb[0].mxu0
  %v192 = vadd.f32 0.0, %v191
  %v193 = vpop.f32.mrb[0].mxu0
  %v194 = vpop.f32.mrb[0].mxu0
  %v195 = vadd.f32 0.0, %v194
  %v196 = vpop.f32.mrb[0].mxu0
  %197 = vdwg.mxu0
  %v198 = vadd.f32 %v29, %v168
  %v199 = vadd.f32 %v30, %v171
  %v200 = vadd.f32 %v31, %v176
  %v201 = vadd.f32 %v32, %v179
  %v202 = vadd.f32 %v33, %v184
  %v203 = vadd.f32 %v34, %v187
  %v204 = vadd.f32 %v35, %v192
  %v205 = vadd.f32 %v36, %v195
  %206 = vst [vmem:[#allocation2] sm:$0xff] %v198
  %207 = vst [vmem:[#allocation2 + $0x8] sm:$0xff] %v199
  %208 = vst [vmem:[#allocation2 + $0x10] sm:$0xff] %v200
  %209 = vst [vmem:[#allocation2 + $0x18] sm:$0xff] %v201
  %210 = vst [vmem:[#allocation2 + $0x20] sm:$0xff] %v202
  %211 = vst [vmem:[#allocation2 + $0x28] sm:$0xff] %v203
  %212 = vst [vmem:[#allocation2 + $0x30] sm:$0xff] %v204
  %213 = vst [vmem:[#allocation2 + $0x38] sm:$0xff] %v205
  // Predicated region
  $region18: #{nlayer_discriminator_forward.9} parent=0 // pred_check
    %p214 = pneg %p17
  $region19: #{nlayer_discriminator_forward.9} parent=0 // pred_check_branch
    %216 = sbr.rel (%p214) target = $region21
  $region20: #{nlayer_discriminator_forward.9} parent=0 // pred_region
    %v217 = vld [vmem:[#allocation2] sm:$0xff]
    %v218 = vld [vmem:[#allocation2 + $0x8] sm:$0xff]
    %v219 = vld [vmem:[#allocation2 + $0x10] sm:$0xff]
    %v220 = vld [vmem:[#allocation2 + $0x18] sm:$0xff]
    %v221 = vld [vmem:[#allocation2 + $0x20] sm:$0xff]
    %v222 = vld [vmem:[#allocation2 + $0x28] sm:$0xff]
    %v223 = vld [vmem:[#allocation2 + $0x30] sm:$0xff]
    %v224 = vld [vmem:[#allocation2 + $0x38] sm:$0xff]
    %v225 = vld [vmem:[%s2] sm:$0x1]
    %v227 = vlaneseq
    %v228 = vshrl.u32 %v227, 7
    %v229 = vsub.s32 0, %v228
    %v230 = vrot.slane %v225, %v229
    %v232 = vadd.f32 %v217, %v230
    %v233 = vadd.f32 %v218, %v230
    %v234 = vadd.f32 %v219, %v230
    %v235 = vadd.f32 %v220, %v230
    %v236 = vadd.f32 %v221, %v230
    %v237 = vadd.f32 %v222, %v230
    %v238 = vadd.f32 %v223, %v230
    %v239 = vadd.f32 %v224, %v230
    %v240 = vpack.c.bf16 %v233, %v232
    %v241 = vpack.c.bf16 %v235, %v234
    %v242 = vpack.c.bf16 %v237, %v236
    %v243 = vpack.c.bf16 %v239, %v238
    %v248 = vunpack.c.l.b16 %v240
    %v249 = vunpack.c.h.b16 %v240
    %v250 = vunpack.c.l.b16 %v241
    %v251 = vunpack.c.h.b16 %v241
    %v252 = vunpack.c.l.b16 %v242
    %v253 = vunpack.c.h.b16 %v242
    %v254 = vunpack.c.l.b16 %v243
    %v255 = vunpack.c.h.b16 %v243
    %v256 = vpack.c.b16 %v248, %v248
    %v257 = vpack.c.b16 %v249, %v249
    %v258 = vpack.c.b16 %v250, %v250
    %v259 = vpack.c.b16 %v251, %v251
    %v260 = vpack.c.b16 %v252, %v252
    %v261 = vpack.c.b16 %v253, %v253
    %v262 = vpack.c.b16 %v254, %v254
    %v263 = vpack.c.b16 %v255, %v255
    %272 = vst [vmem:[%s3] sm:$0xf] %v256
    %273 = vst [vmem:[%s3 + $0x4] sm:$0xf] %v257
    %274 = vst [vmem:[%s3 + $0x8] sm:$0xf] %v258
    %275 = vst [vmem:[%s3 + $0xc] sm:$0xf] %v259
    %276 = vst [vmem:[%s3 + $0x10] sm:$0xf] %v260
    %277 = vst [vmem:[%s3 + $0x14] sm:$0xf] %v261
    %278 = vst [vmem:[%s3 + $0x18] sm:$0xf] %v262
    %279 = vst [vmem:[%s3 + $0x1c] sm:$0xf] %v263
    %280 = vst [vmem:[%s4] sm:$0xff] 0.0
    %v281 = vadd.f32 %v232, %v233
    %v282 = vadd.f32 %v281, %v234
    %v283 = vadd.f32 %v282, %v235
    %v284 = vadd.f32 %v283, %v236
    %v285 = vadd.f32 %v284, %v237
    %v286 = vadd.f32 %v285, %v238
    %v287 = vadd.f32 %v286, %v239
    %v288 = vrot.slane %v287, 4
    %v289 = vadd.f32 %v287, %v288
    %v290 = vrot.slane %v289, 2
    %v291 = vadd.f32 %v289, %v290
    %v292 = vrot.slane %v291, 1
    %v293 = vadd.f32 %v291, %v292
    %294 = vst [vmem:[%s4] sm:$0x1] %v293
    %v295 = vmul.f32 %v232, %v232
    %v296 = vmul.f32 %v233, %v233
    %v297 = vmul.f32 %v234, %v234
    %v298 = vmul.f32 %v235, %v235
    %v299 = vmul.f32 %v236, %v236
    %v300 = vmul.f32 %v237, %v237
    %v301 = vmul.f32 %v238, %v238
    %v302 = vmul.f32 %v239, %v239
    %v303 = vadd.f32 %v295, %v296
    %v304 = vadd.f32 %v303, %v297
    %v305 = vadd.f32 %v304, %v298
    %v306 = vadd.f32 %v305, %v299
    %v307 = vadd.f32 %v306, %v300
    %v308 = vadd.f32 %v307, %v301
    %v309 = vadd.f32 %v308, %v302
    %v310 = vrot.slane %v309, 4
    %v311 = vadd.f32 %v309, %v310
    %v312 = vrot.slane %v311, 2
    %v313 = vadd.f32 %v311, %v312
    %v314 = vrot.slane %v313, 1
    %v315 = vadd.f32 %v313, %v314
    %316 = vst [vmem:[%s4 + $0x1] sm:$0x1] %v315
  $region21: #{nlayer_discriminator_forward.9} parent=0 // pred_fallthru
    _
  // Predicated region
  $region22: #{nlayer_discriminator_forward.9} parent=0 // pred_check
    _
  $region23: #{nlayer_discriminator_forward.9} parent=0 // pred_check_branch
    %318 = sbr.rel (0) target = $region25
  $region24: #{nlayer_discriminator_forward.9} parent=0 // pred_region
    _
  $region25: #{nlayer_discriminator_forward.9} parent=0 // pred_fallthru
    _
  // Predicated region
  $region26: #{nlayer_discriminator_forward.9} parent=0 // pred_check
    _
  $region27: #{nlayer_discriminator_forward.9} parent=0 // pred_check_branch
    %320 = sbr.rel (0) target = $region29
  $region28: #{nlayer_discriminator_forward.9} parent=0 // pred_region
    _
  $region29: #{nlayer_discriminator_forward.9} parent=0 // pred_fallthru
    _
  // Predicated region
  $region30: #{nlayer_discriminator_forward.9} parent=0 // pred_check
    _
  $region31: #{nlayer_discriminator_forward.9} parent=0 // pred_check_branch
    %322 = sbr.rel (0) target = $region33
  $region32: #{nlayer_discriminator_forward.9} parent=0 // pred_region
    _
  $region33: #{nlayer_discriminator_forward.9} parent=0 // pred_fallthru
    _
  // Predicated region
  $region34: #{nlayer_discriminator_forward.9} parent=0 // pred_check
    _
  $region35: #{nlayer_discriminator_forward.9} parent=0 // pred_check_branch
    %324 = sbr.rel (0) target = $region37
  $region36: #{nlayer_discriminator_forward.9} parent=0 // pred_region
    _
  $region37: #{nlayer_discriminator_forward.9} parent=0 // pred_fallthru
    _

// kernel: nlayer_discriminator_forward.10
$region0: #{nlayer_discriminator_forward.10}
  #allocation0 [shape = 'u32[]', space=smem, size = 0x4, offset = 0x4, fixed_abs, tag = 'smem constant byte address 0x4 - core index']
  #allocation1 [shape = 'u32[144,128]{1,0:T(1,128)}', space=vmem, size = 0x12000, scoped, tag = 'internal scratch']
  %s0 = inlined_call_operand.vmem [shape: bf16[64,128], index: 0, kind: input, shape index: {}]
  %s1 = inlined_call_operand.vmem [shape: f32[1,128], index: 1, kind: input, shape index: {}]
  %s2 = inlined_call_operand.vmem [shape: f32[1,128], index: 2, kind: input, shape index: {}]
  %s3 = inlined_call_operand.vmem [shape: bf16[64,128], index: 3, kind: output, shape index: {}]
  %s4 = sld [smem:[#allocation0]]
  $region22: #{nlayer_discriminator_forward.10} parent=0
    _
  %s6 = ssub.s32 1, %s4
  %s7 = scalar_select 0, %s6, %s4
  // Predicated region
  $region2: #{nlayer_discriminator_forward.10} parent=0 // pred_check
    _
  $region3: #{nlayer_discriminator_forward.10} parent=0 // pred_check_branch
    %9 = sbr.rel (0) target = $region5
  $region4: #{nlayer_discriminator_forward.10} parent=0 // pred_region
    _
  $region5: #{nlayer_discriminator_forward.10} parent=0 // pred_fallthru
    _
  // Predicated region
  $region6: #{nlayer_discriminator_forward.10} parent=0 // pred_check
    _
  $region7: #{nlayer_discriminator_forward.10} parent=0 // pred_check_branch
    %11 = sbr.rel (0) target = $region9
  $region8: #{nlayer_discriminator_forward.10} parent=0 // pred_region
    _
  $region9: #{nlayer_discriminator_forward.10} parent=0 // pred_fallthru
    _
  // Predicated region
  $region10: #{nlayer_discriminator_forward.10} parent=0 // pred_check
    _
  $region11: #{nlayer_discriminator_forward.10} parent=0 // pred_check_branch
    %13 = sbr.rel (0) target = $region13
  $region12: #{nlayer_discriminator_forward.10} parent=0 // pred_region
    _
  $region13: #{nlayer_discriminator_forward.10} parent=0 // pred_fallthru
    _
  %v14 = vld [vmem:[%s0] sm:$0xf]
  %v15 = vld [vmem:[%s0 + $0x4] sm:$0xf]
  %v16 = vld [vmem:[%s0 + $0x8] sm:$0xf]
  %v17 = vld [vmem:[%s0 + $0xc] sm:$0xf]
  %v18 = vld [vmem:[%s0 + $0x10] sm:$0xf]
  %v19 = vld [vmem:[%s0 + $0x14] sm:$0xf]
  %v20 = vld [vmem:[%s0 + $0x18] sm:$0xf]
  %v21 = vld [vmem:[%s0 + $0x1c] sm:$0xf]
  %v22 = vunpack.c.l.bf16 %v14
  %v23 = vunpack.c.l.bf16 %v15
  %v24 = vunpack.c.l.bf16 %v16
  %v25 = vunpack.c.l.bf16 %v17
  %v26 = vunpack.c.l.bf16 %v18
  %v27 = vunpack.c.l.bf16 %v19
  %v28 = vunpack.c.l.bf16 %v20
  %v29 = vunpack.c.l.bf16 %v21
  %v30 = vld [vmem:[%s1] sm:$0x1]
  %v32 = vlaneseq
  %v33 = vshrl.u32 %v32, 7
  %v34 = vsub.s32 0, %v33
  %v35 = vrot.slane %v30, %v34
  %v37 = vmul.f32 %v22, %v35
  %v38 = vmul.f32 %v23, %v35
  %v39 = vmul.f32 %v24, %v35
  %v40 = vmul.f32 %v25, %v35
  %v41 = vmul.f32 %v26, %v35
  %v42 = vmul.f32 %v27, %v35
  %v43 = vmul.f32 %v28, %v35
  %v44 = vmul.f32 %v29, %v35
  %v45 = vld [vmem:[%s2] sm:$0x1]
  %v47 = vlaneseq
  %v48 = vshrl.u32 %v47, 7
  %v49 = vsub.s32 0, %v48
  %v50 = vrot.slane %v45, %v49
  %v52 = vadd.f32 %v37, %v50
  %v53 = vadd.f32 %v38, %v50
  %v54 = vadd.f32 %v39, %v50
  %v55 = vadd.f32 %v40, %v50
  %v56 = vadd.f32 %v41, %v50
  %v57 = vadd.f32 %v42, %v50
  %v58 = vadd.f32 %v43, %v50
  %v59 = vadd.f32 %v44, %v50
  %vm60 = vcmp.ge.f32.partialorder %v52, 0.0
  %vm61 = vcmp.ge.f32.partialorder %v53, 0.0
  %vm62 = vcmp.ge.f32.partialorder %v54, 0.0
  %vm63 = vcmp.ge.f32.partialorder %v55, 0.0
  %vm64 = vcmp.ge.f32.partialorder %v56, 0.0
  %vm65 = vcmp.ge.f32.partialorder %v57, 0.0
  %vm66 = vcmp.ge.f32.partialorder %v58, 0.0
  %vm67 = vcmp.ge.f32.partialorder %v59, 0.0
  %v68 = vmul.f32 %v52, 0.2
  %v69 = vmul.f32 %v53, 0.2
  %v70 = vmul.f32 %v54, 0.2
  %v71 = vmul.f32 %v55, 0.2
  %v72 = vmul.f32 %v56, 0.2
  %v73 = vmul.f32 %v57, 0.2
  %v74 = vmul.f32 %v58, 0.2
  %v75 = vmul.f32 %v59, 0.2
  %v76 = vsel %vm60, %v52, %v68
  %v77 = vsel %vm61, %v53, %v69
  %v78 = vsel %vm62, %v54, %v70
  %v79 = vsel %vm63, %v55, %v71
  %v80 = vsel %vm64, %v56, %v72
  %v81 = vsel %vm65, %v57, %v73
  %v82 = vsel %vm66, %v58, %v74
  %v83 = vsel %vm67, %v59, %v75
  %v84 = vpack.c.bf16 %v77, %v76
  %v85 = vpack.c.bf16 %v79, %v78
  %v86 = vpack.c.bf16 %v81, %v80
  %v87 = vpack.c.bf16 %v83, %v82
  %v92 = vunpack.c.l.b16 %v84
  %v93 = vunpack.c.h.b16 %v84
  %v94 = vunpack.c.l.b16 %v85
  %v95 = vunpack.c.h.b16 %v85
  %v96 = vunpack.c.l.b16 %v86
  %v97 = vunpack.c.h.b16 %v86
  %v98 = vunpack.c.l.b16 %v87
  %v99 = vunpack.c.h.b16 %v87
  %v100 = vpack.c.b16 %v92, %v92
  %v101 = vpack.c.b16 %v93, %v93
  %v102 = vpack.c.b16 %v94, %v94
  %v103 = vpack.c.b16 %v95, %v95
  %v104 = vpack.c.b16 %v96, %v96
  %v105 = vpack.c.b16 %v97, %v97
  %v106 = vpack.c.b16 %v98, %v98
  %v107 = vpack.c.b16 %v99, %v99
  %116 = vst [vmem:[%s3] sm:$0xf] %v100
  %117 = vst [vmem:[%s3 + $0x4] sm:$0xf] %v101
  %118 = vst [vmem:[%s3 + $0x8] sm:$0xf] %v102
  %119 = vst [vmem:[%s3 + $0xc] sm:$0xf] %v103
  %120 = vst [vmem:[%s3 + $0x10] sm:$0xf] %v104
  %121 = vst [vmem:[%s3 + $0x14] sm:$0xf] %v105
  %122 = vst [vmem:[%s3 + $0x18] sm:$0xf] %v106
  %123 = vst [vmem:[%s3 + $0x1c] sm:$0xf] %v107
  // Predicated region
  $region14: #{nlayer_discriminator_forward.10} parent=0 // pred_check
    _
  $region15: #{nlayer_discriminator_forward.10} parent=0 // pred_check_branch
    %125 = sbr.rel (0) target = $region17
  $region16: #{nlayer_discriminator_forward.10} parent=0 // pred_region
    _
  $region17: #{nlayer_discriminator_forward.10} parent=0 // pred_fallthru
    _
  // Predicated region
  $region18: #{nlayer_discriminator_forward.10} parent=0 // pred_check
    _
  $region19: #{nlayer_discriminator_forward.10} parent=0 // pred_check_branch
    %127 = sbr.rel (0) target = $region21
  $region20: #{nlayer_discriminator_forward.10} parent=0 // pred_region
    _
  $region21: #{nlayer_discriminator_forward.10} parent=0 // pred_fallthru
    _

// kernel: nlayer_discriminator_forward.12
$region0: #{nlayer_discriminator_forward.12}
  #allocation0 [shape = 'u32[]', space=smem, size = 0x4, offset = 0x4, fixed_abs, tag = 'smem constant byte address 0x4 - core index']
  #allocation1 [shape = 'u32[144,128]{1,0:T(1,128)}', space=vmem, size = 0x12000, scoped, tag = 'internal scratch']
  %s0 = inlined_call_operand.vmem [shape: bf16[32,128], index: 0, kind: input, shape index: {}]
  %s1 = inlined_call_operand.vmem [shape: f32[1,128], index: 1, kind: input, shape index: {}]
  %s2 = inlined_call_operand.vmem [shape: f32[1,128], index: 2, kind: input, shape index: {}]
  %s3 = inlined_call_operand.vmem [shape: bf16[32,128], index: 3, kind: output, shape index: {}]
  %s4 = sld [smem:[#allocation0]]
  $region22: #{nlayer_discriminator_forward.12} parent=0
    _
  %s6 = ssub.s32 1, %s4
  %s7 = scalar_select 0, %s6, %s4
  // Predicated region
  $region2: #{nlayer_discriminator_forward.12} parent=0 // pred_check
    _
  $region3: #{nlayer_discriminator_forward.12} parent=0 // pred_check_branch
    %9 = sbr.rel (0) target = $region5
  $region4: #{nlayer_discriminator_forward.12} parent=0 // pred_region
    _
  $region5: #{nlayer_discriminator_forward.12} parent=0 // pred_fallthru
    _
  // Predicated region
  $region6: #{nlayer_discriminator_forward.12} parent=0 // pred_check
    _
  $region7: #{nlayer_discriminator_forward.12} parent=0 // pred_check_branch
    %11 = sbr.rel (0) target = $region9
  $region8: #{nlayer_discriminator_forward.12} parent=0 // pred_region
    _
  $region9: #{nlayer_discriminator_forward.12} parent=0 // pred_fallthru
    _
  // Predicated region
  $region10: #{nlayer_discriminator_forward.12} parent=0 // pred_check
    _
  $region11: #{nlayer_discriminator_forward.12} parent=0 // pred_check_branch
    %13 = sbr.rel (0) target = $region13
  $region12: #{nlayer_discriminator_forward.12} parent=0 // pred_region
    _
  $region13: #{nlayer_discriminator_forward.12} parent=0 // pred_fallthru
    _
  %v14 = vld [vmem:[%s0] sm:$0xf]
  %v15 = vld [vmem:[%s0 + $0x4] sm:$0xf]
  %v16 = vld [vmem:[%s0 + $0x8] sm:$0xf]
  %v17 = vld [vmem:[%s0 + $0xc] sm:$0xf]
  %v18 = vunpack.c.l.bf16 %v14
  %v19 = vunpack.c.l.bf16 %v15
  %v20 = vunpack.c.l.bf16 %v16
  %v21 = vunpack.c.l.bf16 %v17
  %v22 = vld [vmem:[%s1] sm:$0x1]
  %v24 = vlaneseq
  %v25 = vshrl.u32 %v24, 7
  %v26 = vsub.s32 0, %v25
  %v27 = vrot.slane %v22, %v26
  %v29 = vmul.f32 %v18, %v27
  %v30 = vmul.f32 %v19, %v27
  %v31 = vmul.f32 %v20, %v27
  %v32 = vmul.f32 %v21, %v27
  %v33 = vld [vmem:[%s2] sm:$0x1]
  %v35 = vlaneseq
  %v36 = vshrl.u32 %v35, 7
  %v37 = vsub.s32 0, %v36
  %v38 = vrot.slane %v33, %v37
  %v40 = vadd.f32 %v29, %v38
  %v41 = vadd.f32 %v30, %v38
  %v42 = vadd.f32 %v31, %v38
  %v43 = vadd.f32 %v32, %v38
  %vm44 = vcmp.ge.f32.partialorder %v40, 0.0
  %vm45 = vcmp.ge.f32.partialorder %v41, 0.0
  %vm46 = vcmp.ge.f32.partialorder %v42, 0.0
  %vm47 = vcmp.ge.f32.partialorder %v43, 0.0
  %v48 = vmul.f32 %v40, 0.2
  %v49 = vmul.f32 %v41, 0.2
  %v50 = vmul.f32 %v42, 0.2
  %v51 = vmul.f32 %v43, 0.2
  %v52 = vsel %vm44, %v40, %v48
  %v53 = vsel %vm45, %v41, %v49
  %v54 = vsel %vm46, %v42, %v50
  %v55 = vsel %vm47, %v43, %v51
  %v56 = vpack.c.bf16 %v53, %v52
  %v57 = vpack.c.bf16 %v55, %v54
  %v60 = vunpack.c.l.b16 %v56
  %v61 = vunpack.c.h.b16 %v56
  %v62 = vunpack.c.l.b16 %v57
  %v63 = vunpack.c.h.b16 %v57
  %v64 = vpack.c.b16 %v60, %v60
  %v65 = vpack.c.b16 %v61, %v61
  %v66 = vpack.c.b16 %v62, %v62
  %v67 = vpack.c.b16 %v63, %v63
  %72 = vst [vmem:[%s3] sm:$0xf] %v64
  %73 = vst [vmem:[%s3 + $0x4] sm:$0xf] %v65
  %74 = vst [vmem:[%s3 + $0x8] sm:$0xf] %v66
  %75 = vst [vmem:[%s3 + $0xc] sm:$0xf] %v67
  // Predicated region
  $region14: #{nlayer_discriminator_forward.12} parent=0 // pred_check
    _
  $region15: #{nlayer_discriminator_forward.12} parent=0 // pred_check_branch
    %77 = sbr.rel (0) target = $region17
  $region16: #{nlayer_discriminator_forward.12} parent=0 // pred_region
    _
  $region17: #{nlayer_discriminator_forward.12} parent=0 // pred_fallthru
    _
  // Predicated region
  $region18: #{nlayer_discriminator_forward.12} parent=0 // pred_check
    _
  $region19: #{nlayer_discriminator_forward.12} parent=0 // pred_check_branch
    %79 = sbr.rel (0) target = $region21
  $region20: #{nlayer_discriminator_forward.12} parent=0 // pred_region
    _
  $region21: #{nlayer_discriminator_forward.12} parent=0 // pred_fallthru
    _

// kernel: nlayer_discriminator_forward.11
$region0: #{nlayer_discriminator_forward.11}
  #allocation0 [shape = 'u32[]', space=smem, size = 0x4, offset = 0x4, fixed_abs, tag = 'smem constant byte address 0x4 - core index']
  #allocation1 [shape = 'u32[144,128]{1,0:T(1,128)}', space=vmem, size = 0x12000, scoped, tag = 'internal scratch']
  #allocation2 [shape = 'f32[32,128]{1,0:T(8,128)}', space=vmem, size = 0x4000, scoped, tag = 'scratch operand']
  %s0 = inlined_call_operand.vmem [shape: bf16[32,256], index: 0, kind: input, shape index: {}]
  %s1 = inlined_call_operand.vmem [shape: bf16[256,128], index: 1, kind: input, shape index: {}]
  %s2 = inlined_call_operand.vmem [shape: f32[1,128], index: 2, kind: input, shape index: {}]
  %s3 = inlined_call_operand.vmem [shape: bf16[32,128], index: 3, kind: output, shape index: {0}]
  %s4 = inlined_call_operand.vmem [shape: f32[8,128], index: 4, kind: output, shape index: {1}]
  %5 = xla_tuple %s3, %s4
  %s6 = sld [smem:[#allocation0]]
  $region38: #{nlayer_discriminator_forward.11} parent=0
    _
  %s8 = ssub.s32 1, %s6
  %s9 = scalar_select 0, %s8, %s6
  // Predicated region
  $region2: #{nlayer_discriminator_forward.11} parent=0 // pred_check
    _
  $region3: #{nlayer_discriminator_forward.11} parent=0 // pred_check_branch
    %11 = sbr.rel (0) target = $region5
  $region4: #{nlayer_discriminator_forward.11} parent=0 // pred_region
    _
  $region5: #{nlayer_discriminator_forward.11} parent=0 // pred_fallthru
    _
  // Predicated region
  $region6: #{nlayer_discriminator_forward.11} parent=0 // pred_check
    _
  $region7: #{nlayer_discriminator_forward.11} parent=0 // pred_check_branch
    %13 = sbr.rel (0) target = $region9
  $region8: #{nlayer_discriminator_forward.11} parent=0 // pred_region
    _
  $region9: #{nlayer_discriminator_forward.11} parent=0 // pred_fallthru
    _
  // Predicated region
  $region10: #{nlayer_discriminator_forward.11} parent=0 // pred_check
    _
  $region11: #{nlayer_discriminator_forward.11} parent=0 // pred_check_branch
    %15 = sbr.rel (0) target = $region13
  $region12: #{nlayer_discriminator_forward.11} parent=0 // pred_region
    _
  $region13: #{nlayer_discriminator_forward.11} parent=0 // pred_fallthru
    _
  %p17 = scmp.eq.s32.totalorder 0, 0
  // Predicated region
  $region14: #{nlayer_discriminator_forward.11} parent=0 // pred_check
    %p18 = pneg %p17
  $region15: #{nlayer_discriminator_forward.11} parent=0 // pred_check_branch
    %20 = sbr.rel (%p18) target = $region17
  $region16: #{nlayer_discriminator_forward.11} parent=0 // pred_region
    %21 = vst [vmem:[#allocation2] sm:$0xff] 0.0
    %22 = vst [vmem:[#allocation2 + $0x8] sm:$0xff] 0.0
    %23 = vst [vmem:[#allocation2 + $0x10] sm:$0xff] 0.0
    %24 = vst [vmem:[#allocation2 + $0x18] sm:$0xff] 0.0
  $region17: #{nlayer_discriminator_forward.11} parent=0 // pred_fallthru
    _
  %v25 = vld [vmem:[#allocation2] sm:$0xff]
  %v26 = vld [vmem:[#allocation2 + $0x8] sm:$0xff]
  %v27 = vld [vmem:[#allocation2 + $0x10] sm:$0xff]
  %v28 = vld [vmem:[#allocation2 + $0x18] sm:$0xff]
  %v29 = vld [vmem:[%s0] sm:$0xff]
  %v30 = vld [vmem:[%s0 + $0x8] sm:$0xff]
  %v31 = vld [vmem:[%s0 + $0x10] sm:$0xff]
  %v32 = vld [vmem:[%s0 + $0x18] sm:$0xff]
  %v33 = vld [vmem:[%s1] sm:$0xf]
  %v34 = vld [vmem:[%s1 + $0x4] sm:$0xf]
  %v35 = vld [vmem:[%s1 + $0x8] sm:$0xf]
  %v36 = vld [vmem:[%s1 + $0xc] sm:$0xf]
  %v37 = vld [vmem:[%s1 + $0x10] sm:$0xf]
  %v38 = vld [vmem:[%s1 + $0x14] sm:$0xf]
  %v39 = vld [vmem:[%s1 + $0x18] sm:$0xf]
  %v40 = vld [vmem:[%s1 + $0x1c] sm:$0xf]
  %v41 = vld [vmem:[%s1 + $0x20] sm:$0xf]
  %v42 = vld [vmem:[%s1 + $0x24] sm:$0xf]
  %v43 = vld [vmem:[%s1 + $0x28] sm:$0xf]
  %v44 = vld [vmem:[%s1 + $0x2c] sm:$0xf]
  %v45 = vld [vmem:[%s1 + $0x30] sm:$0xf]
  %v46 = vld [vmem:[%s1 + $0x34] sm:$0xf]
  %v47 = vld [vmem:[%s1 + $0x38] sm:$0xf]
  %v48 = vld [vmem:[%s1 + $0x3c] sm:$0xf]
  %v49 = vld [vmem:[%s1 + $0x40] sm:$0xf]
  %v50 = vld [vmem:[%s1 + $0x44] sm:$0xf]
  %v51 = vld [vmem:[%s1 + $0x48] sm:$0xf]
  %v52 = vld [vmem:[%s1 + $0x4c] sm:$0xf]
  %v53 = vld [vmem:[%s1 + $0x50] sm:$0xf]
  %v54 = vld [vmem:[%s1 + $0x54] sm:$0xf]
  %v55 = vld [vmem:[%s1 + $0x58] sm:$0xf]
  %v56 = vld [vmem:[%s1 + $0x5c] sm:$0xf]
  %v57 = vld [vmem:[%s1 + $0x60] sm:$0xf]
  %v58 = vld [vmem:[%s1 + $0x64] sm:$0xf]
  %v59 = vld [vmem:[%s1 + $0x68] sm:$0xf]
  %v60 = vld [vmem:[%s1 + $0x6c] sm:$0xf]
  %v61 = vld [vmem:[%s1 + $0x70] sm:$0xf]
  %v62 = vld [vmem:[%s1 + $0x74] sm:$0xf]
  %v63 = vld [vmem:[%s1 + $0x78] sm:$0xf]
  %v64 = vld [vmem:[%s1 + $0x7c] sm:$0xf]
  %v69 = vunpack.c.l.b16 %v29
  %v70 = vunpack.c.h.b16 %v29
  %v71 = vunpack.c.l.b16 %v30
  %v72 = vunpack.c.h.b16 %v30
  %v73 = vunpack.c.l.b16 %v31
  %v74 = vunpack.c.h.b16 %v31
  %v75 = vunpack.c.l.b16 %v32
  %v76 = vunpack.c.h.b16 %v32
  %v77 = vpack.c.b16 %v71, %v69
  %v78 = vpack.c.b16 %v72, %v70
  %v79 = vpack.c.b16 %v75, %v73
  %v80 = vpack.c.b16 %v76, %v74
  %v117 = vunpack.c.l.b16 %v33
  %v118 = vunpack.c.l.b16 %v34
  %v119 = vunpack.c.l.b16 %v35
  %v120 = vunpack.c.l.b16 %v36
  %v121 = vunpack.c.l.b16 %v37
  %v122 = vunpack.c.l.b16 %v38
  %v123 = vunpack.c.l.b16 %v39
  %v124 = vunpack.c.l.b16 %v40
  %v125 = vunpack.c.l.b16 %v41
  %v126 = vunpack.c.l.b16 %v42
  %v127 = vunpack.c.l.b16 %v43
  %v128 = vunpack.c.l.b16 %v44
  %v129 = vunpack.c.l.b16 %v45
  %v130 = vunpack.c.l.b16 %v46
  %v131 = vunpack.c.l.b16 %v47
  %v132 = vunpack.c.l.b16 %v48
  %v133 = vunpack.c.l.b16 %v49
  %v134 = vunpack.c.l.b16 %v50
  %v135 = vunpack.c.l.b16 %v51
  %v136 = vunpack.c.l.b16 %v52
  %v137 = vunpack.c.l.b16 %v53
  %v138 = vunpack.c.l.b16 %v54
  %v139 = vunpack.c.l.b16 %v55
  %v140 = vunpack.c.l.b16 %v56
  %v141 = vunpack.c.l.b16 %v57
  %v142 = vunpack.c.l.b16 %v58
  %v143 = vunpack.c.l.b16 %v59
  %v144 = vunpack.c.l.b16 %v60
  %v145 = vunpack.c.l.b16 %v61
  %v146 = vunpack.c.l.b16 %v62
  %v147 = vunpack.c.l.b16 %v63
  %v148 = vunpack.c.l.b16 %v64
  %v149 = vpack.c.b16 %v118, %v117
  %v150 = vpack.c.b16 %v120, %v119
  %v151 = vpack.c.b16 %v122, %v121
  %v152 = vpack.c.b16 %v124, %v123
  %v153 = vpack.c.b16 %v126, %v125
  %v154 = vpack.c.b16 %v128, %v127
  %v155 = vpack.c.b16 %v130, %v129
  %v156 = vpack.c.b16 %v132, %v131
  %v157 = vpack.c.b16 %v134, %v133
  %v158 = vpack.c.b16 %v136, %v135
  %v159 = vpack.c.b16 %v138, %v137
  %v160 = vpack.c.b16 %v140, %v139
  %v161 = vpack.c.b16 %v142, %v141
  %v162 = vpack.c.b16 %v144, %v143
  %v163 = vpack.c.b16 %v146, %v145
  %v164 = vpack.c.b16 %v148, %v147
  %181 = vmatprep.subr.bf16.mxu0 0
  %182 = vmatpush1.bf16.msra.mxu0 %v149
  %183 = vmatprep.subr.bf16.mxu0 0
  %184 = vmatpush1.bf16.msra.mxu0 %v150
  %185 = vmatprep.subr.bf16.mxu0 0
  %186 = vmatpush1.bf16.msra.mxu0 %v151
  %187 = vmatprep.subr.bf16.mxu0 0
  %188 = vmatpush1.bf16.msra.mxu0 %v152
  %189 = vmatprep.subr.bf16.mxu0 0
  %190 = vmatpush1.bf16.msra.mxu0 %v153
  %191 = vmatprep.subr.bf16.mxu0 0
  %192 = vmatpush1.bf16.msra.mxu0 %v154
  %193 = vmatprep.subr.bf16.mxu0 0
  %194 = vmatpush1.bf16.msra.mxu0 %v155
  %195 = vmatprep.subr.bf16.mxu0 0
  %196 = vmatpush1.bf16.msra.mxu0 %v156
  %197 = vmatprep.subr.bf16.mxu0 0
  %198 = vmatpush1.bf16.msra.mxu0 %v157
  %199 = vmatprep.subr.bf16.mxu0 0
  %200 = vmatpush1.bf16.msra.mxu0 %v158
  %201 = vmatprep.subr.bf16.mxu0 0
  %202 = vmatpush1.bf16.msra.mxu0 %v159
  %203 = vmatprep.subr.bf16.mxu0 0
  %204 = vmatpush1.bf16.msra.mxu0 %v160
  %205 = vmatprep.subr.bf16.mxu0 0
  %206 = vmatpush1.bf16.msra.mxu0 %v161
  %207 = vmatprep.subr.bf16.mxu0 0
  %208 = vmatpush1.bf16.msra.mxu0 %v162
  %209 = vmatprep.subr.bf16.mxu0 0
  %210 = vmatpush1.bf16.msra.mxu0 %v163
  %211 = vmatprep.subr.bf16.mxu0 0
  %212 = vmatpush1.bf16.msra.mxu0 %v164
  %213 = vmatprep.mubr.bf16.mxu0 %v78
  %214 = vmatmul.mubr.bf16.gmra.mrb[0].mxu0 %v77
  %v215 = vpop.f32.mrb[0].mxu0
  %v216 = vadd.f32 0.0, %v215
  %v217 = vpop.f32.mrb[0].mxu0
  %v218 = vpop.f32.mrb[0].mxu0
  %v219 = vadd.f32 0.0, %v218
  %v220 = vpop.f32.mrb[0].mxu0
  %221 = vmatprep.mubr.bf16.mxu0 %v80
  %222 = vmatmul.mubr.bf16.gmra.mrb[0].mxu0 %v79
  %v223 = vpop.f32.mrb[0].mxu0
  %v224 = vadd.f32 0.0, %v223
  %v225 = vpop.f32.mrb[0].mxu0
  %v226 = vpop.f32.mrb[0].mxu0
  %v227 = vadd.f32 0.0, %v226
  %v228 = vpop.f32.mrb[0].mxu0
  %229 = vdwg.mxu0
  %v230 = vadd.f32 %v25, %v216
  %v231 = vadd.f32 %v26, %v219
  %v232 = vadd.f32 %v27, %v224
  %v233 = vadd.f32 %v28, %v227
  %234 = vst [vmem:[#allocation2] sm:$0xff] %v230
  %235 = vst [vmem:[#allocation2 + $0x8] sm:$0xff] %v231
  %236 = vst [vmem:[#allocation2 + $0x10] sm:$0xff] %v232
  %237 = vst [vmem:[#allocation2 + $0x18] sm:$0xff] %v233
  // Predicated region
  $region18: #{nlayer_discriminator_forward.11} parent=0 // pred_check
    %p238 = pneg %p17
  $region19: #{nlayer_discriminator_forward.11} parent=0 // pred_check_branch
    %240 = sbr.rel (%p238) target = $region21
  $region20: #{nlayer_discriminator_forward.11} parent=0 // pred_region
    %v241 = vld [vmem:[#allocation2] sm:$0xff]
    %v242 = vld [vmem:[#allocation2 + $0x8] sm:$0xff]
    %v243 = vld [vmem:[#allocation2 + $0x10] sm:$0xff]
    %v244 = vld [vmem:[#allocation2 + $0x18] sm:$0xff]
    %v245 = vld [vmem:[%s2] sm:$0x1]
    %v247 = vlaneseq
    %v248 = vshrl.u32 %v247, 7
    %v249 = vsub.s32 0, %v248
    %v250 = vrot.slane %v245, %v249
    %v252 = vadd.f32 %v241, %v250
    %v253 = vadd.f32 %v242, %v250
    %v254 = vadd.f32 %v243, %v250
    %v255 = vadd.f32 %v244, %v250
    %v256 = vpack.c.bf16 %v253, %v252
    %v257 = vpack.c.bf16 %v255, %v254
    %v260 = vunpack.c.l.b16 %v256
    %v261 = vunpack.c.h.b16 %v256
    %v262 = vunpack.c.l.b16 %v257
    %v263 = vunpack.c.h.b16 %v257
    %v264 = vpack.c.b16 %v260, %v260
    %v265 = vpack.c.b16 %v261, %v261
    %v266 = vpack.c.b16 %v262, %v262
    %v267 = vpack.c.b16 %v263, %v263
    %272 = vst [vmem:[%s3] sm:$0xf] %v264
    %273 = vst [vmem:[%s3 + $0x4] sm:$0xf] %v265
    %274 = vst [vmem:[%s3 + $0x8] sm:$0xf] %v266
    %275 = vst [vmem:[%s3 + $0xc] sm:$0xf] %v267
    %276 = vst [vmem:[%s4] sm:$0xff] 0.0
    %v277 = vadd.f32 %v252, %v253
    %v278 = vadd.f32 %v277, %v254
    %v279 = vadd.f32 %v278, %v255
    %v280 = vrot.slane %v279, 4
    %v281 = vadd.f32 %v279, %v280
    %v282 = vrot.slane %v281, 2
    %v283 = vadd.f32 %v281, %v282
    %v284 = vrot.slane %v283, 1
    %v285 = vadd.f32 %v283, %v284
    %286 = vst [vmem:[%s4] sm:$0x1] %v285
    %v287 = vmul.f32 %v252, %v252
    %v288 = vmul.f32 %v253, %v253
    %v289 = vmul.f32 %v254, %v254
    %v290 = vmul.f32 %v255, %v255
    %v291 = vadd.f32 %v287, %v288
    %v292 = vadd.f32 %v291, %v289
    %v293 = vadd.f32 %v292, %v290
    %v294 = vrot.slane %v293, 4
    %v295 = vadd.f32 %v293, %v294
    %v296 = vrot.slane %v295, 2
    %v297 = vadd.f32 %v295, %v296
    %v298 = vrot.slane %v297, 1
    %v299 = vadd.f32 %v297, %v298
    %300 = vst [vmem:[%s4 + $0x1] sm:$0x1] %v299
  $region21: #{nlayer_discriminator_forward.11} parent=0 // pred_fallthru
    _
  // Predicated region
  $region22: #{nlayer_discriminator_forward.11} parent=0 // pred_check
    _
  $region23: #{nlayer_discriminator_forward.11} parent=0 // pred_check_branch
    %302 = sbr.rel (0) target = $region25
  $region24: #{nlayer_discriminator_forward.11} parent=0 // pred_region
    _
  $region25: #{nlayer_discriminator_forward.11} parent=0 // pred_fallthru
    _
  // Predicated region
  $region26: #{nlayer_discriminator_forward.11} parent=0 // pred_check
    _
  $region27: #{nlayer_discriminator_forward.11} parent=0 // pred_check_branch
    %304 = sbr.rel (0) target = $region29
  $region28: #{nlayer_discriminator_forward.11} parent=0 // pred_region
    _
  $region29: #{nlayer_discriminator_forward.11} parent=0 // pred_fallthru
    _
  // Predicated region
  $region30: #{nlayer_discriminator_forward.11} parent=0 // pred_check
    _
  $region31: #{nlayer_discriminator_forward.11} parent=0 // pred_check_branch
    %306 = sbr.rel (0) target = $region33
  $region32: #{nlayer_discriminator_forward.11} parent=0 // pred_region
    _
  $region33: #{nlayer_discriminator_forward.11} parent=0 // pred_fallthru
    _
  // Predicated region
  $region34: #{nlayer_discriminator_forward.11} parent=0 // pred_check
    _
  $region35: #{nlayer_discriminator_forward.11} parent=0 // pred_check_branch
    %308 = sbr.rel (0) target = $region37
  $region36: #{nlayer_discriminator_forward.11} parent=0 // pred_region
    _
  $region37: #{nlayer_discriminator_forward.11} parent=0 // pred_fallthru
    _

// kernel: nlayer_discriminator_forward.13
$region0: #{nlayer_discriminator_forward.13}
  #allocation0 [shape = 'u32[]', space=smem, size = 0x4, offset = 0x4, fixed_abs, tag = 'smem constant byte address 0x4 - core index']
  #allocation1 [shape = 'u32[144,128]{1,0:T(1,128)}', space=vmem, size = 0x12000, scoped, tag = 'internal scratch']
  #allocation2 [shape = 'f32[32,128]{1,0:T(8,128)}', space=vmem, size = 0x4000, scoped, tag = 'scratch operand']
  %s0 = inlined_call_operand.vmem [shape: bf16[32,512], index: 0, kind: input, shape index: {}]
  %s1 = inlined_call_operand.vmem [shape: bf16[512,128], index: 1, kind: input, shape index: {}]
  %s2 = inlined_call_operand.vmem [shape: f32[1,128], index: 2, kind: input, shape index: {}]
  %s3 = inlined_call_operand.vmem [shape: bf16[32,128], index: 3, kind: output, shape index: {0}]
  %s4 = inlined_call_operand.vmem [shape: f32[8,128], index: 4, kind: output, shape index: {1}]
  %5 = xla_tuple %s3, %s4
  %s6 = sld [smem:[#allocation0]]
  $region38: #{nlayer_discriminator_forward.13} parent=0
    _
  %s8 = ssub.s32 1, %s6
  %s9 = scalar_select 0, %s8, %s6
  // Predicated region
  $region2: #{nlayer_discriminator_forward.13} parent=0 // pred_check
    _
  $region3: #{nlayer_discriminator_forward.13} parent=0 // pred_check_branch
    %11 = sbr.rel (0) target = $region5
  $region4: #{nlayer_discriminator_forward.13} parent=0 // pred_region
    _
  $region5: #{nlayer_discriminator_forward.13} parent=0 // pred_fallthru
    _
  // Predicated region
  $region6: #{nlayer_discriminator_forward.13} parent=0 // pred_check
    _
  $region7: #{nlayer_discriminator_forward.13} parent=0 // pred_check_branch
    %13 = sbr.rel (0) target = $region9
  $region8: #{nlayer_discriminator_forward.13} parent=0 // pred_region
    _
  $region9: #{nlayer_discriminator_forward.13} parent=0 // pred_fallthru
    _
  // Predicated region
  $region10: #{nlayer_discriminator_forward.13} parent=0 // pred_check
    _
  $region11: #{nlayer_discriminator_forward.13} parent=0 // pred_check_branch
    %15 = sbr.rel (0) target = $region13
  $region12: #{nlayer_discriminator_forward.13} parent=0 // pred_region
    _
  $region13: #{nlayer_discriminator_forward.13} parent=0 // pred_fallthru
    _
  %p17 = scmp.eq.s32.totalorder 0, 0
  // Predicated region
  $region14: #{nlayer_discriminator_forward.13} parent=0 // pred_check
    %p18 = pneg %p17
  $region15: #{nlayer_discriminator_forward.13} parent=0 // pred_check_branch
    %20 = sbr.rel (%p18) target = $region17
  $region16: #{nlayer_discriminator_forward.13} parent=0 // pred_region
    %21 = vst [vmem:[#allocation2] sm:$0xff] 0.0
    %22 = vst [vmem:[#allocation2 + $0x8] sm:$0xff] 0.0
    %23 = vst [vmem:[#allocation2 + $0x10] sm:$0xff] 0.0
    %24 = vst [vmem:[#allocation2 + $0x18] sm:$0xff] 0.0
  $region17: #{nlayer_discriminator_forward.13} parent=0 // pred_fallthru
    _
  %v25 = vld [vmem:[#allocation2] sm:$0xff]
  %v26 = vld [vmem:[#allocation2 + $0x8] sm:$0xff]
  %v27 = vld [vmem:[#allocation2 + $0x10] sm:$0xff]
  %v28 = vld [vmem:[#allocation2 + $0x18] sm:$0xff]
  %v29 = vld [vmem:[%s0] sm:$0xff]
  %v30 = vld [vmem:[%s0 + $0x8] sm:$0xff]
  %v31 = vld [vmem:[%s0 + $0x10] sm:$0xff]
  %v32 = vld [vmem:[%s0 + $0x18] sm:$0xff]
  %v33 = vld [vmem:[%s0 + $0x20] sm:$0xff]
  %v34 = vld [vmem:[%s0 + $0x28] sm:$0xff]
  %v35 = vld [vmem:[%s0 + $0x30] sm:$0xff]
  %v36 = vld [vmem:[%s0 + $0x38] sm:$0xff]
  %v37 = vld [vmem:[%s1] sm:$0xf]
  %v38 = vld [vmem:[%s1 + $0x4] sm:$0xf]
  %v39 = vld [vmem:[%s1 + $0x8] sm:$0xf]
  %v40 = vld [vmem:[%s1 + $0xc] sm:$0xf]
  %v41 = vld [vmem:[%s1 + $0x10] sm:$0xf]
  %v42 = vld [vmem:[%s1 + $0x14] sm:$0xf]
  %v43 = vld [vmem:[%s1 + $0x18] sm:$0xf]
  %v44 = vld [vmem:[%s1 + $0x1c] sm:$0xf]
  %v45 = vld [vmem:[%s1 + $0x20] sm:$0xf]
  %v46 = vld [vmem:[%s1 + $0x24] sm:$0xf]
  %v47 = vld [vmem:[%s1 + $0x28] sm:$0xf]
  %v48 = vld [vmem:[%s1 + $0x2c] sm:$0xf]
  %v49 = vld [vmem:[%s1 + $0x30] sm:$0xf]
  %v50 = vld [vmem:[%s1 + $0x34] sm:$0xf]
  %v51 = vld [vmem:[%s1 + $0x38] sm:$0xf]
  %v52 = vld [vmem:[%s1 + $0x3c] sm:$0xf]
  %v53 = vld [vmem:[%s1 + $0x40] sm:$0xf]
  %v54 = vld [vmem:[%s1 + $0x44] sm:$0xf]
  %v55 = vld [vmem:[%s1 + $0x48] sm:$0xf]
  %v56 = vld [vmem:[%s1 + $0x4c] sm:$0xf]
  %v57 = vld [vmem:[%s1 + $0x50] sm:$0xf]
  %v58 = vld [vmem:[%s1 + $0x54] sm:$0xf]
  %v59 = vld [vmem:[%s1 + $0x58] sm:$0xf]
  %v60 = vld [vmem:[%s1 + $0x5c] sm:$0xf]
  %v61 = vld [vmem:[%s1 + $0x60] sm:$0xf]
  %v62 = vld [vmem:[%s1 + $0x64] sm:$0xf]
  %v63 = vld [vmem:[%s1 + $0x68] sm:$0xf]
  %v64 = vld [vmem:[%s1 + $0x6c] sm:$0xf]
  %v65 = vld [vmem:[%s1 + $0x70] sm:$0xf]
  %v66 = vld [vmem:[%s1 + $0x74] sm:$0xf]
  %v67 = vld [vmem:[%s1 + $0x78] sm:$0xf]
  %v68 = vld [vmem:[%s1 + $0x7c] sm:$0xf]
  %v69 = vld [vmem:[%s1 + $0x80] sm:$0xf]
  %v70 = vld [vmem:[%s1 + $0x84] sm:$0xf]
  %v71 = vld [vmem:[%s1 + $0x88] sm:$0xf]
  %v72 = vld [vmem:[%s1 + $0x8c] sm:$0xf]
  %v73 = vld [vmem:[%s1 + $0x90] sm:$0xf]
  %v74 = vld [vmem:[%s1 + $0x94] sm:$0xf]
  %v75 = vld [vmem:[%s1 + $0x98] sm:$0xf]
  %v76 = vld [vmem:[%s1 + $0x9c] sm:$0xf]
  %v77 = vld [vmem:[%s1 + $0xa0] sm:$0xf]
  %v78 = vld [vmem:[%s1 + $0xa4] sm:$0xf]
  %v79 = vld [vmem:[%s1 + $0xa8] sm:$0xf]
  %v80 = vld [vmem:[%s1 + $0xac] sm:$0xf]
  %v81 = vld [vmem:[%s1 + $0xb0] sm:$0xf]
  %v82 = vld [vmem:[%s1 + $0xb4] sm:$0xf]
  %v83 = vld [vmem:[%s1 + $0xb8] sm:$0xf]
  %v84 = vld [vmem:[%s1 + $0xbc] sm:$0xf]
  %v85 = vld [vmem:[%s1 + $0xc0] sm:$0xf]
  %v86 = vld [vmem:[%s1 + $0xc4] sm:$0xf]
  %v87 = vld [vmem:[%s1 + $0xc8] sm:$0xf]
  %v88 = vld [vmem:[%s1 + $0xcc] sm:$0xf]
  %v89 = vld [vmem:[%s1 + $0xd0] sm:$0xf]
  %v90 = vld [vmem:[%s1 + $0xd4] sm:$0xf]
  %v91 = vld [vmem:[%s1 + $0xd8] sm:$0xf]
  %v92 = vld [vmem:[%s1 + $0xdc] sm:$0xf]
  %v93 = vld [vmem:[%s1 + $0xe0] sm:$0xf]
  %v94 = vld [vmem:[%s1 + $0xe4] sm:$0xf]
  %v95 = vld [vmem:[%s1 + $0xe8] sm:$0xf]
  %v96 = vld [vmem:[%s1 + $0xec] sm:$0xf]
  %v97 = vld [vmem:[%s1 + $0xf0] sm:$0xf]
  %v98 = vld [vmem:[%s1 + $0xf4] sm:$0xf]
  %v99 = vld [vmem:[%s1 + $0xf8] sm:$0xf]
  %v100 = vld [vmem:[%s1 + $0xfc] sm:$0xf]
  %v109 = vunpack.c.l.b16 %v29
  %v110 = vunpack.c.h.b16 %v29
  %v111 = vunpack.c.l.b16 %v30
  %v112 = vunpack.c.h.b16 %v30
  %v113 = vunpack.c.l.b16 %v31
  %v114 = vunpack.c.h.b16 %v31
  %v115 = vunpack.c.l.b16 %v32
  %v116 = vunpack.c.h.b16 %v32
  %v117 = vunpack.c.l.b16 %v33
  %v118 = vunpack.c.h.b16 %v33
  %v119 = vunpack.c.l.b16 %v34
  %v120 = vunpack.c.h.b16 %v34
  %v121 = vunpack.c.l.b16 %v35
  %v122 = vunpack.c.h.b16 %v35
  %v123 = vunpack.c.l.b16 %v36
  %v124 = vunpack.c.h.b16 %v36
  %v125 = vpack.c.b16 %v113, %v109
  %v126 = vpack.c.b16 %v114, %v110
  %v127 = vpack.c.b16 %v115, %v111
  %v128 = vpack.c.b16 %v116, %v112
  %v129 = vpack.c.b16 %v121, %v117
  %v130 = vpack.c.b16 %v122, %v118
  %v131 = vpack.c.b16 %v123, %v119
  %v132 = vpack.c.b16 %v124, %v120
  %v205 = vunpack.c.l.b16 %v37
  %v206 = vunpack.c.l.b16 %v38
  %v207 = vunpack.c.l.b16 %v39
  %v208 = vunpack.c.l.b16 %v40
  %v209 = vunpack.c.l.b16 %v41
  %v210 = vunpack.c.l.b16 %v42
  %v211 = vunpack.c.l.b16 %v43
  %v212 = vunpack.c.l.b16 %v44
  %v213 = vunpack.c.l.b16 %v45
  %v214 = vunpack.c.l.b16 %v46
  %v215 = vunpack.c.l.b16 %v47
  %v216 = vunpack.c.l.b16 %v48
  %v217 = vunpack.c.l.b16 %v49
  %v218 = vunpack.c.l.b16 %v50
  %v219 = vunpack.c.l.b16 %v51
  %v220 = vunpack.c.l.b16 %v52
  %v221 = vunpack.c.l.b16 %v53
  %v222 = vunpack.c.l.b16 %v54
  %v223 = vunpack.c.l.b16 %v55
  %v224 = vunpack.c.l.b16 %v56
  %v225 = vunpack.c.l.b16 %v57
  %v226 = vunpack.c.l.b16 %v58
  %v227 = vunpack.c.l.b16 %v59
  %v228 = vunpack.c.l.b16 %v60
  %v229 = vunpack.c.l.b16 %v61
  %v230 = vunpack.c.l.b16 %v62
  %v231 = vunpack.c.l.b16 %v63
  %v232 = vunpack.c.l.b16 %v64
  %v233 = vunpack.c.l.b16 %v65
  %v234 = vunpack.c.l.b16 %v66
  %v235 = vunpack.c.l.b16 %v67
  %v236 = vunpack.c.l.b16 %v68
  %v237 = vunpack.c.l.b16 %v69
  %v238 = vunpack.c.l.b16 %v70
  %v239 = vunpack.c.l.b16 %v71
  %v240 = vunpack.c.l.b16 %v72
  %v241 = vunpack.c.l.b16 %v73
  %v242 = vunpack.c.l.b16 %v74
  %v243 = vunpack.c.l.b16 %v75
  %v244 = vunpack.c.l.b16 %v76
  %v245 = vunpack.c.l.b16 %v77
  %v246 = vunpack.c.l.b16 %v78
  %v247 = vunpack.c.l.b16 %v79
  %v248 = vunpack.c.l.b16 %v80
  %v249 = vunpack.c.l.b16 %v81
  %v250 = vunpack.c.l.b16 %v82
  %v251 = vunpack.c.l.b16 %v83
  %v252 = vunpack.c.l.b16 %v84
  %v253 = vunpack.c.l.b16 %v85
  %v254 = vunpack.c.l.b16 %v86
  %v255 = vunpack.c.l.b16 %v87
  %v256 = vunpack.c.l.b16 %v88
  %v257 = vunpack.c.l.b16 %v89
  %v258 = vunpack.c.l.b16 %v90
  %v259 = vunpack.c.l.b16 %v91
  %v260 = vunpack.c.l.b16 %v92
  %v261 = vunpack.c.l.b16 %v93
  %v262 = vunpack.c.l.b16 %v94
  %v263 = vunpack.c.l.b16 %v95
  %v264 = vunpack.c.l.b16 %v96
  %v265 = vunpack.c.l.b16 %v97
  %v266 = vunpack.c.l.b16 %v98
  %v267 = vunpack.c.l.b16 %v99
  %v268 = vunpack.c.l.b16 %v100
  %v269 = vpack.c.b16 %v206, %v205
  %v270 = vpack.c.b16 %v208, %v207
  %v271 = vpack.c.b16 %v210, %v209
  %v272 = vpack.c.b16 %v212, %v211
  %v273 = vpack.c.b16 %v214, %v213
  %v274 = vpack.c.b16 %v216, %v215
  %v275 = vpack.c.b16 %v218, %v217
  %v276 = vpack.c.b16 %v220, %v219
  %v277 = vpack.c.b16 %v222, %v221
  %v278 = vpack.c.b16 %v224, %v223
  %v279 = vpack.c.b16 %v226, %v225
  %v280 = vpack.c.b16 %v228, %v227
  %v281 = vpack.c.b16 %v230, %v229
  %v282 = vpack.c.b16 %v232, %v231
  %v283 = vpack.c.b16 %v234, %v233
  %v284 = vpack.c.b16 %v236, %v235
  %v285 = vpack.c.b16 %v238, %v237
  %v286 = vpack.c.b16 %v240, %v239
  %v287 = vpack.c.b16 %v242, %v241
  %v288 = vpack.c.b16 %v244, %v243
  %v289 = vpack.c.b16 %v246, %v245
  %v290 = vpack.c.b16 %v248, %v247
  %v291 = vpack.c.b16 %v250, %v249
  %v292 = vpack.c.b16 %v252, %v251
  %v293 = vpack.c.b16 %v254, %v253
  %v294 = vpack.c.b16 %v256, %v255
  %v295 = vpack.c.b16 %v258, %v257
  %v296 = vpack.c.b16 %v260, %v259
  %v297 = vpack.c.b16 %v262, %v261
  %v298 = vpack.c.b16 %v264, %v263
  %v299 = vpack.c.b16 %v266, %v265
  %v300 = vpack.c.b16 %v268, %v267
  %333 = vmatprep.subr.bf16.mxu0 0
  %334 = vmatpush1.bf16.msra.mxu0 %v269
  %335 = vmatprep.subr.bf16.mxu0 0
  %336 = vmatpush1.bf16.msra.mxu0 %v270
  %337 = vmatprep.subr.bf16.mxu0 0
  %338 = vmatpush1.bf16.msra.mxu0 %v271
  %339 = vmatprep.subr.bf16.mxu0 0
  %340 = vmatpush1.bf16.msra.mxu0 %v272
  %341 = vmatprep.subr.bf16.mxu0 0
  %342 = vmatpush1.bf16.msra.mxu0 %v273
  %343 = vmatprep.subr.bf16.mxu0 0
  %344 = vmatpush1.bf16.msra.mxu0 %v274
  %345 = vmatprep.subr.bf16.mxu0 0
  %346 = vmatpush1.bf16.msra.mxu0 %v275
  %347 = vmatprep.subr.bf16.mxu0 0
  %348 = vmatpush1.bf16.msra.mxu0 %v276
  %349 = vmatprep.subr.bf16.mxu0 0
  %350 = vmatpush1.bf16.msra.mxu0 %v277
  %351 = vmatprep.subr.bf16.mxu0 0
  %352 = vmatpush1.bf16.msra.mxu0 %v278
  %353 = vmatprep.subr.bf16.mxu0 0
  %354 = vmatpush1.bf16.msra.mxu0 %v279
  %355 = vmatprep.subr.bf16.mxu0 0
  %356 = vmatpush1.bf16.msra.mxu0 %v280
  %357 = vmatprep.subr.bf16.mxu0 0
  %358 = vmatpush1.bf16.msra.mxu0 %v281
  %359 = vmatprep.subr.bf16.mxu0 0
  %360 = vmatpush1.bf16.msra.mxu0 %v282
  %361 = vmatprep.subr.bf16.mxu0 0
  %362 = vmatpush1.bf16.msra.mxu0 %v283
  %363 = vmatprep.subr.bf16.mxu0 0
  %364 = vmatpush1.bf16.msra.mxu0 %v284
  %365 = vmatprep.mubr.bf16.mxu0 %v126
  %366 = vmatmul.mubr.bf16.gmra.mrb[0].mxu0 %v125
  %v367 = vpop.f32.mrb[0].mxu0
  %v368 = vadd.f32 0.0, %v367
  %v369 = vpop.f32.mrb[0].mxu0
  %v370 = vpop.f32.mrb[0].mxu0
  %v371 = vadd.f32 0.0, %v370
  %v372 = vpop.f32.mrb[0].mxu0
  %373 = vmatprep.mubr.bf16.mxu0 %v130
  %374 = vmatmul.mubr.bf16.gmra.mrb[0].mxu0 %v129
  %v375 = vpop.f32.mrb[0].mxu0
  %v376 = vadd.f32 0.0, %v375
  %v377 = vpop.f32.mrb[0].mxu0
  %v378 = vpop.f32.mrb[0].mxu0
  %v379 = vadd.f32 0.0, %v378
  %v380 = vpop.f32.mrb[0].mxu0
  %381 = vdwg.mxu0
  %382 = vmatprep.subr.bf16.mxu0 0
  %383 = vmatpush1.bf16.msra.mxu0 %v285
  %384 = vmatprep.subr.bf16.mxu0 0
  %385 = vmatpush1.bf16.msra.mxu0 %v286
  %386 = vmatprep.subr.bf16.mxu0 0
  %387 = vmatpush1.bf16.msra.mxu0 %v287
  %388 = vmatprep.subr.bf16.mxu0 0
  %389 = vmatpush1.bf16.msra.mxu0 %v288
  %390 = vmatprep.subr.bf16.mxu0 0
  %391 = vmatpush1.bf16.msra.mxu0 %v289
  %392 = vmatprep.subr.bf16.mxu0 0
  %393 = vmatpush1.bf16.msra.mxu0 %v290
  %394 = vmatprep.subr.bf16.mxu0 0
  %395 = vmatpush1.bf16.msra.mxu0 %v291
  %396 = vmatprep.subr.bf16.mxu0 0
  %397 = vmatpush1.bf16.msra.mxu0 %v292
  %398 = vmatprep.subr.bf16.mxu0 0
  %399 = vmatpush1.bf16.msra.mxu0 %v293
  %400 = vmatprep.subr.bf16.mxu0 0
  %401 = vmatpush1.bf16.msra.mxu0 %v294
  %402 = vmatprep.subr.bf16.mxu0 0
  %403 = vmatpush1.bf16.msra.mxu0 %v295
  %404 = vmatprep.subr.bf16.mxu0 0
  %405 = vmatpush1.bf16.msra.mxu0 %v296
  %406 = vmatprep.subr.bf16.mxu0 0
  %407 = vmatpush1.bf16.msra.mxu0 %v297
  %408 = vmatprep.subr.bf16.mxu0 0
  %409 = vmatpush1.bf16.msra.mxu0 %v298
  %410 = vmatprep.subr.bf16.mxu0 0
  %411 = vmatpush1.bf16.msra.mxu0 %v299
  %412 = vmatprep.subr.bf16.mxu0 0
  %413 = vmatpush1.bf16.msra.mxu0 %v300
  %414 = vmatprep.mubr.bf16.mxu0 %v128
  %415 = vmatmul.mubr.bf16.gmra.mrb[0].mxu0 %v127
  %v416 = vpop.f32.mrb[0].mxu0
  %v417 = vadd.f32 %v368, %v416
  %v418 = vpop.f32.mrb[0].mxu0
  %v419 = vpop.f32.mrb[0].mxu0
  %v420 = vadd.f32 %v371, %v419
  %v421 = vpop.f32.mrb[0].mxu0
  %422 = vmatprep.mubr.bf16.mxu0 %v132
  %423 = vmatmul.mubr.bf16.gmra.mrb[0].mxu0 %v131
  %v424 = vpop.f32.mrb[0].mxu0
  %v425 = vadd.f32 %v376, %v424
  %v426 = vpop.f32.mrb[0].mxu0
  %v427 = vpop.f32.mrb[0].mxu0
  %v428 = vadd.f32 %v379, %v427
  %v429 = vpop.f32.mrb[0].mxu0
  %430 = vdwg.mxu0
  %v431 = vadd.f32 %v25, %v417
  %v432 = vadd.f32 %v26, %v420
  %v433 = vadd.f32 %v27, %v425
  %v434 = vadd.f32 %v28, %v428
  %435 = vst [vmem:[#allocation2] sm:$0xff] %v431
  %436 = vst [vmem:[#allocation2 + $0x8] sm:$0xff] %v432
  %437 = vst [vmem:[#allocation2 + $0x10] sm:$0xff] %v433
  %438 = vst [vmem:[#allocation2 + $0x18] sm:$0xff] %v434
  // Predicated region
  $region18: #{nlayer_discriminator_forward.13} parent=0 // pred_check
    %p439 = pneg %p17
  $region19: #{nlayer_discriminator_forward.13} parent=0 // pred_check_branch
    %441 = sbr.rel (%p439) target = $region21
  $region20: #{nlayer_discriminator_forward.13} parent=0 // pred_region
    %v442 = vld [vmem:[#allocation2] sm:$0xff]
    %v443 = vld [vmem:[#allocation2 + $0x8] sm:$0xff]
    %v444 = vld [vmem:[#allocation2 + $0x10] sm:$0xff]
    %v445 = vld [vmem:[#allocation2 + $0x18] sm:$0xff]
    %v446 = vld [vmem:[%s2] sm:$0x1]
    %v448 = vlaneseq
    %v449 = vshrl.u32 %v448, 7
    %v450 = vsub.s32 0, %v449
    %v451 = vrot.slane %v446, %v450
    %v453 = vadd.f32 %v442, %v451
    %v454 = vadd.f32 %v443, %v451
    %v455 = vadd.f32 %v444, %v451
    %v456 = vadd.f32 %v445, %v451
    %v457 = vpack.c.bf16 %v454, %v453
    %v458 = vpack.c.bf16 %v456, %v455
    %v461 = vunpack.c.l.b16 %v457
    %v462 = vunpack.c.h.b16 %v457
    %v463 = vunpack.c.l.b16 %v458
    %v464 = vunpack.c.h.b16 %v458
    %v465 = vpack.c.b16 %v461, %v461
    %v466 = vpack.c.b16 %v462, %v462
    %v467 = vpack.c.b16 %v463, %v463
    %v468 = vpack.c.b16 %v464, %v464
    %473 = vst [vmem:[%s3] sm:$0xf] %v465
    %474 = vst [vmem:[%s3 + $0x4] sm:$0xf] %v466
    %475 = vst [vmem:[%s3 + $0x8] sm:$0xf] %v467
    %476 = vst [vmem:[%s3 + $0xc] sm:$0xf] %v468
    %477 = vst [vmem:[%s4] sm:$0xff] 0.0
    %v478 = vadd.f32 %v453, %v454
    %v479 = vadd.f32 %v478, %v455
    %v480 = vadd.f32 %v479, %v456
    %v481 = vrot.slane %v480, 4
    %v482 = vadd.f32 %v480, %v481
    %v483 = vrot.slane %v482, 2
    %v484 = vadd.f32 %v482, %v483
    %v485 = vrot.slane %v484, 1
    %v486 = vadd.f32 %v484, %v485
    %487 = vst [vmem:[%s4] sm:$0x1] %v486
    %v488 = vmul.f32 %v453, %v453
    %v489 = vmul.f32 %v454, %v454
    %v490 = vmul.f32 %v455, %v455
    %v491 = vmul.f32 %v456, %v456
    %v492 = vadd.f32 %v488, %v489
    %v493 = vadd.f32 %v492, %v490
    %v494 = vadd.f32 %v493, %v491
    %v495 = vrot.slane %v494, 4
    %v496 = vadd.f32 %v494, %v495
    %v497 = vrot.slane %v496, 2
    %v498 = vadd.f32 %v496, %v497
    %v499 = vrot.slane %v498, 1
    %v500 = vadd.f32 %v498, %v499
    %501 = vst [vmem:[%s4 + $0x1] sm:$0x1] %v500
  $region21: #{nlayer_discriminator_forward.13} parent=0 // pred_fallthru
    _
  // Predicated region
  $region22: #{nlayer_discriminator_forward.13} parent=0 // pred_check
    _
  $region23: #{nlayer_discriminator_forward.13} parent=0 // pred_check_branch
    %503 = sbr.rel (0) target = $region25
  $region24: #{nlayer_discriminator_forward.13} parent=0 // pred_region
    _
  $region25: #{nlayer_discriminator_forward.13} parent=0 // pred_fallthru
    _
  // Predicated region
  $region26: #{nlayer_discriminator_forward.13} parent=0 // pred_check
    _
  $region27: #{nlayer_discriminator_forward.13} parent=0 // pred_check_branch
    %505 = sbr.rel (0) target = $region29
  $region28: #{nlayer_discriminator_forward.13} parent=0 // pred_region
    _
  $region29: #{nlayer_discriminator_forward.13} parent=0 // pred_fallthru
    _
  // Predicated region
  $region30: #{nlayer_discriminator_forward.13} parent=0 // pred_check
    _
  $region31: #{nlayer_discriminator_forward.13} parent=0 // pred_check_branch
    %507 = sbr.rel (0) target = $region33
  $region32: #{nlayer_discriminator_forward.13} parent=0 // pred_region
    _
  $region33: #{nlayer_discriminator_forward.13} parent=0 // pred_fallthru
    _
  // Predicated region
  $region34: #{nlayer_discriminator_forward.13} parent=0 // pred_check
    _
  $region35: #{nlayer_discriminator_forward.13} parent=0 // pred_check_branch
    %509 = sbr.rel (0) target = $region37
  $region36: #{nlayer_discriminator_forward.13} parent=0 // pred_region
    _
  $region37: #{nlayer_discriminator_forward.13} parent=0 // pred_fallthru
    _

// kernel: nlayer_discriminator_forward.15
$region0: #{nlayer_discriminator_forward.15}
  #allocation0 [shape = 'u32[]', space=smem, size = 0x4, offset = 0x4, fixed_abs, tag = 'smem constant byte address 0x4 - core index']
  #allocation1 [shape = 'u32[144,128]{1,0:T(1,128)}', space=vmem, size = 0x12000, scoped, tag = 'internal scratch']
  #allocation2 [shape = 'f32[64,128]{1,0:T(8,128)}', space=vmem, size = 0x8000, scoped, tag = 'scratch operand']
  %s0 = inlined_call_operand.vmem [shape: bf16[64,1024], index: 0, kind: input, shape index: {}]
  %s1 = inlined_call_operand.vmem [shape: bf16[1024,128], index: 1, kind: input, shape index: {}]
  %s2 = inlined_call_operand.vmem [shape: f32[1,128], index: 2, kind: input, shape index: {}]
  %s3 = inlined_call_operand.vmem [shape: f32[64,128], index: 3, kind: output, shape index: {0}]
  %s4 = inlined_call_operand.hbm [shape: f32[8,128], index: 4, kind: output, shape index: {1}]
  %5 = xla_tuple %s3, %s4
  %s6 = sld [smem:[#allocation0]]
  $region84: #{nlayer_discriminator_forward.15} parent=0
    _
  %s8 = ssub.s32 1, %s6
  %s9 = scalar_select 0, %s8, %s6
  $region1: #{nlayer_discriminator_forward.15} parent=0
    #allocation3 [shape = 'u8[131072]{0}', space=vmem, size = 0x20000, scoped, tag = 'input window, operand 0']
    #allocation4 [shape = 'u8[4096]{0}', space=vmem, size = 0x1000, scoped, tag = 'output window, operand 1, single buffered']
    #allocation5 [shape = 's32[2]{0}', space=sflag, size = 0x8, scoped, tag = 'scoped memory for nlayer_discriminator_forward.15']
    %10 = vsyncpa [#allocation5], 0
    loop: start=0, step=1, limit=4
    $region2: #{nlayer_discriminator_forward.15} parent=1 // loop_pre_header
      _
    $region3: #{nlayer_discriminator_forward.15} parent=1 // loop_header
      %s12 = sphi 0, %s16
      %p13 = scmp.ge.s32.totalorder %s12, 4
      %s19 = sphi 0, %s38
      %s20 = sphi 0, %s34
      %s21 = sphi 0, %s30
      %s22 = sphi 0, %s19
      %s23 = sphi 0, %s20
      %s24 = sphi 0, %s21
      %s25 = sphi 0, %s22
      %s26 = sphi 0, %s23
      %s27 = sphi 0, %s24
      %s43 = sphi 0, %s45
      %s46 = sphi 0, %s43
      %s47 = sphi 0, %s46
      %s63 = sphi 0, %s47
      %s71 = sphi 0, %s73
      %s74 = sphi 0, %s71
      %s75 = sphi 0, %s74
      %s91 = sphi 0, %s75
      %s97 = sphi 0, %s99
      %s100 = sphi 0, %s97
      %s101 = sphi 0, %s100
      %s117 = sphi 0, %s101
      %s125 = sphi 0, %s127
      %s128 = sphi 0, %s125
      %s129 = sphi 0, %s128
      %s145 = sphi 0, %s129
      %s153 = sphi 0, %s155
      %s156 = sphi 0, %s153
      %s157 = sphi 0, %s156
      %s173 = sphi 0, %s157
    $region4: #{nlayer_discriminator_forward.15} parent=1 // loop_header_branch
      %15 = sbr.rel (%p13) target = $region8
    $region5: #{nlayer_discriminator_forward.15} parent=1 // loop_body
      %s17 = ssub.s32 %s12, 1
      %s18 = ssub.s32 %s12, 2
      %s28 = sadd.s32 1, %s21
      %p29 = scmp.ge.s32.totalorder %s28, 2
      %s30 = scalar_select %p29, 0, %s28
      %s31 = sadd.s32 1, %s20
      %s32 = scalar_select %p29, %s31, %s20
      %p33 = scmp.ge.s32.totalorder %s32, 1
      %s34 = scalar_select %p33, 0, %s32
      %s35 = sadd.s32 1, %s19
      %s36 = scalar_select %p33, %s35, %s19
      %p37 = scmp.ge.s32.totalorder %s36, 1
      %s38 = scalar_select %p37, 0, %s36
      %s39 = ssub.s32 %s19, %s38
      %s40 = ssub.s32 %s21, %s30
      %s41 = sor.u32 %s39, %s40
      %p42 = scmp.eq.s32.totalorder %s41, 0
      %s44 = sadd.s32 %s43, 1
      %s45 = scalar_select %p42, %s43, %s44
      %p48 = pneg %p42
      %p49 = scmp.eq.s32.totalorder %s12, 1
      %p50 = por %p48, %p49
      %p51 = scmp.ne.s32.totalorder %s43, %s46
      %p52 = scmp.eq.s32.totalorder %s12, 0
      %p53 = por %p51, %p52
      %p54 = scmp.ne.s32.totalorder %s43, %s46
      %p55 = scmp.eq.s32.totalorder %s17, 1
      %p56 = por %p54, %p55
      %p57 = scmp.ne.s32.totalorder %s46, %s47
      %p58 = scmp.eq.s32.totalorder %s17, 0
      %p59 = por %p57, %p58
      %p60 = scmp.ne.s32.totalorder %s46, %s47
      %p61 = scmp.eq.s32.totalorder %s18, 1
      %p62 = por %p60, %p61
      %p64 = scmp.ne.s32.totalorder %s47, %s63
      %p65 = scmp.eq.s32.totalorder %s18, 0
      %p66 = por %p64, %p65
      %s67 = ssub.s32 %s21, %s30
      %s68 = ssub.s32 %s20, %s34
      %s69 = sor.u32 %s67, %s68
      %p70 = scmp.eq.s32.totalorder %s69, 0
      %s72 = sadd.s32 %s71, 1
      %s73 = scalar_select %p70, %s71, %s72
      %p76 = pneg %p70
      %p77 = scmp.eq.s32.totalorder %s12, 1
      %p78 = por %p76, %p77
      %p79 = scmp.ne.s32.totalorder %s71, %s74
      %p80 = scmp.eq.s32.totalorder %s12, 0
      %p81 = por %p79, %p80
      %p82 = scmp.ne.s32.totalorder %s71, %s74
      %p83 = scmp.eq.s32.totalorder %s17, 1
      %p84 = por %p82, %p83
      %p85 = scmp.ne.s32.totalorder %s74, %s75
      %p86 = scmp.eq.s32.totalorder %s17, 0
      %p87 = por %p85, %p86
      %p88 = scmp.ne.s32.totalorder %s74, %s75
      %p89 = scmp.eq.s32.totalorder %s18, 1
      %p90 = por %p88, %p89
      %p92 = scmp.ne.s32.totalorder %s75, %s91
      %p93 = scmp.eq.s32.totalorder %s18, 0
      %p94 = por %p92, %p93
      %s95 = ssub.s32 %s20, %s34
      %p96 = scmp.eq.s32.totalorder %s95, 0
      %s98 = sadd.s32 %s97, 1
      %s99 = scalar_select %p96, %s97, %s98
      %p102 = pneg %p96
      %p103 = scmp.eq.s32.totalorder %s12, 1
      %p104 = por %p102, %p103
      %p105 = scmp.ne.s32.totalorder %s97, %s100
      %p106 = scmp.eq.s32.totalorder %s12, 0
      %p107 = por %p105, %p106
      %p108 = scmp.ne.s32.totalorder %s97, %s100
      %p109 = scmp.eq.s32.totalorder %s17, 1
      %p110 = por %p108, %p109
      %p111 = scmp.ne.s32.totalorder %s100, %s101
      %p112 = scmp.eq.s32.totalorder %s17, 0
      %p113 = por %p111, %p112
      %p114 = scmp.ne.s32.totalorder %s100, %s101
      %p115 = scmp.eq.s32.totalorder %s18, 1
      %p116 = por %p114, %p115
      %p118 = scmp.ne.s32.totalorder %s101, %s117
      %p119 = scmp.eq.s32.totalorder %s18, 0
      %p120 = por %p118, %p119
      %s121 = ssub.s32 %s19, %s38
      %s122 = ssub.s32 %s20, %s34
      %s123 = sor.u32 %s121, %s122
      %p124 = scmp.eq.s32.totalorder %s123, 0
      %s126 = sadd.s32 %s125, 1
      %s127 = scalar_select %p124, %s125, %s126
      %p130 = pneg %p124
      %p131 = scmp.eq.s32.totalorder %s12, 1
      %p132 = por %p130, %p131
      %p133 = scmp.ne.s32.totalorder %s125, %s128
      %p134 = scmp.eq.s32.totalorder %s12, 0
      %p135 = por %p133, %p134
      %p136 = scmp.ne.s32.totalorder %s125, %s128
      %p137 = scmp.eq.s32.totalorder %s17, 1
      %p138 = por %p136, %p137
      %p139 = scmp.ne.s32.totalorder %s128, %s129
      %p140 = scmp.eq.s32.totalorder %s17, 0
      %p141 = por %p139, %p140
      %p142 = scmp.ne.s32.totalorder %s128, %s129
      %p143 = scmp.eq.s32.totalorder %s18, 1
      %p144 = por %p142, %p143
      %p146 = scmp.ne.s32.totalorder %s129, %s145
      %p147 = scmp.eq.s32.totalorder %s18, 0
      %p148 = por %p146, %p147
      %s149 = ssub.s32 %s19, %s38
      %s150 = ssub.s32 %s20, %s34
      %s151 = sor.u32 %s149, %s150
      %p152 = scmp.eq.s32.totalorder %s151, 0
      %s154 = sadd.s32 %s153, 1
      %s155 = scalar_select %p152, %s153, %s154
      %p158 = pneg %p152
      %p159 = scmp.eq.s32.totalorder %s12, 1
      %p160 = por %p158, %p159
      %p161 = scmp.ne.s32.totalorder %s153, %s156
      %p162 = scmp.eq.s32.totalorder %s12, 0
      %p163 = por %p161, %p162
      %p164 = scmp.ne.s32.totalorder %s153, %s156
      %p165 = scmp.eq.s32.totalorder %s17, 1
      %p166 = por %p164, %p165
      %p167 = scmp.ne.s32.totalorder %s156, %s157
      %p168 = scmp.eq.s32.totalorder %s17, 0
      %p169 = por %p167, %p168
      %p170 = scmp.ne.s32.totalorder %s156, %s157
      %p171 = scmp.eq.s32.totalorder %s18, 1
      %p172 = por %p170, %p171
      %p174 = scmp.ne.s32.totalorder %s157, %s173
      %p175 = scmp.eq.s32.totalorder %s18, 0
      %p176 = por %p174, %p175
      %p177 = scmp.le.s32.totalorder 1, %s12
      %p178 = scmp.lt.s32.totalorder %s12, 3
      %p179 = pnand %p177, %p178
      %p180 = pneg %p179
      // Predicated region
      $region9: #{nlayer_discriminator_forward.15} parent=5 // pred_check
        _
      $region10: #{nlayer_discriminator_forward.15} parent=5 // pred_check_branch
        %182 = sbr.rel (%p179) target = $region12
      $region11: #{nlayer_discriminator_forward.15} parent=5 // pred_region
        %s183 = ssub.s32 %s12, 1
        // Predicated region
        $region13: #{nlayer_discriminator_forward.15} parent=11 // pred_check
          %p184 = pneg %p113
        $region14: #{nlayer_discriminator_forward.15} parent=11 // pred_check_branch
          %186 = sbr.rel (%p184) target = $region16
        $region15: #{nlayer_discriminator_forward.15} parent=11 // pred_region
          %p187 = scmp.lt.s32.totalorder %s23, 0
          %s188 = scalar_select %p187, %s23, 0
          %s189 = scalar_lea.vmem %s2, %s188
        $region16: #{nlayer_discriminator_forward.15} parent=11 // pred_fallthru
          _
      $region12: #{nlayer_discriminator_forward.15} parent=5 // pred_fallthru
        _
      %p190 = scmp.lt.s32.totalorder %s12, 2
      // Predicated region
      $region17: #{nlayer_discriminator_forward.15} parent=5 // pred_check
        %p191 = pneg %p190
      $region18: #{nlayer_discriminator_forward.15} parent=5 // pred_check_branch
        %193 = sbr.rel (%p191) target = $region20
      $region19: #{nlayer_discriminator_forward.15} parent=5 // pred_region
        // Predicated region
        $region21: #{nlayer_discriminator_forward.15} parent=19 // pred_check
          %p194 = pneg %p53
        $region22: #{nlayer_discriminator_forward.15} parent=19 // pred_check_branch
          %196 = sbr.rel (%p194) target = $region24
        $region23: #{nlayer_discriminator_forward.15} parent=19 // pred_region
          %s197 = sand.u32 %s43, 1
          %s198 = sand.u32 %s43, 1
          %s199 = smul.addr %s198, 128
          %s200 = scalar_lea.vmem [#allocation3], %s199
          %s201 = smul.u32 8, %s19
          %s202 = smul.u32 4, %s21
          %s203 = smul.addr %s201, 8
          %s204 = sadd.s32 %s202, %s203
          %s205 = smul.addr %s204, 4
          %s206 = scalar_lea.vmem %s0, %s205
          // Predicated region
          $region25: #{nlayer_discriminator_forward.15} parent=23 // pred_check
            _
          $region26: #{nlayer_discriminator_forward.15} parent=23 // pred_check_branch
            %208 = sbr.rel (0) target = $region28
          $region27: #{nlayer_discriminator_forward.15} parent=23 // pred_region
            // Predicated region
            $region29: #{nlayer_discriminator_forward.15} parent=27 // pred_check
              _
            $region30: #{nlayer_discriminator_forward.15} parent=27 // pred_check_branch
              %210 = sbr.rel (0) target = $region32
            $region31: #{nlayer_discriminator_forward.15} parent=27 // pred_region
              loop: start=0, step=1, limit=1
              $region33: #{nlayer_discriminator_forward.15} parent=31 // loop_pre_header
                _
              $region34: #{nlayer_discriminator_forward.15} parent=31 // loop_header
                %s212 = sphi 0, %s216
                %p213 = scmp.ge.s32.totalorder %s212, 1
                %s217 = sphi %s206, %s206
                %s218 = sphi %s200, %s200
              $region35: #{nlayer_discriminator_forward.15} parent=31 // loop_header_branch
                %215 = sbr.rel (%p213) target = $region39
              $region36: #{nlayer_discriminator_forward.15} parent=31 // loop_body
                %v219 = vld [vmem:[%s217] sm:$0xff]
                %220 = vst [vmem:[%s218] sm:$0xff] %v219
                %v221 = vld [vmem:[%s217 + $0x8] sm:$0xff]
                %222 = vst [vmem:[%s218 + $0x8] sm:$0xff] %v221
                %v223 = vld [vmem:[%s217 + $0x20] sm:$0xff]
                %224 = vst [vmem:[%s218 + $0x10] sm:$0xff] %v223
                %v225 = vld [vmem:[%s217 + $0x28] sm:$0xff]
                %226 = vst [vmem:[%s218 + $0x18] sm:$0xff] %v225
                %v227 = vld [vmem:[%s217 + $0x40] sm:$0xff]
                %228 = vst [vmem:[%s218 + $0x20] sm:$0xff] %v227
                %v229 = vld [vmem:[%s217 + $0x48] sm:$0xff]
                %230 = vst [vmem:[%s218 + $0x28] sm:$0xff] %v229
                %v231 = vld [vmem:[%s217 + $0x60] sm:$0xff]
                %232 = vst [vmem:[%s218 + $0x30] sm:$0xff] %v231
                %v233 = vld [vmem:[%s217 + $0x68] sm:$0xff]
                %234 = vst [vmem:[%s218 + $0x38] sm:$0xff] %v233
                %v235 = vld [vmem:[%s217 + $0x80] sm:$0xff]
                %236 = vst [vmem:[%s218 + $0x40] sm:$0xff] %v235
                %v237 = vld [vmem:[%s217 + $0x88] sm:$0xff]
                %238 = vst [vmem:[%s218 + $0x48] sm:$0xff] %v237
                %v239 = vld [vmem:[%s217 + $0xa0] sm:$0xff]
                %240 = vst [vmem:[%s218 + $0x50] sm:$0xff] %v239
                %v241 = vld [vmem:[%s217 + $0xa8] sm:$0xff]
                %242 = vst [vmem:[%s218 + $0x58] sm:$0xff] %v241
                %v243 = vld [vmem:[%s217 + $0xc0] sm:$0xff]
                %244 = vst [vmem:[%s218 + $0x60] sm:$0xff] %v243
                %v245 = vld [vmem:[%s217 + $0xc8] sm:$0xff]
                %246 = vst [vmem:[%s218 + $0x68] sm:$0xff] %v245
                %v247 = vld [vmem:[%s217 + $0xe0] sm:$0xff]
                %248 = vst [vmem:[%s218 + $0x70] sm:$0xff] %v247
                %v249 = vld [vmem:[%s217 + $0xe8] sm:$0xff]
                %250 = vst [vmem:[%s218 + $0x78] sm:$0xff] %v249
              $region37: #{nlayer_discriminator_forward.15} parent=31 // loop_footer
                %s216 = sadd.s32 1, %s212
              $region38: #{nlayer_discriminator_forward.15} parent=31 // loop_footer_branch
                %211 = sbr.rel target = $region34
              $region39: #{nlayer_discriminator_forward.15} parent=31 // loop_exit
                _
            $region32: #{nlayer_discriminator_forward.15} parent=27 // pred_fallthru
              _
            // Predicated region
            $region40: #{nlayer_discriminator_forward.15} parent=27 // pred_check
              _
            $region41: #{nlayer_discriminator_forward.15} parent=27 // pred_check_branch
              %252 = sbr.rel target = $region43
            $region42: #{nlayer_discriminator_forward.15} parent=27 // pred_region
              _
            $region43: #{nlayer_discriminator_forward.15} parent=27 // pred_fallthru
              _
          $region28: #{nlayer_discriminator_forward.15} parent=23 // pred_fallthru
            _
          %253 = vnop
        $region24: #{nlayer_discriminator_forward.15} parent=19 // pred_fallthru
          _
        // Predicated region
        $region44: #{nlayer_discriminator_forward.15} parent=19 // pred_check
          %p254 = pneg %p81
        $region45: #{nlayer_discriminator_forward.15} parent=19 // pred_check_branch
          %256 = sbr.rel (%p254) target = $region47
        $region46: #{nlayer_discriminator_forward.15} parent=19 // pred_region
          %s257 = smul.u32 64, %s21
          %p258 = scmp.lt.s32.totalorder %s257, 127
          %s259 = scalar_select %p258, %s257, 127
          %p260 = scmp.lt.s32.totalorder %s20, 0
          %s261 = scalar_select %p260, %s20, 0
          %s262 = sadd.s32 %s261, %s259
          %s263 = smul.addr %s262, 4
          %s264 = scalar_lea.vmem %s1, %s263
          %s265 = smul.u32 64, %s21
        $region47: #{nlayer_discriminator_forward.15} parent=19 // pred_fallthru
          _
      $region20: #{nlayer_discriminator_forward.15} parent=5 // pred_fallthru
        _
      %p266 = scmp.le.s32.totalorder 1, %s12
      %p267 = scmp.lt.s32.totalorder %s12, 3
      %p268 = pnand %p266, %p267
      %p269 = pneg %p268
      // Predicated region
      $region48: #{nlayer_discriminator_forward.15} parent=5 // pred_check
        _
      $region49: #{nlayer_discriminator_forward.15} parent=5 // pred_check_branch
        %271 = sbr.rel (%p268) target = $region51
      $region50: #{nlayer_discriminator_forward.15} parent=5 // pred_region
        %s272 = ssub.s32 %s12, 1
        %s273 = sand.u32 %s46, 1
        %s274 = sand.u32 %s46, 1
        %s275 = smul.addr %s274, 128
        %s276 = scalar_lea.vmem [#allocation3], %s275
        // Predicated region
        $region52: #{nlayer_discriminator_forward.15} parent=50 // pred_check
          %p277 = pneg %p59
        $region53: #{nlayer_discriminator_forward.15} parent=50 // pred_check_branch
          %279 = sbr.rel (%p277) target = $region55
        $region54: #{nlayer_discriminator_forward.15} parent=50 // pred_region
          _
        $region55: #{nlayer_discriminator_forward.15} parent=50 // pred_fallthru
          _
        %s280 = sand.u32 %s46, 1
        %s281 = sand.u32 %s46, 1
        %s282 = smul.addr %s281, 128
        %s283 = scalar_lea.vmem [#allocation3], %s282
        %p284 = pneg %p59
        %p285 = pneg %p56
        %s286 = smul.u32 64, %s24
        %p287 = scmp.lt.s32.totalorder %s286, 127
        %s288 = scalar_select %p287, %s286, 127
        %p289 = scmp.lt.s32.totalorder %s23, 0
        %s290 = scalar_select %p289, %s23, 0
        %s291 = sadd.s32 %s290, %s288
        %s292 = smul.addr %s291, 4
        %s293 = scalar_lea.vmem %s1, %s292
        %p294 = pneg %p87
        %p295 = pneg %p84
        %p296 = scmp.lt.s32.totalorder %s23, 0
        %s297 = scalar_select %p296, %s23, 0
        %s298 = scalar_lea.vmem %s2, %s297
        %p299 = pneg %p113
        %p300 = pneg %p110
        %p301 = pneg %p141
        %p302 = pneg %p138
        %s303 = smul.u32 8, %s22
        %p304 = scmp.lt.s32.totalorder %s303, 7
        %s305 = scalar_select %p304, %s303, 7
        %p306 = scmp.lt.s32.totalorder %s23, 0
        %s307 = scalar_select %p306, %s23, 0
        %s308 = sadd.s32 %s307, %s305
        %s309 = smul.addr %s308, 8
        %s310 = scalar_lea.vmem %s3, %s309
        %p311 = pneg %p169
        %p312 = pneg %p166
        %s313 = smul.u32 8, %s22
        %s314 = smul.u32 4, %s24
        %s315 = smul.u32 64, %s24
        %p316 = scmp.lt.s32.totalorder %s315, 127
        %s317 = scalar_select %p316, %s315, 127
        %p318 = scmp.lt.s32.totalorder %s23, 0
        %s319 = scalar_select %p318, %s23, 0
        %s320 = sadd.s32 %s319, %s317
        %s321 = smul.addr %s320, 4
        %s322 = scalar_lea.vmem %s1, %s321
        %s323 = smul.u32 64, %s24
        %p324 = scmp.lt.s32.totalorder %s23, 0
        %s325 = scalar_select %p324, %s23, 0
        %s326 = scalar_lea.vmem %s2, %s325
        %s327 = smul.u32 8, %s22
        %p328 = scmp.lt.s32.totalorder %s327, 7
        %s329 = scalar_select %p328, %s327, 7
        %p330 = scmp.lt.s32.totalorder %s23, 0
        %s331 = scalar_select %p330, %s23, 0
        %s332 = sadd.s32 %s331, %s329
        %s333 = smul.addr %s332, 8
        %s334 = scalar_lea.vmem %s3, %s333
        %s335 = smul.u32 8, %s22
        %p337 = scmp.eq.s32.totalorder %s24, 0
        // Predicated region
        $region56: #{nlayer_discriminator_forward.15} parent=50 // pred_check
          %p338 = pneg %p337
        $region57: #{nlayer_discriminator_forward.15} parent=50 // pred_check_branch
          %340 = sbr.rel (%p338) target = $region59
        $region58: #{nlayer_discriminator_forward.15} parent=50 // pred_region
          %341 = vst [vmem:[#allocation2] sm:$0xff] 0.0
          %342 = vst [vmem:[#allocation2 + $0x8] sm:$0xff] 0.0
          %343 = vst [vmem:[#allocation2 + $0x10] sm:$0xff] 0.0
          %344 = vst [vmem:[#allocation2 + $0x18] sm:$0xff] 0.0
          %345 = vst [vmem:[#allocation2 + $0x20] sm:$0xff] 0.0
          %346 = vst [vmem:[#allocation2 + $0x28] sm:$0xff] 0.0
          %347 = vst [vmem:[#allocation2 + $0x30] sm:$0xff] 0.0
          %348 = vst [vmem:[#allocation2 + $0x38] sm:$0xff] 0.0
        $region59: #{nlayer_discriminator_forward.15} parent=50 // pred_fallthru
          _
        %v349 = vld [vmem:[#allocation2] sm:$0xff]
        %v350 = vld [vmem:[#allocation2 + $0x8] sm:$0xff]
        %v351 = vld [vmem:[#allocation2 + $0x10] sm:$0xff]
        %v352 = vld [vmem:[#allocation2 + $0x18] sm:$0xff]
        %v353 = vld [vmem:[#allocation2 + $0x20] sm:$0xff]
        %v354 = vld [vmem:[#allocation2 + $0x28] sm:$0xff]
        %v355 = vld [vmem:[#allocation2 + $0x30] sm:$0xff]
        %v356 = vld [vmem:[#allocation2 + $0x38] sm:$0xff]
        %v357 = vld [vmem:[%s276] sm:$0xff]
        %v358 = vld [vmem:[%s276 + $0x8] sm:$0xff]
        %v359 = vld [vmem:[%s276 + $0x10] sm:$0xff]
        %v360 = vld [vmem:[%s276 + $0x18] sm:$0xff]
        %v361 = vld [vmem:[%s276 + $0x20] sm:$0xff]
        %v362 = vld [vmem:[%s276 + $0x28] sm:$0xff]
        %v363 = vld [vmem:[%s276 + $0x30] sm:$0xff]
        %v364 = vld [vmem:[%s276 + $0x38] sm:$0xff]
        %v365 = vld [vmem:[%s276 + $0x40] sm:$0xff]
        %v366 = vld [vmem:[%s276 + $0x48] sm:$0xff]
        %v367 = vld [vmem:[%s276 + $0x50] sm:$0xff]
        %v368 = vld [vmem:[%s276 + $0x58] sm:$0xff]
        %v369 = vld [vmem:[%s276 + $0x60] sm:$0xff]
        %v370 = vld [vmem:[%s276 + $0x68] sm:$0xff]
        %v371 = vld [vmem:[%s276 + $0x70] sm:$0xff]
        %v372 = vld [vmem:[%s276 + $0x78] sm:$0xff]
        %v373 = vld [vmem:[%s322] sm:$0xf]
        %v374 = vld [vmem:[%s322 + $0x4] sm:$0xf]
        %v375 = vld [vmem:[%s322 + $0x8] sm:$0xf]
        %v376 = vld [vmem:[%s322 + $0xc] sm:$0xf]
        %v377 = vld [vmem:[%s322 + $0x10] sm:$0xf]
        %v378 = vld [vmem:[%s322 + $0x14] sm:$0xf]
        %v379 = vld [vmem:[%s322 + $0x18] sm:$0xf]
        %v380 = vld [vmem:[%s322 + $0x1c] sm:$0xf]
        %v381 = vld [vmem:[%s322 + $0x20] sm:$0xf]
        %v382 = vld [vmem:[%s322 + $0x24] sm:$0xf]
        %v383 = vld [vmem:[%s322 + $0x28] sm:$0xf]
        %v384 = vld [vmem:[%s322 + $0x2c] sm:$0xf]
        %v385 = vld [vmem:[%s322 + $0x30] sm:$0xf]
        %v386 = vld [vmem:[%s322 + $0x34] sm:$0xf]
        %v387 = vld [vmem:[%s322 + $0x38] sm:$0xf]
        %v388 = vld [vmem:[%s322 + $0x3c] sm:$0xf]
        %v389 = vld [vmem:[%s322 + $0x40] sm:$0xf]
        %v390 = vld [vmem:[%s322 + $0x44] sm:$0xf]
        %v391 = vld [vmem:[%s322 + $0x48] sm:$0xf]
        %v392 = vld [vmem:[%s322 + $0x4c] sm:$0xf]
        %v393 = vld [vmem:[%s322 + $0x50] sm:$0xf]
        %v394 = vld [vmem:[%s322 + $0x54] sm:$0xf]
        %v395 = vld [vmem:[%s322 + $0x58] sm:$0xf]
        %v396 = vld [vmem:[%s322 + $0x5c] sm:$0xf]
        %v397 = vld [vmem:[%s322 + $0x60] sm:$0xf]
        %v398 = vld [vmem:[%s322 + $0x64] sm:$0xf]
        %v399 = vld [vmem:[%s322 + $0x68] sm:$0xf]
        %v400 = vld [vmem:[%s322 + $0x6c] sm:$0xf]
        %v401 = vld [vmem:[%s322 + $0x70] sm:$0xf]
        %v402 = vld [vmem:[%s322 + $0x74] sm:$0xf]
        %v403 = vld [vmem:[%s322 + $0x78] sm:$0xf]
        %v404 = vld [vmem:[%s322 + $0x7c] sm:$0xf]
        %v405 = vld [vmem:[%s322 + $0x80] sm:$0xf]
        %v406 = vld [vmem:[%s322 + $0x84] sm:$0xf]
        %v407 = vld [vmem:[%s322 + $0x88] sm:$0xf]
        %v408 = vld [vmem:[%s322 + $0x8c] sm:$0xf]
        %v409 = vld [vmem:[%s322 + $0x90] sm:$0xf]
        %v410 = vld [vmem:[%s322 + $0x94] sm:$0xf]
        %v411 = vld [vmem:[%s322 + $0x98] sm:$0xf]
        %v412 = vld [vmem:[%s322 + $0x9c] sm:$0xf]
        %v413 = vld [vmem:[%s322 + $0xa0] sm:$0xf]
        %v414 = vld [vmem:[%s322 + $0xa4] sm:$0xf]
        %v415 = vld [vmem:[%s322 + $0xa8] sm:$0xf]
        %v416 = vld [vmem:[%s322 + $0xac] sm:$0xf]
        %v417 = vld [vmem:[%s322 + $0xb0] sm:$0xf]
        %v418 = vld [vmem:[%s322 + $0xb4] sm:$0xf]
        %v419 = vld [vmem:[%s322 + $0xb8] sm:$0xf]
        %v420 = vld [vmem:[%s322 + $0xbc] sm:$0xf]
        %v421 = vld [vmem:[%s322 + $0xc0] sm:$0xf]
        %v422 = vld [vmem:[%s322 + $0xc4] sm:$0xf]
        %v423 = vld [vmem:[%s322 + $0xc8] sm:$0xf]
        %v424 = vld [vmem:[%s322 + $0xcc] sm:$0xf]
        %v425 = vld [vmem:[%s322 + $0xd0] sm:$0xf]
        %v426 = vld [vmem:[%s322 + $0xd4] sm:$0xf]
        %v427 = vld [vmem:[%s322 + $0xd8] sm:$0xf]
        %v428 = vld [vmem:[%s322 + $0xdc] sm:$0xf]
        %v429 = vld [vmem:[%s322 + $0xe0] sm:$0xf]
        %v430 = vld [vmem:[%s322 + $0xe4] sm:$0xf]
        %v431 = vld [vmem:[%s322 + $0xe8] sm:$0xf]
        %v432 = vld [vmem:[%s322 + $0xec] sm:$0xf]
        %v433 = vld [vmem:[%s322 + $0xf0] sm:$0xf]
        %v434 = vld [vmem:[%s322 + $0xf4] sm:$0xf]
        %v435 = vld [vmem:[%s322 + $0xf8] sm:$0xf]
        %v436 = vld [vmem:[%s322 + $0xfc] sm:$0xf]
        %v453 = vunpack.c.l.b16 %v357
        %v454 = vunpack.c.h.b16 %v357
        %v455 = vunpack.c.l.b16 %v358
        %v456 = vunpack.c.h.b16 %v358
        %v457 = vunpack.c.l.b16 %v359
        %v458 = vunpack.c.h.b16 %v359
        %v459 = vunpack.c.l.b16 %v360
        %v460 = vunpack.c.h.b16 %v360
        %v461 = vunpack.c.l.b16 %v361
        %v462 = vunpack.c.h.b16 %v361
        %v463 = vunpack.c.l.b16 %v362
        %v464 = vunpack.c.h.b16 %v362
        %v465 = vunpack.c.l.b16 %v363
        %v466 = vunpack.c.h.b16 %v363
        %v467 = vunpack.c.l.b16 %v364
        %v468 = vunpack.c.h.b16 %v364
        %v469 = vunpack.c.l.b16 %v365
        %v470 = vunpack.c.h.b16 %v365
        %v471 = vunpack.c.l.b16 %v366
        %v472 = vunpack.c.h.b16 %v366
        %v473 = vunpack.c.l.b16 %v367
        %v474 = vunpack.c.h.b16 %v367
        %v475 = vunpack.c.l.b16 %v368
        %v476 = vunpack.c.h.b16 %v368
        %v477 = vunpack.c.l.b16 %v369
        %v478 = vunpack.c.h.b16 %v369
        %v479 = vunpack.c.l.b16 %v370
        %v480 = vunpack.c.h.b16 %v370
        %v481 = vunpack.c.l.b16 %v371
        %v482 = vunpack.c.h.b16 %v371
        %v483 = vunpack.c.l.b16 %v372
        %v484 = vunpack.c.h.b16 %v372
        %v485 = vpack.c.b16 %v457, %v453
        %v486 = vpack.c.b16 %v458, %v454
        %v487 = vpack.c.b16 %v459, %v455
        %v488 = vpack.c.b16 %v460, %v456
        %v489 = vpack.c.b16 %v465, %v461
        %v490 = vpack.c.b16 %v466, %v462
        %v491 = vpack.c.b16 %v467, %v463
        %v492 = vpack.c.b16 %v468, %v464
        %v493 = vpack.c.b16 %v473, %v469
        %v494 = vpack.c.b16 %v474, %v470
        %v495 = vpack.c.b16 %v475, %v471
        %v496 = vpack.c.b16 %v476, %v472
        %v497 = vpack.c.b16 %v481, %v477
        %v498 = vpack.c.b16 %v482, %v478
        %v499 = vpack.c.b16 %v483, %v479
        %v500 = vpack.c.b16 %v484, %v480
        %v581 = vunpack.c.l.b16 %v373
        %v582 = vunpack.c.l.b16 %v374
        %v583 = vunpack.c.l.b16 %v375
        %v584 = vunpack.c.l.b16 %v376
        %v585 = vunpack.c.l.b16 %v377
        %v586 = vunpack.c.l.b16 %v378
        %v587 = vunpack.c.l.b16 %v379
        %v588 = vunpack.c.l.b16 %v380
        %v589 = vunpack.c.l.b16 %v381
        %v590 = vunpack.c.l.b16 %v382
        %v591 = vunpack.c.l.b16 %v383
        %v592 = vunpack.c.l.b16 %v384
        %v593 = vunpack.c.l.b16 %v385
        %v594 = vunpack.c.l.b16 %v386
        %v595 = vunpack.c.l.b16 %v387
        %v596 = vunpack.c.l.b16 %v388
        %v597 = vunpack.c.l.b16 %v389
        %v598 = vunpack.c.l.b16 %v390
        %v599 = vunpack.c.l.b16 %v391
        %v600 = vunpack.c.l.b16 %v392
        %v601 = vunpack.c.l.b16 %v393
        %v602 = vunpack.c.l.b16 %v394
        %v603 = vunpack.c.l.b16 %v395
        %v604 = vunpack.c.l.b16 %v396
        %v605 = vunpack.c.l.b16 %v397
        %v606 = vunpack.c.l.b16 %v398
        %v607 = vunpack.c.l.b16 %v399
        %v608 = vunpack.c.l.b16 %v400
        %v609 = vunpack.c.l.b16 %v401
        %v610 = vunpack.c.l.b16 %v402
        %v611 = vunpack.c.l.b16 %v403
        %v612 = vunpack.c.l.b16 %v404
        %v613 = vunpack.c.l.b16 %v405
        %v614 = vunpack.c.l.b16 %v406
        %v615 = vunpack.c.l.b16 %v407
        %v616 = vunpack.c.l.b16 %v408
        %v617 = vunpack.c.l.b16 %v409
        %v618 = vunpack.c.l.b16 %v410
        %v619 = vunpack.c.l.b16 %v411
        %v620 = vunpack.c.l.b16 %v412
        %v621 = vunpack.c.l.b16 %v413
        %v622 = vunpack.c.l.b16 %v414
        %v623 = vunpack.c.l.b16 %v415
        %v624 = vunpack.c.l.b16 %v416
        %v625 = vunpack.c.l.b16 %v417
        %v626 = vunpack.c.l.b16 %v418
        %v627 = vunpack.c.l.b16 %v419
        %v628 = vunpack.c.l.b16 %v420
        %v629 = vunpack.c.l.b16 %v421
        %v630 = vunpack.c.l.b16 %v422
        %v631 = vunpack.c.l.b16 %v423
        %v632 = vunpack.c.l.b16 %v424
        %v633 = vunpack.c.l.b16 %v425
        %v634 = vunpack.c.l.b16 %v426
        %v635 = vunpack.c.l.b16 %v427
        %v636 = vunpack.c.l.b16 %v428
        %v637 = vunpack.c.l.b16 %v429
        %v638 = vunpack.c.l.b16 %v430
        %v639 = vunpack.c.l.b16 %v431
        %v640 = vunpack.c.l.b16 %v432
        %v641 = vunpack.c.l.b16 %v433
        %v642 = vunpack.c.l.b16 %v434
        %v643 = vunpack.c.l.b16 %v435
        %v644 = vunpack.c.l.b16 %v436
        %v645 = vpack.c.b16 %v582, %v581
        %v646 = vpack.c.b16 %v584, %v583
        %v647 = vpack.c.b16 %v586, %v585
        %v648 = vpack.c.b16 %v588, %v587
        %v649 = vpack.c.b16 %v590, %v589
        %v650 = vpack.c.b16 %v592, %v591
        %v651 = vpack.c.b16 %v594, %v593
        %v652 = vpack.c.b16 %v596, %v595
        %v653 = vpack.c.b16 %v598, %v597
        %v654 = vpack.c.b16 %v600, %v599
        %v655 = vpack.c.b16 %v602, %v601
        %v656 = vpack.c.b16 %v604, %v603
        %v657 = vpack.c.b16 %v606, %v605
        %v658 = vpack.c.b16 %v608, %v607
        %v659 = vpack.c.b16 %v610, %v609
        %v660 = vpack.c.b16 %v612, %v611
        %v661 = vpack.c.b16 %v614, %v613
        %v662 = vpack.c.b16 %v616, %v615
        %v663 = vpack.c.b16 %v618, %v617
        %v664 = vpack.c.b16 %v620, %v619
        %v665 = vpack.c.b16 %v622, %v621
        %v666 = vpack.c.b16 %v624, %v623
        %v667 = vpack.c.b16 %v626, %v625
        %v668 = vpack.c.b16 %v628, %v627
        %v669 = vpack.c.b16 %v630, %v629
        %v670 = vpack.c.b16 %v632, %v631
        %v671 = vpack.c.b16 %v634, %v633
        %v672 = vpack.c.b16 %v636, %v635
        %v673 = vpack.c.b16 %v638, %v637
        %v674 = vpack.c.b16 %v640, %v639
        %v675 = vpack.c.b16 %v642, %v641
        %v676 = vpack.c.b16 %v644, %v643
        %709 = vmatprep.subr.bf16.mxu0 0
        %710 = vmatpush1.bf16.msra.mxu0 %v645
        %711 = vmatprep.subr.bf16.mxu0 0
        %712 = vmatpush1.bf16.msra.mxu0 %v646
        %713 = vmatprep.subr.bf16.mxu0 0
        %714 = vmatpush1.bf16.msra.mxu0 %v647
        %715 = vmatprep.subr.bf16.mxu0 0
        %716 = vmatpush1.bf16.msra.mxu0 %v648
        %717 = vmatprep.subr.bf16.mxu0 0
        %718 = vmatpush1.bf16.msra.mxu0 %v649
        %719 = vmatprep.subr.bf16.mxu0 0
        %720 = vmatpush1.bf16.msra.mxu0 %v650
        %721 = vmatprep.subr.bf16.mxu0 0
        %722 = vmatpush1.bf16.msra.mxu0 %v651
        %723 = vmatprep.subr.bf16.mxu0 0
        %724 = vmatpush1.bf16.msra.mxu0 %v652
        %725 = vmatprep.subr.bf16.mxu0 0
        %726 = vmatpush1.bf16.msra.mxu0 %v653
        %727 = vmatprep.subr.bf16.mxu0 0
        %728 = vmatpush1.bf16.msra.mxu0 %v654
        %729 = vmatprep.subr.bf16.mxu0 0
        %730 = vmatpush1.bf16.msra.mxu0 %v655
        %731 = vmatprep.subr.bf16.mxu0 0
        %732 = vmatpush1.bf16.msra.mxu0 %v656
        %733 = vmatprep.subr.bf16.mxu0 0
        %734 = vmatpush1.bf16.msra.mxu0 %v657
        %735 = vmatprep.subr.bf16.mxu0 0
        %736 = vmatpush1.bf16.msra.mxu0 %v658
        %737 = vmatprep.subr.bf16.mxu0 0
        %738 = vmatpush1.bf16.msra.mxu0 %v659
        %739 = vmatprep.subr.bf16.mxu0 0
        %740 = vmatpush1.bf16.msra.mxu0 %v660
        %741 = vmatprep.mubr.bf16.mxu0 %v486
        %742 = vmatmul.mubr.bf16.gmra.mrb[0].mxu0 %v485
        %v743 = vpop.f32.mrb[0].mxu0
        %v744 = vadd.f32 0.0, %v743
        %v745 = vpop.f32.mrb[0].mxu0
        %v746 = vpop.f32.mrb[0].mxu0
        %v747 = vadd.f32 0.0, %v746
        %v748 = vpop.f32.mrb[0].mxu0
        %749 = vmatprep.mubr.bf16.mxu0 %v490
        %750 = vmatmul.mubr.bf16.gmra.mrb[0].mxu0 %v489
        %v751 = vpop.f32.mrb[0].mxu0
        %v752 = vadd.f32 0.0, %v751
        %v753 = vpop.f32.mrb[0].mxu0
        %v754 = vpop.f32.mrb[0].mxu0
        %v755 = vadd.f32 0.0, %v754
        %v756 = vpop.f32.mrb[0].mxu0
        %757 = vmatprep.mubr.bf16.mxu0 %v494
        %758 = vmatmul.mubr.bf16.gmra.mrb[0].mxu0 %v493
        %v759 = vpop.f32.mrb[0].mxu0
        %v760 = vadd.f32 0.0, %v759
        %v761 = vpop.f32.mrb[0].mxu0
        %v762 = vpop.f32.mrb[0].mxu0
        %v763 = vadd.f32 0.0, %v762
        %v764 = vpop.f32.mrb[0].mxu0
        %765 = vmatprep.mubr.bf16.mxu0 %v498
        %766 = vmatmul.mubr.bf16.gmra.mrb[0].mxu0 %v497
        %v767 = vpop.f32.mrb[0].mxu0
        %v768 = vadd.f32 0.0, %v767
        %v769 = vpop.f32.mrb[0].mxu0
        %v770 = vpop.f32.mrb[0].mxu0
        %v771 = vadd.f32 0.0, %v770
        %v772 = vpop.f32.mrb[0].mxu0
        %773 = vdwg.mxu0
        %774 = vmatprep.subr.bf16.mxu0 0
        %775 = vmatpush1.bf16.msra.mxu0 %v661
        %776 = vmatprep.subr.bf16.mxu0 0
        %777 = vmatpush1.bf16.msra.mxu0 %v662
        %778 = vmatprep.subr.bf16.mxu0 0
        %779 = vmatpush1.bf16.msra.mxu0 %v663
        %780 = vmatprep.subr.bf16.mxu0 0
        %781 = vmatpush1.bf16.msra.mxu0 %v664
        %782 = vmatprep.subr.bf16.mxu0 0
        %783 = vmatpush1.bf16.msra.mxu0 %v665
        %784 = vmatprep.subr.bf16.mxu0 0
        %785 = vmatpush1.bf16.msra.mxu0 %v666
        %786 = vmatprep.subr.bf16.mxu0 0
        %787 = vmatpush1.bf16.msra.mxu0 %v667
        %788 = vmatprep.subr.bf16.mxu0 0
        %789 = vmatpush1.bf16.msra.mxu0 %v668
        %790 = vmatprep.subr.bf16.mxu0 0
        %791 = vmatpush1.bf16.msra.mxu0 %v669
        %792 = vmatprep.subr.bf16.mxu0 0
        %793 = vmatpush1.bf16.msra.mxu0 %v670
        %794 = vmatprep.subr.bf16.mxu0 0
        %795 = vmatpush1.bf16.msra.mxu0 %v671
        %796 = vmatprep.subr.bf16.mxu0 0
        %797 = vmatpush1.bf16.msra.mxu0 %v672
        %798 = vmatprep.subr.bf16.mxu0 0
        %799 = vmatpush1.bf16.msra.mxu0 %v673
        %800 = vmatprep.subr.bf16.mxu0 0
        %801 = vmatpush1.bf16.msra.mxu0 %v674
        %802 = vmatprep.subr.bf16.mxu0 0
        %803 = vmatpush1.bf16.msra.mxu0 %v675
        %804 = vmatprep.subr.bf16.mxu0 0
        %805 = vmatpush1.bf16.msra.mxu0 %v676
        %806 = vmatprep.mubr.bf16.mxu0 %v488
        %807 = vmatmul.mubr.bf16.gmra.mrb[0].mxu0 %v487
        %v808 = vpop.f32.mrb[0].mxu0
        %v809 = vadd.f32 %v744, %v808
        %v810 = vpop.f32.mrb[0].mxu0
        %v811 = vpop.f32.mrb[0].mxu0
        %v812 = vadd.f32 %v747, %v811
        %v813 = vpop.f32.mrb[0].mxu0
        %814 = vmatprep.mubr.bf16.mxu0 %v492
        %815 = vmatmul.mubr.bf16.gmra.mrb[0].mxu0 %v491
        %v816 = vpop.f32.mrb[0].mxu0
        %v817 = vadd.f32 %v752, %v816
        %v818 = vpop.f32.mrb[0].mxu0
        %v819 = vpop.f32.mrb[0].mxu0
        %v820 = vadd.f32 %v755, %v819
        %v821 = vpop.f32.mrb[0].mxu0
        %822 = vmatprep.mubr.bf16.mxu0 %v496
        %823 = vmatmul.mubr.bf16.gmra.mrb[0].mxu0 %v495
        %v824 = vpop.f32.mrb[0].mxu0
        %v825 = vadd.f32 %v760, %v824
        %v826 = vpop.f32.mrb[0].mxu0
        %v827 = vpop.f32.mrb[0].mxu0
        %v828 = vadd.f32 %v763, %v827
        %v829 = vpop.f32.mrb[0].mxu0
        %830 = vmatprep.mubr.bf16.mxu0 %v500
        %831 = vmatmul.mubr.bf16.gmra.mrb[0].mxu0 %v499
        %v832 = vpop.f32.mrb[0].mxu0
        %v833 = vadd.f32 %v768, %v832
        %v834 = vpop.f32.mrb[0].mxu0
        %v835 = vpop.f32.mrb[0].mxu0
        %v836 = vadd.f32 %v771, %v835
        %v837 = vpop.f32.mrb[0].mxu0
        %838 = vdwg.mxu0
        %v839 = vadd.f32 %v349, %v809
        %v840 = vadd.f32 %v350, %v812
        %v841 = vadd.f32 %v351, %v817
        %v842 = vadd.f32 %v352, %v820
        %v843 = vadd.f32 %v353, %v825
        %v844 = vadd.f32 %v354, %v828
        %v845 = vadd.f32 %v355, %v833
        %v846 = vadd.f32 %v356, %v836
        %847 = vst [vmem:[#allocation2] sm:$0xff] %v839
        %848 = vst [vmem:[#allocation2 + $0x8] sm:$0xff] %v840
        %849 = vst [vmem:[#allocation2 + $0x10] sm:$0xff] %v841
        %850 = vst [vmem:[#allocation2 + $0x18] sm:$0xff] %v842
        %851 = vst [vmem:[#allocation2 + $0x20] sm:$0xff] %v843
        %852 = vst [vmem:[#allocation2 + $0x28] sm:$0xff] %v844
        %853 = vst [vmem:[#allocation2 + $0x30] sm:$0xff] %v845
        %854 = vst [vmem:[#allocation2 + $0x38] sm:$0xff] %v846
        %p855 = scmp.eq.s32.totalorder %s24, 1
        // Predicated region
        $region60: #{nlayer_discriminator_forward.15} parent=50 // pred_check
          %p856 = pneg %p855
        $region61: #{nlayer_discriminator_forward.15} parent=50 // pred_check_branch
          %858 = sbr.rel (%p856) target = $region63
        $region62: #{nlayer_discriminator_forward.15} parent=50 // pred_region
          %v859 = vld [vmem:[#allocation2] sm:$0xff]
          %v860 = vld [vmem:[#allocation2 + $0x8] sm:$0xff]
          %v861 = vld [vmem:[#allocation2 + $0x10] sm:$0xff]
          %v862 = vld [vmem:[#allocation2 + $0x18] sm:$0xff]
          %v863 = vld [vmem:[#allocation2 + $0x20] sm:$0xff]
          %v864 = vld [vmem:[#allocation2 + $0x28] sm:$0xff]
          %v865 = vld [vmem:[#allocation2 + $0x30] sm:$0xff]
          %v866 = vld [vmem:[#allocation2 + $0x38] sm:$0xff]
          %v867 = vld [vmem:[%s326] sm:$0x1]
          %v869 = vlaneseq
          %v870 = vshrl.u32 %v869, 7
          %v871 = vsub.s32 0, %v870
          %v872 = vrot.slane %v867, %v871
          %v874 = vadd.f32 %v859, %v872
          %v875 = vadd.f32 %v860, %v872
          %v876 = vadd.f32 %v861, %v872
          %v877 = vadd.f32 %v862, %v872
          %v878 = vadd.f32 %v863, %v872
          %v879 = vadd.f32 %v864, %v872
          %v880 = vadd.f32 %v865, %v872
          %v881 = vadd.f32 %v866, %v872
          %882 = vst [vmem:[%s334] sm:$0xff] %v874
          %883 = vst [vmem:[%s334 + $0x8] sm:$0xff] %v875
          %884 = vst [vmem:[%s334 + $0x10] sm:$0xff] %v876
          %885 = vst [vmem:[%s334 + $0x18] sm:$0xff] %v877
          %886 = vst [vmem:[%s334 + $0x20] sm:$0xff] %v878
          %887 = vst [vmem:[%s334 + $0x28] sm:$0xff] %v879
          %888 = vst [vmem:[%s334 + $0x30] sm:$0xff] %v880
          %889 = vst [vmem:[%s334 + $0x38] sm:$0xff] %v881
          %890 = vst [vmem:[#allocation4] sm:$0xff] 0.0
          %v891 = vadd.f32 %v874, %v875
          %v892 = vadd.f32 %v891, %v876
          %v893 = vadd.f32 %v892, %v877
          %v894 = vadd.f32 %v893, %v878
          %v895 = vadd.f32 %v894, %v879
          %v896 = vadd.f32 %v895, %v880
          %v897 = vadd.f32 %v896, %v881
          %v898 = vrot.slane %v897, 4
          %v899 = vadd.f32 %v897, %v898
          %v900 = vrot.slane %v899, 2
          %v901 = vadd.f32 %v899, %v900
          %v902 = vrot.slane %v901, 1
          %v903 = vadd.f32 %v901, %v902
          %904 = vst [vmem:[#allocation4] sm:$0x1] %v903
          %v905 = vmul.f32 %v874, %v874
          %v906 = vmul.f32 %v875, %v875
          %v907 = vmul.f32 %v876, %v876
          %v908 = vmul.f32 %v877, %v877
          %v909 = vmul.f32 %v878, %v878
          %v910 = vmul.f32 %v879, %v879
          %v911 = vmul.f32 %v880, %v880
          %v912 = vmul.f32 %v881, %v881
          %v913 = vadd.f32 %v905, %v906
          %v914 = vadd.f32 %v913, %v907
          %v915 = vadd.f32 %v914, %v908
          %v916 = vadd.f32 %v915, %v909
          %v917 = vadd.f32 %v916, %v910
          %v918 = vadd.f32 %v917, %v911
          %v919 = vadd.f32 %v918, %v912
          %v920 = vrot.slane %v919, 4
          %v921 = vadd.f32 %v919, %v920
          %v922 = vrot.slane %v921, 2
          %v923 = vadd.f32 %v921, %v922
          %v924 = vrot.slane %v923, 1
          %v925 = vadd.f32 %v923, %v924
          %926 = vst [vmem:[#allocation4 + $0x1] sm:$0x1] %v925
        $region63: #{nlayer_discriminator_forward.15} parent=50 // pred_fallthru
          _
        %s927 = smul.u32 8, %s22
        %p928 = scmp.lt.s32.totalorder %s927, 7
        %s929 = scalar_select %p928, %s927, 7
        %p930 = scmp.lt.s32.totalorder %s23, 0
        %s931 = scalar_select %p930, %s23, 0
        %s932 = sadd.s32 %s931, %s929
        %s933 = smul.addr %s932, 8
        %s934 = scalar_lea.vmem %s3, %s933
        // Predicated region
        $region64: #{nlayer_discriminator_forward.15} parent=50 // pred_check
          %p935 = pneg %p138
        $region65: #{nlayer_discriminator_forward.15} parent=50 // pred_check_branch
          %937 = sbr.rel (%p935) target = $region67
        $region66: #{nlayer_discriminator_forward.15} parent=50 // pred_region
          %s938 = smul.u32 8, %s22
        $region67: #{nlayer_discriminator_forward.15} parent=50 // pred_fallthru
          _
        // Predicated region
        $region68: #{nlayer_discriminator_forward.15} parent=50 // pred_check
          %p939 = pneg %p166
        $region69: #{nlayer_discriminator_forward.15} parent=50 // pred_check_branch
          %941 = sbr.rel (%p939) target = $region71
        $region70: #{nlayer_discriminator_forward.15} parent=50 // pred_region
          %s943 = ssub.s32 128, 128
          %944 = vsyncadd [#allocation5], %s943
          %s945 = sadd.s32 %s23, %s22
          %s946 = smul.addr %s945, 128
          %s947 = scalar_lea.hbm %s4, %s946
          %s949 = sshll.u32 [#allocation4], 4
          %s950 = int_to_ptr.vmem [resolvable:$true] %s949
          %952 = dma.vmem_to_hbm [thread:$0]  %s950, 128, %s947, [#allocation5]
        $region71: #{nlayer_discriminator_forward.15} parent=50 // pred_fallthru
          _
        // Predicated region
        $region72: #{nlayer_discriminator_forward.15} parent=50 // pred_check
          %p953 = pneg %p138
        $region73: #{nlayer_discriminator_forward.15} parent=50 // pred_check_branch
          %955 = sbr.rel (%p953) target = $region75
        $region74: #{nlayer_discriminator_forward.15} parent=50 // pred_region
          %s956 = smul.u32 8, %s22
          %p957 = scmp.lt.s32.totalorder %s956, 7
          %s958 = scalar_select %p957, %s956, 7
          %p959 = scmp.lt.s32.totalorder %s23, 0
          %s960 = scalar_select %p959, %s23, 0
          %s961 = sadd.s32 %s960, %s958
          %s962 = smul.addr %s961, 8
          %s963 = scalar_lea.vmem %s3, %s962
        $region75: #{nlayer_discriminator_forward.15} parent=50 // pred_fallthru
          _
        // Predicated region
        $region76: #{nlayer_discriminator_forward.15} parent=50 // pred_check
          %p964 = pneg %p166
        $region77: #{nlayer_discriminator_forward.15} parent=50 // pred_check_branch
          %966 = sbr.rel (%p964) target = $region79
        $region78: #{nlayer_discriminator_forward.15} parent=50 // pred_region
          %967 = dma.done [#allocation5], 128
        $region79: #{nlayer_discriminator_forward.15} parent=50 // pred_fallthru
          _
      $region51: #{nlayer_discriminator_forward.15} parent=5 // pred_fallthru
        _
      %p968 = scmp.le.s32.totalorder 2, %s12
      // Predicated region
      $region80: #{nlayer_discriminator_forward.15} parent=5 // pred_check
        %p969 = pneg %p968
      $region81: #{nlayer_discriminator_forward.15} parent=5 // pred_check_branch
        %971 = sbr.rel (%p969) target = $region83
      $region82: #{nlayer_discriminator_forward.15} parent=5 // pred_region
        %s972 = ssub.s32 %s12, 2
      $region83: #{nlayer_discriminator_forward.15} parent=5 // pred_fallthru
        _
    $region6: #{nlayer_discriminator_forward.15} parent=1 // loop_footer
      %s16 = sadd.s32 1, %s12
    $region7: #{nlayer_discriminator_forward.15} parent=1 // loop_footer_branch
      %11 = sbr.rel target = $region3
    $region8: #{nlayer_discriminator_forward.15} parent=1 // loop_exit
      _
    %973 = vsyncpa [#allocation5], 1
    %s974 = scalar_lea.sflag [#allocation5], 1
    %975 = vsyncpa %s974, 1

</llo_original>
